<compile_context>
chip_gen: v7x
topology: tpu7x:2x2x1
jax: 0.10.0
libtpu: 0.0.40
codegen_flags: <defaults>
</compile_context>

<pallas_src>
import functools

import jax
import jax.numpy as jnp
import numpy as np
from jax import lax
from jax.experimental import pallas as pl
from jax.experimental.pallas import tpu as pltpu

# ---------------- small SAM-style ViT config ----------------
IMG = 32          # image size
IN_CHANS = 3
PATCH = 8         # patch size -> 4x4 = 16 tokens per image
EMBED = 32        # embed dim
DEPTH = 2         # transformer blocks
NUM_HEADS = 4
HEAD_DIM = EMBED // NUM_HEADS
MLP_DIM = 4 * EMBED
OUT_CHANS = 16    # neck output channels
LN_EPS = 1e-6
FEAT = IN_CHANS * PATCH * PATCH


# ---------------- the single fused Pallas kernel ----------------
def _encoder_kernel(patches_ref, pos_ref, patch_w_ref, vec_ref,
                    qkv_w_ref, proj_w_ref, mlp_w1_ref, mlp_w2_ref,
                    neck_w1_ref, shift_ref, neck_w2_ref, bias_ref, out_ref,
                    *, depth, num_heads, head_dim, batch, seq):
    emb = num_heads * head_dim
    bs = batch * seq

    def mm(x, w):                 # bf16 MXU operands, f32 accumulation
        return jnp.dot(x.astype(w.dtype), w, preferred_element_type=jnp.float32)

    def ln(x, g, b):
        mu = jnp.mean(x, axis=-1, keepdims=True)
        var = jnp.mean((x - mu) ** 2, axis=-1, keepdims=True)
        return (x - mu) * lax.rsqrt(var + LN_EPS) * g + b

    vt = vec_ref[...]                         # [rows, 128] packed bias/LN vectors
    attn_bias = bias_ref[...]                 # [BS, BS] 0 / -1e9 cross-batch mask

    # ---- patch embed + positional embedding (tokens stay resident in VMEM) ----
    patch_b = vt[depth * 8:depth * 8 + 1, :emb]
    tok = mm(patches_ref[...], patch_w_ref[...]) + patch_b + pos_ref[...]   # [BS, D]

    scale = head_dim ** -0.5
    for d in range(depth):
        base = d * 8
        ln1_g = vt[base + 0:base + 1, :emb]
        ln1_b = vt[base + 1:base + 2, :emb]
        qkv_b = vt[base + 2:base + 3, :3 * emb]
        proj_b = vt[base + 3:base + 4, :emb]
        ln2_g = vt[base + 4:base + 5, :emb]
        ln2_b = vt[base + 5:base + 6, :emb]
        mlp_b1 = vt[base + 6:base + 7, :MLP_DIM]
        mlp_b2 = vt[base + 7:base + 8, :emb]

        # ---- attention (batch folded into tokens, cross-batch blocks masked) ----
        h = ln(tok, ln1_g, ln1_b)
        qkv = mm(h, qkv_w_ref[d]) + qkv_b                               # [BS, 3D]
        heads = []
        for hh in range(num_heads):
            lo = hh * head_dim
            q = (qkv[:, lo:lo + head_dim] * scale).astype(jnp.bfloat16)
            k = qkv[:, emb + lo:emb + lo + head_dim].astype(jnp.bfloat16)
            v = qkv[:, 2 * emb + lo:2 * emb + lo + head_dim].astype(jnp.bfloat16)
            # q @ k^T without materializing a transpose (contract last dims)
            s = lax.dot_general(q, k, (((1,), (1,)), ((), ())),
                                preferred_element_type=jnp.float32)     # [BS, BS]
            s = s + attn_bias
            s = s - jnp.max(s, axis=-1, keepdims=True)
            p = jnp.exp(s)
            p = p * pl.reciprocal(jnp.sum(p, axis=-1, keepdims=True), approx=True)
            heads.append(jnp.dot(p.astype(jnp.bfloat16), v,
                                 preferred_element_type=jnp.float32))   # [BS, Dh]
        attn = jnp.concatenate(heads, axis=-1)                          # [BS, D]
        tok = tok + mm(attn, proj_w_ref[d]) + proj_b                    # one K=D proj

        # ---- MLP ----
        h = ln(tok, ln2_g, ln2_b)
        h = mm(h, mlp_w1_ref[d]) + mlp_b1
        h = 0.5 * h * (1.0 + lax.erf(h * (2.0 ** -0.5)))                # exact GELU
        tok = tok + mm(h, mlp_w2_ref[d]) + mlp_b2

    # ---- neck: 1x1 conv -> LayerNorm2d -> 3x3 conv (pad=1) -> LayerNorm2d ----
    m = depth * 8
    nln1_g = vt[m + 1:m + 2, :OUT_CHANS]
    nln1_b = vt[m + 2:m + 3, :OUT_CHANS]
    nln2_g = vt[m + 3:m + 4, :OUT_CHANS]
    nln2_b = vt[m + 4:m + 5, :OUT_CHANS]

    y = ln(mm(tok, neck_w1_ref[...]), nln1_g, nln1_b)                   # [BS, C]
    # 3x3 conv as TWO matmuls: (Pstack @ y) gathers the 9 taps (boundary taps are
    # zero rows), then vreg-aligned row slices + lane concat give [BS, 9*C] for a
    # single K=9C matmul against the stacked conv weights.
    shifted = jnp.dot(shift_ref[...], y.astype(jnp.bfloat16),
                      preferred_element_type=jnp.float32)               # [9*BS, C]
    ycat = jnp.concatenate(
        [shifted[k * bs:(k + 1) * bs, :] for k in range(9)], axis=-1)   # [BS, 9C]
    conv = mm(ycat, neck_w2_ref[...])                                   # [BS, C]
    out_ref[...] = ln(conv, nln2_g, nln2_b)


# ---------------- host-side constant helpers ----------------
def _make_shift_stack(batch, hp, wp):
    """Pstack[k*BS + t, u] = 1 iff token u is the (kh,kw) tap (3x3, pad=1) of
    token t within the same image (block-diagonal over batch)."""
    s = hp * wp
    bs = batch * s
    p = np.zeros((9 * bs, bs), np.float32)
    for k in range(9):
        dkh, dkw = k // 3 - 1, k % 3 - 1
        for b in range(batch):
            for h in range(hp):
                for w in range(wp):
                    hh, ww = h + dkh, w + dkw
                    if 0 <= hh < hp and 0 <= ww < wp:
                        p[k * bs + b * s + h * wp + w, b * s + hh * wp + ww] = 1.0
    return p


def _make_attn_bias(batch, s):
    bs = batch * s
    bias = np.full((bs, bs), -1e9, np.float32)
    for b in range(batch):
        bias[b * s:(b + 1) * s, b * s:(b + 1) * s] = 0.0
    return bias


# ---------------- parameter init (deterministic, synthetic) ----------------
def init_params(key):
    ks = iter(jax.random.split(key, 64))
    nrm = lambda shape: 0.02 * jax.random.normal(next(ks), shape, jnp.float32)
    hp = wp = IMG // PATCH

    p = {
        "patch_w": nrm((FEAT, EMBED)),             # conv(k=ps, s=ps) as a matmul
        "patch_b": nrm((EMBED,)),
        "pos_embed": nrm((1, hp, wp, EMBED)),
        "blocks": [],
        "neck_w1": nrm((EMBED, OUT_CHANS)),        # 1x1 conv, no bias
        "neck_ln1_g": 1.0 + nrm((OUT_CHANS,)),
        "neck_ln1_b": nrm((OUT_CHANS,)),
        "neck_w2": nrm((9, OUT_CHANS, OUT_CHANS)),  # 3x3 taps (k=kh*3+kw, ci, co)
        "neck_ln2_g": 1.0 + nrm((OUT_CHANS,)),
        "neck_ln2_b": nrm((OUT_CHANS,)),
    }
    for _ in range(DEPTH):
        p["blocks"].append({
            "ln1_g": 1.0 + nrm((EMBED,)), "ln1_b": nrm((EMBED,)),
            "qkv_w": nrm((EMBED, 3 * EMBED)), "qkv_b": nrm((3 * EMBED,)),
            "proj_w": nrm((EMBED, EMBED)), "proj_b": nrm((EMBED,)),
            "ln2_g": 1.0 + nrm((EMBED,)), "ln2_b": nrm((EMBED,)),
            "mlp_w1": nrm((EMBED, MLP_DIM)), "mlp_b1": nrm((MLP_DIM,)),
            "mlp_w2": nrm((MLP_DIM, EMBED)), "mlp_b2": nrm((EMBED,)),
        })
    return p


# ---------------- forward pass (== SAMImageEncodeWrapper.forward) ----------------
def sam_image_encoder_forward(x, p):
    B, C, H, W = x.shape
    hp, wp = H // PATCH, W // PATCH
    S = hp * wp
    BS = B * S
    feat = C * PATCH * PATCH

    # ---- input-side glue: im2col + parameter packing (XLA, outside the kernel) ----
    patches = x.reshape(B, C, hp, PATCH, wp, PATCH)
    patches = patches.transpose(0, 2, 4, 1, 3, 5).reshape(BS, feat).astype(jnp.float32)
    pos = jnp.tile(p["pos_embed"].reshape(S, EMBED).astype(jnp.float32), (B, 1))

    bf = lambda w: w.astype(jnp.bfloat16)

    def row(v):   # one 128-lane row of the packed vector table
        v = v.reshape(-1).astype(jnp.float32)
        return jnp.pad(v, (0, 128 - v.shape[0]))[None, :]

    rows = []
    for blk in p["blocks"]:
        rows += [row(blk[k]) for k in ("ln1_g", "ln1_b", "qkv_b", "proj_b",
                                       "ln2_g", "ln2_b", "mlp_b1", "mlp_b2")]
    rows += [row(p[k]) for k in ("patch_b", "neck_ln1_g", "neck_ln1_b",
                                 "neck_ln2_g", "neck_ln2_b")]
    while len(rows) % 8:
        rows.append(jnp.zeros((1, 128), jnp.float32))
    vec_tab = jnp.concatenate(rows, axis=0)

    qkv_w = bf(jnp.stack([blk["qkv_w"] for blk in p["blocks"]]))
    proj_w = bf(jnp.stack([blk["proj_w"] for blk in p["blocks"]]))
    mlp_w1 = bf(jnp.stack([blk["mlp_w1"] for blk in p["blocks"]]))
    mlp_w2 = bf(jnp.stack([blk["mlp_w2"] for blk in p["blocks"]]))
    neck_w1 = bf(p["neck_w1"])
    neck_w2s = bf(p["neck_w2"].reshape(9 * OUT_CHANS, OUT_CHANS))
    shift = jnp.asarray(_make_shift_stack(B, hp, wp)).astype(jnp.bfloat16)  # 0/1 exact
    attn_bias = jnp.asarray(_make_attn_bias(B, S))

    inputs = [patches, pos, bf(p["patch_w"]), vec_tab,
              qkv_w, proj_w, mlp_w1, mlp_w2,
              neck_w1, shift, neck_w2s, attn_bias]

    # one grid step: batch is folded into tokens (single TC on v5e/v6e; for v7x
    # one would instead split the token axis over a core-parallel 2-step grid)
    in_specs = [pl.BlockSpec(a.shape, lambda i, nd=a.ndim: (0,) * nd) for a in inputs]
    out_specs = pl.BlockSpec((BS, OUT_CHANS), lambda i: (0, 0))

    flops = 2 * BS * feat * EMBED
    flops += DEPTH * 2 * BS * (EMBED * 3 * EMBED + 2 * BS * EMBED
                               + EMBED * EMBED + 2 * EMBED * MLP_DIM)
    flops += 2 * BS * EMBED * OUT_CHANS
    flops += 2 * 9 * BS * BS * OUT_CHANS + 2 * BS * 9 * OUT_CHANS * OUT_CHANS
    transcendentals = DEPTH * BS * (NUM_HEADS * BS + MLP_DIM)
    bytes_accessed = sum(a.size * a.dtype.itemsize for a in inputs) + BS * OUT_CHANS * 4

    y = pl.pallas_call(
        functools.partial(_encoder_kernel, depth=DEPTH, num_heads=NUM_HEADS,
                          head_dim=HEAD_DIM, batch=B, seq=S),
        grid=(1,),
        in_specs=in_specs,
        out_specs=out_specs,
        out_shape=jax.ShapeDtypeStruct((BS, OUT_CHANS), jnp.float32),
        compiler_params=pltpu.CompilerParams(dimension_semantics=("arbitrary",)),
        cost_estimate=pl.CostEstimate(flops=int(flops),
                                      transcendentals=int(transcendentals),
                                      bytes_accessed=int(bytes_accessed)),
    )(*inputs)

    # back to NCHW like the PyTorch encoder output
    return y.reshape(B, hp, wp, OUT_CHANS).transpose(0, 3, 1, 2)


# ---------------- pure-JAX reference (same math + precision policy, no Pallas) ----
def sam_image_encoder_reference(x, p):
    B, C, H, W = x.shape
    hp, wp = H // PATCH, W // PATCH
    S = hp * wp

    def mm(a, w):
        return jnp.dot(a.astype(jnp.bfloat16), w.astype(jnp.bfloat16),
                       preferred_element_type=jnp.float32)

    def ln(a, g, b):
        mu = jnp.mean(a, axis=-1, keepdims=True)
        var = jnp.mean((a - mu) ** 2, axis=-1, keepdims=True)
        return (a - mu) * lax.rsqrt(var + LN_EPS) * g + b

    patches = x.reshape(B, C, hp, PATCH, wp, PATCH)
    patches = patches.transpose(0, 2, 4, 1, 3, 5).reshape(B, S, -1)
    tok = mm(patches, p["patch_w"]) + p["patch_b"] + p["pos_embed"].reshape(1, S, EMBED)

    scale = HEAD_DIM ** -0.5
    for blk in p["blocks"]:
        h = ln(tok, blk["ln1_g"], blk["ln1_b"])
        qkv = mm(h, blk["qkv_w"]) + blk["qkv_b"]
        q, k, v = jnp.split(qkv, 3, axis=-1)
        heads = lambda t: t.reshape(B, S, NUM_HEADS, HEAD_DIM).transpose(0, 2, 1, 3)
        qh = heads(q * scale).astype(jnp.bfloat16)
        kh = heads(k).astype(jnp.bfloat16)
        vh = heads(v).astype(jnp.bfloat16)
        s = jnp.einsum("bhqd,bhkd->bhqk", qh, kh, preferred_element_type=jnp.float32)
        pa = jax.nn.softmax(s, axis=-1)
        o = jnp.einsum("bhqk,bhkd->bhqd", pa.astype(jnp.bfloat16), vh,
                       preferred_element_type=jnp.float32)
        o = o.transpose(0, 2, 1, 3).reshape(B, S, EMBED)
        tok = tok + mm(o, blk["proj_w"]) + blk["proj_b"]
        h = ln(tok, blk["ln2_g"], blk["ln2_b"])
        h = mm(h, blk["mlp_w1"]) + blk["mlp_b1"]
        h = 0.5 * h * (1.0 + lax.erf(h * (2.0 ** -0.5)))
        tok = tok + mm(h, blk["mlp_w2"]) + blk["mlp_b2"]

    y = ln(mm(tok, p["neck_w1"]), p["neck_ln1_g"], p["neck_ln1_b"])
    yg = y.reshape(B, hp, wp, OUT_CHANS)
    ypad = jnp.pad(yg, ((0, 0), (1, 1), (1, 1), (0, 0)))
    conv = jnp.zeros_like(yg)
    for kh_i in range(3):
        for kw_i in range(3):
            tap = ypad[:, kh_i:kh_i + hp, kw_i:kw_i + wp, :]
            w2 = p["neck_w2"][kh_i * 3 + kw_i]
            conv = conv + jnp.einsum("bhwc,cd->bhwd", tap.astype(jnp.bfloat16),
                                     w2.astype(jnp.bfloat16),
                                     preferred_element_type=jnp.float32)
    yout = ln(conv, p["neck_ln2_g"], p["neck_ln2_b"])
    return yout.transpose(0, 3, 1, 2)


if __name__ == "__main__":
    key = jax.random.PRNGKey(0)
    k_x, k_p = jax.random.split(key)
    x = jax.random.normal(k_x, (2, IN_CHANS, IMG, IMG), jnp.float32)   # NCHW
    params = init_params(k_p)

    fwd = jax.jit(sam_image_encoder_forward)
    out = fwd(x, params)
    jax.block_until_ready(out)

    assert out.shape == (2, OUT_CHANS, IMG // PATCH, IMG // PATCH)
    assert bool(jnp.all(jnp.isfinite(out)))

    ref = sam_image_encoder_reference(x, params)
    err = float(jnp.max(jnp.abs(out - ref)))
    assert err < 5e-2, f"kernel/reference mismatch: max abs err = {err}"
    print("KERNEL_OK")
</pallas_src>

<mosaic_0001>
module attributes {stable_mosaic.version = 11 : i64} {
  func.func @_encoder_kernel(%arg0: i32, %arg1: memref<32x192xf32, #tpu.memory_space<vmem>>, %arg2: memref<32x32xf32, #tpu.memory_space<vmem>>, %arg3: memref<192x32xbf16, #tpu.memory_space<vmem>>, %arg4: memref<24x128xf32, #tpu.memory_space<vmem>>, %arg5: memref<2x32x96xbf16, #tpu.memory_space<vmem>>, %arg6: memref<2x32x32xbf16, #tpu.memory_space<vmem>>, %arg7: memref<2x32x128xbf16, #tpu.memory_space<vmem>>, %arg8: memref<2x128x32xbf16, #tpu.memory_space<vmem>>, %arg9: memref<32x16xbf16, #tpu.memory_space<vmem>>, %arg10: memref<288x32xbf16, #tpu.memory_space<vmem>>, %arg11: memref<144x16xbf16, #tpu.memory_space<vmem>>, %arg12: memref<32x32xf32, #tpu.memory_space<vmem>>, %arg13: memref<32x16xf32, #tpu.memory_space<vmem>>) attributes {dimension_semantics = [#tpu.dimension_semantics<arbitrary>], iteration_bounds = array<i64: 1>, scalar_prefetch = 0 : i64, scratch_operands = 0 : i64, tpu.core_type = #tpu.core_type<tc>, window_params = [{pipeline_mode = #tpu.pipeline_mode<synchronous>, transform_indices = @transform_0, window_bounds = array<i64: 32, 192>}, {pipeline_mode = #tpu.pipeline_mode<synchronous>, transform_indices = @transform_1, window_bounds = array<i64: 32, 32>}, {pipeline_mode = #tpu.pipeline_mode<synchronous>, transform_indices = @transform_2, window_bounds = array<i64: 192, 32>}, {pipeline_mode = #tpu.pipeline_mode<synchronous>, transform_indices = @transform_3, window_bounds = array<i64: 24, 128>}, {pipeline_mode = #tpu.pipeline_mode<synchronous>, transform_indices = @transform_4, window_bounds = array<i64: 2, 32, 96>}, {pipeline_mode = #tpu.pipeline_mode<synchronous>, transform_indices = @transform_5, window_bounds = array<i64: 2, 32, 32>}, {pipeline_mode = #tpu.pipeline_mode<synchronous>, transform_indices = @transform_6, window_bounds = array<i64: 2, 32, 128>}, {pipeline_mode = #tpu.pipeline_mode<synchronous>, transform_indices = @transform_7, window_bounds = array<i64: 2, 128, 32>}, {pipeline_mode = #tpu.pipeline_mode<synchronous>, transform_indices = @transform_8, window_bounds = array<i64: 32, 16>}, {pipeline_mode = #tpu.pipeline_mode<synchronous>, transform_indices = @transform_9, window_bounds = array<i64: 288, 32>}, {pipeline_mode = #tpu.pipeline_mode<synchronous>, transform_indices = @transform_10, window_bounds = array<i64: 144, 16>}, {pipeline_mode = #tpu.pipeline_mode<synchronous>, transform_indices = @transform_11, window_bounds = array<i64: 32, 32>}, {pipeline_mode = #tpu.pipeline_mode<synchronous>, transform_indices = @transform_12, window_bounds = array<i64: 32, 16>}]} {
    %c0 = arith.constant 0 : index
    %c0_0 = arith.constant 0 : index
    %0 = vector.load %arg4[%c0, %c0_0] : memref<24x128xf32, #tpu.memory_space<vmem>>, vector<24x128xf32>
    %c0_1 = arith.constant 0 : index
    %c0_2 = arith.constant 0 : index
    %1 = vector.load %arg12[%c0_1, %c0_2] : memref<32x32xf32, #tpu.memory_space<vmem>>, vector<32x32xf32>
    %2 = vector.extract_strided_slice %0 {offsets = [16, 0], sizes = [1, 32], strides = [1, 1]} : vector<24x128xf32> to vector<1x32xf32>
    %c0_3 = arith.constant 0 : index
    %c0_4 = arith.constant 0 : index
    %3 = vector.load %arg1[%c0_3, %c0_4] : memref<32x192xf32, #tpu.memory_space<vmem>>, vector<32x192xf32>
    %c0_5 = arith.constant 0 : index
    %c0_6 = arith.constant 0 : index
    %4 = vector.load %arg3[%c0_5, %c0_6] : memref<192x32xbf16, #tpu.memory_space<vmem>>, vector<192x32xbf16>
    %5 = arith.truncf %3 : vector<32x192xf32> to vector<32x192xbf16>
    %cst = arith.constant dense<0.000000e+00> : vector<32x32xf32>
    %6 = tpu.matmul %5, %4, %cst {dimension_numbers = #tpu.dot_dimension_numbers<[1], [0], [0], [1], [0, 0, 1, 1], [], []>} : vector<32x192xbf16>, vector<192x32xbf16>, vector<32x32xf32> -> vector<32x32xf32>
    %7 = vector.broadcast %2 : vector<1x32xf32> to vector<32x32xf32>
    %8 = arith.addf %6, %7 : vector<32x32xf32>
    %c0_7 = arith.constant 0 : index
    %c0_8 = arith.constant 0 : index
    %9 = vector.load %arg2[%c0_7, %c0_8] : memref<32x32xf32, #tpu.memory_space<vmem>>, vector<32x32xf32>
    %10 = arith.addf %8, %9 : vector<32x32xf32>
    %11 = vector.extract_strided_slice %0 {offsets = [0, 0], sizes = [1, 32], strides = [1, 1]} : vector<24x128xf32> to vector<1x32xf32>
    %12 = vector.extract_strided_slice %0 {offsets = [1, 0], sizes = [1, 32], strides = [1, 1]} : vector<24x128xf32> to vector<1x32xf32>
    %13 = vector.extract_strided_slice %0 {offsets = [2, 0], sizes = [1, 96], strides = [1, 1]} : vector<24x128xf32> to vector<1x96xf32>
    %14 = vector.extract_strided_slice %0 {offsets = [3, 0], sizes = [1, 32], strides = [1, 1]} : vector<24x128xf32> to vector<1x32xf32>
    %15 = vector.extract_strided_slice %0 {offsets = [4, 0], sizes = [1, 32], strides = [1, 1]} : vector<24x128xf32> to vector<1x32xf32>
    %16 = vector.extract_strided_slice %0 {offsets = [5, 0], sizes = [1, 32], strides = [1, 1]} : vector<24x128xf32> to vector<1x32xf32>
    %17 = vector.extract_strided_slice %0 {offsets = [6, 0], sizes = [1, 128], strides = [1, 1]} : vector<24x128xf32> to vector<1x128xf32>
    %18 = vector.extract_strided_slice %0 {offsets = [7, 0], sizes = [1, 32], strides = [1, 1]} : vector<24x128xf32> to vector<1x32xf32>
    %cst_9 = arith.constant dense<0.000000e+00> : vector<32xf32>
    %19 = vector.multi_reduction <add>, %10, %cst_9 [1] : vector<32x32xf32> to vector<32xf32>
    %20 = vector.shape_cast %19 : vector<32xf32> to vector<32x1xf32>
    %cst_10 = arith.constant 3.200000e+01 : f32
    %21 = vector.broadcast %cst_10 : f32 to vector<32x1xf32>
    %22 = arith.divf %20, %21 : vector<32x1xf32>
    %23 = vector.broadcast %22 : vector<32x1xf32> to vector<32x32xf32>
    %24 = arith.subf %10, %23 : vector<32x32xf32>
    %25 = arith.mulf %24, %24 : vector<32x32xf32>
    %cst_11 = arith.constant dense<0.000000e+00> : vector<32xf32>
    %26 = vector.multi_reduction <add>, %25, %cst_11 [1] : vector<32x32xf32> to vector<32xf32>
    %27 = vector.shape_cast %26 : vector<32xf32> to vector<32x1xf32>
    %cst_12 = arith.constant 3.200000e+01 : f32
    %28 = vector.broadcast %cst_12 : f32 to vector<32x1xf32>
    %29 = arith.divf %27, %28 : vector<32x1xf32>
    %30 = vector.broadcast %22 : vector<32x1xf32> to vector<32x32xf32>
    %31 = arith.subf %10, %30 : vector<32x32xf32>
    %cst_13 = arith.constant 9.99999997E-7 : f32
    %32 = vector.broadcast %cst_13 : f32 to vector<32x1xf32>
    %33 = arith.addf %29, %32 : vector<32x1xf32>
    %34 = math.rsqrt %33 : vector<32x1xf32>
    %35 = vector.broadcast %34 : vector<32x1xf32> to vector<32x32xf32>
    %36 = arith.mulf %31, %35 : vector<32x32xf32>
    %37 = vector.broadcast %11 : vector<1x32xf32> to vector<32x32xf32>
    %38 = arith.mulf %36, %37 : vector<32x32xf32>
    %39 = vector.broadcast %12 : vector<1x32xf32> to vector<32x32xf32>
    %40 = arith.addf %38, %39 : vector<32x32xf32>
    %c0_14 = arith.constant 0 : index
    %c0_15 = arith.constant 0 : index
    %c0_16 = arith.constant 0 : index
    %41 = vector.load %arg5[%c0_14, %c0_15, %c0_16] : memref<2x32x96xbf16, #tpu.memory_space<vmem>>, vector<1x32x96xbf16>
    %42 = vector.shape_cast %41 : vector<1x32x96xbf16> to vector<32x96xbf16>
    %43 = arith.truncf %40 : vector<32x32xf32> to vector<32x32xbf16>
    %cst_17 = arith.constant dense<0.000000e+00> : vector<32x96xf32>
    %44 = tpu.matmul %43, %42, %cst_17 {dimension_numbers = #tpu.dot_dimension_numbers<[1], [0], [0], [1], [0, 0, 1, 1], [], []>} : vector<32x32xbf16>, vector<32x96xbf16>, vector<32x96xf32> -> vector<32x96xf32>
    %45 = vector.broadcast %13 : vector<1x96xf32> to vector<32x96xf32>
    %46 = arith.addf %44, %45 : vector<32x96xf32>
    %47 = vector.extract_strided_slice %46 {offsets = [0, 0], sizes = [32, 8], strides = [1, 1]} : vector<32x96xf32> to vector<32x8xf32>
    %cst_18 = arith.constant 0.353553385 : f32
    %48 = vector.broadcast %cst_18 : f32 to vector<32x8xf32>
    %49 = arith.mulf %47, %48 : vector<32x8xf32>
    %50 = arith.truncf %49 : vector<32x8xf32> to vector<32x8xbf16>
    %51 = vector.extract_strided_slice %46 {offsets = [0, 32], sizes = [32, 8], strides = [1, 1]} : vector<32x96xf32> to vector<32x8xf32>
    %52 = arith.truncf %51 : vector<32x8xf32> to vector<32x8xbf16>
    %53 = vector.extract_strided_slice %46 {offsets = [0, 64], sizes = [32, 8], strides = [1, 1]} : vector<32x96xf32> to vector<32x8xf32>
    %54 = arith.truncf %53 : vector<32x8xf32> to vector<32x8xbf16>
    %cst_19 = arith.constant dense<0.000000e+00> : vector<32x32xf32>
    %55 = tpu.matmul %50, %52, %cst_19 {dimension_numbers = #tpu.dot_dimension_numbers<[1], [1], [0], [0], [0, 0, 1, 0], [], []>} : vector<32x8xbf16>, vector<32x8xbf16>, vector<32x32xf32> -> vector<32x32xf32>
    %56 = arith.addf %55, %1 : vector<32x32xf32>
    %cst_20 = arith.constant dense<0xFF800000> : vector<32xf32>
    %57 = vector.multi_reduction <maximumf>, %56, %cst_20 [1] : vector<32x32xf32> to vector<32xf32>
    %58 = vector.shape_cast %57 : vector<32xf32> to vector<32x1xf32>
    %59 = vector.broadcast %58 : vector<32x1xf32> to vector<32x32xf32>
    %60 = arith.subf %56, %59 : vector<32x32xf32>
    %61 = math.exp %60 : vector<32x32xf32>
    %cst_21 = arith.constant dense<0.000000e+00> : vector<32xf32>
    %62 = vector.multi_reduction <add>, %61, %cst_21 [1] : vector<32x32xf32> to vector<32xf32>
    %63 = vector.shape_cast %62 : vector<32xf32> to vector<32x1xf32>
    %64 = tpu.reciprocal %63 {approx = true} : vector<32x1xf32> -> vector<32x1xf32>
    %65 = vector.broadcast %64 : vector<32x1xf32> to vector<32x32xf32>
    %66 = arith.mulf %61, %65 : vector<32x32xf32>
    %67 = arith.truncf %66 : vector<32x32xf32> to vector<32x32xbf16>
    %cst_22 = arith.constant dense<0.000000e+00> : vector<32x8xf32>
    %68 = tpu.matmul %67, %54, %cst_22 {dimension_numbers = #tpu.dot_dimension_numbers<[1], [0], [0], [1], [0, 0, 1, 1], [], []>} : vector<32x32xbf16>, vector<32x8xbf16>, vector<32x8xf32> -> vector<32x8xf32>
    %69 = vector.extract_strided_slice %46 {offsets = [0, 8], sizes = [32, 8], strides = [1, 1]} : vector<32x96xf32> to vector<32x8xf32>
    %cst_23 = arith.constant 0.353553385 : f32
    %70 = vector.broadcast %cst_23 : f32 to vector<32x8xf32>
    %71 = arith.mulf %69, %70 : vector<32x8xf32>
    %72 = arith.truncf %71 : vector<32x8xf32> to vector<32x8xbf16>
    %73 = vector.extract_strided_slice %46 {offsets = [0, 40], sizes = [32, 8], strides = [1, 1]} : vector<32x96xf32> to vector<32x8xf32>
    %74 = arith.truncf %73 : vector<32x8xf32> to vector<32x8xbf16>
    %75 = vector.extract_strided_slice %46 {offsets = [0, 72], sizes = [32, 8], strides = [1, 1]} : vector<32x96xf32> to vector<32x8xf32>
    %76 = arith.truncf %75 : vector<32x8xf32> to vector<32x8xbf16>
    %cst_24 = arith.constant dense<0.000000e+00> : vector<32x32xf32>
    %77 = tpu.matmul %72, %74, %cst_24 {dimension_numbers = #tpu.dot_dimension_numbers<[1], [1], [0], [0], [0, 0, 1, 0], [], []>} : vector<32x8xbf16>, vector<32x8xbf16>, vector<32x32xf32> -> vector<32x32xf32>
    %78 = arith.addf %77, %1 : vector<32x32xf32>
    %cst_25 = arith.constant dense<0xFF800000> : vector<32xf32>
    %79 = vector.multi_reduction <maximumf>, %78, %cst_25 [1] : vector<32x32xf32> to vector<32xf32>
    %80 = vector.shape_cast %79 : vector<32xf32> to vector<32x1xf32>
    %81 = vector.broadcast %80 : vector<32x1xf32> to vector<32x32xf32>
    %82 = arith.subf %78, %81 : vector<32x32xf32>
    %83 = math.exp %82 : vector<32x32xf32>
    %cst_26 = arith.constant dense<0.000000e+00> : vector<32xf32>
    %84 = vector.multi_reduction <add>, %83, %cst_26 [1] : vector<32x32xf32> to vector<32xf32>
    %85 = vector.shape_cast %84 : vector<32xf32> to vector<32x1xf32>
    %86 = tpu.reciprocal %85 {approx = true} : vector<32x1xf32> -> vector<32x1xf32>
    %87 = vector.broadcast %86 : vector<32x1xf32> to vector<32x32xf32>
    %88 = arith.mulf %83, %87 : vector<32x32xf32>
    %89 = arith.truncf %88 : vector<32x32xf32> to vector<32x32xbf16>
    %cst_27 = arith.constant dense<0.000000e+00> : vector<32x8xf32>
    %90 = tpu.matmul %89, %76, %cst_27 {dimension_numbers = #tpu.dot_dimension_numbers<[1], [0], [0], [1], [0, 0, 1, 1], [], []>} : vector<32x32xbf16>, vector<32x8xbf16>, vector<32x8xf32> -> vector<32x8xf32>
    %91 = vector.extract_strided_slice %46 {offsets = [0, 16], sizes = [32, 8], strides = [1, 1]} : vector<32x96xf32> to vector<32x8xf32>
    %cst_28 = arith.constant 0.353553385 : f32
    %92 = vector.broadcast %cst_28 : f32 to vector<32x8xf32>
    %93 = arith.mulf %91, %92 : vector<32x8xf32>
    %94 = arith.truncf %93 : vector<32x8xf32> to vector<32x8xbf16>
    %95 = vector.extract_strided_slice %46 {offsets = [0, 48], sizes = [32, 8], strides = [1, 1]} : vector<32x96xf32> to vector<32x8xf32>
    %96 = arith.truncf %95 : vector<32x8xf32> to vector<32x8xbf16>
    %97 = vector.extract_strided_slice %46 {offsets = [0, 80], sizes = [32, 8], strides = [1, 1]} : vector<32x96xf32> to vector<32x8xf32>
    %98 = arith.truncf %97 : vector<32x8xf32> to vector<32x8xbf16>
    %cst_29 = arith.constant dense<0.000000e+00> : vector<32x32xf32>
    %99 = tpu.matmul %94, %96, %cst_29 {dimension_numbers = #tpu.dot_dimension_numbers<[1], [1], [0], [0], [0, 0, 1, 0], [], []>} : vector<32x8xbf16>, vector<32x8xbf16>, vector<32x32xf32> -> vector<32x32xf32>
    %100 = arith.addf %99, %1 : vector<32x32xf32>
    %cst_30 = arith.constant dense<0xFF800000> : vector<32xf32>
    %101 = vector.multi_reduction <maximumf>, %100, %cst_30 [1] : vector<32x32xf32> to vector<32xf32>
    %102 = vector.shape_cast %101 : vector<32xf32> to vector<32x1xf32>
    %103 = vector.broadcast %102 : vector<32x1xf32> to vector<32x32xf32>
    %104 = arith.subf %100, %103 : vector<32x32xf32>
    %105 = math.exp %104 : vector<32x32xf32>
    %cst_31 = arith.constant dense<0.000000e+00> : vector<32xf32>
    %106 = vector.multi_reduction <add>, %105, %cst_31 [1] : vector<32x32xf32> to vector<32xf32>
    %107 = vector.shape_cast %106 : vector<32xf32> to vector<32x1xf32>
    %108 = tpu.reciprocal %107 {approx = true} : vector<32x1xf32> -> vector<32x1xf32>
    %109 = vector.broadcast %108 : vector<32x1xf32> to vector<32x32xf32>
    %110 = arith.mulf %105, %109 : vector<32x32xf32>
    %111 = arith.truncf %110 : vector<32x32xf32> to vector<32x32xbf16>
    %cst_32 = arith.constant dense<0.000000e+00> : vector<32x8xf32>
    %112 = tpu.matmul %111, %98, %cst_32 {dimension_numbers = #tpu.dot_dimension_numbers<[1], [0], [0], [1], [0, 0, 1, 1], [], []>} : vector<32x32xbf16>, vector<32x8xbf16>, vector<32x8xf32> -> vector<32x8xf32>
    %113 = vector.extract_strided_slice %46 {offsets = [0, 24], sizes = [32, 8], strides = [1, 1]} : vector<32x96xf32> to vector<32x8xf32>
    %cst_33 = arith.constant 0.353553385 : f32
    %114 = vector.broadcast %cst_33 : f32 to vector<32x8xf32>
    %115 = arith.mulf %113, %114 : vector<32x8xf32>
    %116 = arith.truncf %115 : vector<32x8xf32> to vector<32x8xbf16>
    %117 = vector.extract_strided_slice %46 {offsets = [0, 56], sizes = [32, 8], strides = [1, 1]} : vector<32x96xf32> to vector<32x8xf32>
    %118 = arith.truncf %117 : vector<32x8xf32> to vector<32x8xbf16>
    %119 = vector.extract_strided_slice %46 {offsets = [0, 88], sizes = [32, 8], strides = [1, 1]} : vector<32x96xf32> to vector<32x8xf32>
    %120 = arith.truncf %119 : vector<32x8xf32> to vector<32x8xbf16>
    %cst_34 = arith.constant dense<0.000000e+00> : vector<32x32xf32>
    %121 = tpu.matmul %116, %118, %cst_34 {dimension_numbers = #tpu.dot_dimension_numbers<[1], [1], [0], [0], [0, 0, 1, 0], [], []>} : vector<32x8xbf16>, vector<32x8xbf16>, vector<32x32xf32> -> vector<32x32xf32>
    %122 = arith.addf %121, %1 : vector<32x32xf32>
    %cst_35 = arith.constant dense<0xFF800000> : vector<32xf32>
    %123 = vector.multi_reduction <maximumf>, %122, %cst_35 [1] : vector<32x32xf32> to vector<32xf32>
    %124 = vector.shape_cast %123 : vector<32xf32> to vector<32x1xf32>
    %125 = vector.broadcast %124 : vector<32x1xf32> to vector<32x32xf32>
    %126 = arith.subf %122, %125 : vector<32x32xf32>
    %127 = math.exp %126 : vector<32x32xf32>
    %cst_36 = arith.constant dense<0.000000e+00> : vector<32xf32>
    %128 = vector.multi_reduction <add>, %127, %cst_36 [1] : vector<32x32xf32> to vector<32xf32>
    %129 = vector.shape_cast %128 : vector<32xf32> to vector<32x1xf32>
    %130 = tpu.reciprocal %129 {approx = true} : vector<32x1xf32> -> vector<32x1xf32>
    %131 = vector.broadcast %130 : vector<32x1xf32> to vector<32x32xf32>
    %132 = arith.mulf %127, %131 : vector<32x32xf32>
    %133 = arith.truncf %132 : vector<32x32xf32> to vector<32x32xbf16>
    %cst_37 = arith.constant dense<0.000000e+00> : vector<32x8xf32>
    %134 = tpu.matmul %133, %120, %cst_37 {dimension_numbers = #tpu.dot_dimension_numbers<[1], [0], [0], [1], [0, 0, 1, 1], [], []>} : vector<32x32xbf16>, vector<32x8xbf16>, vector<32x8xf32> -> vector<32x8xf32>
    %135 = tpu.concatenate %68, %90, %112, %134 in 1 : vector<32x8xf32>, vector<32x8xf32>, vector<32x8xf32>, vector<32x8xf32> -> vector<32x32xf32>
    %c0_38 = arith.constant 0 : index
    %c0_39 = arith.constant 0 : index
    %c0_40 = arith.constant 0 : index
    %136 = vector.load %arg6[%c0_38, %c0_39, %c0_40] : memref<2x32x32xbf16, #tpu.memory_space<vmem>>, vector<1x32x32xbf16>
    %137 = vector.shape_cast %136 : vector<1x32x32xbf16> to vector<32x32xbf16>
    %138 = arith.truncf %135 : vector<32x32xf32> to vector<32x32xbf16>
    %cst_41 = arith.constant dense<0.000000e+00> : vector<32x32xf32>
    %139 = tpu.matmul %138, %137, %cst_41 {dimension_numbers = #tpu.dot_dimension_numbers<[1], [0], [0], [1], [0, 0, 1, 1], [], []>} : vector<32x32xbf16>, vector<32x32xbf16>, vector<32x32xf32> -> vector<32x32xf32>
    %140 = arith.addf %10, %139 : vector<32x32xf32>
    %141 = vector.broadcast %14 : vector<1x32xf32> to vector<32x32xf32>
    %142 = arith.addf %140, %141 : vector<32x32xf32>
    %cst_42 = arith.constant dense<0.000000e+00> : vector<32xf32>
    %143 = vector.multi_reduction <add>, %142, %cst_42 [1] : vector<32x32xf32> to vector<32xf32>
    %144 = vector.shape_cast %143 : vector<32xf32> to vector<32x1xf32>
    %cst_43 = arith.constant 3.200000e+01 : f32
    %145 = vector.broadcast %cst_43 : f32 to vector<32x1xf32>
    %146 = arith.divf %144, %145 : vector<32x1xf32>
    %147 = vector.broadcast %146 : vector<32x1xf32> to vector<32x32xf32>
    %148 = arith.subf %142, %147 : vector<32x32xf32>
    %149 = arith.mulf %148, %148 : vector<32x32xf32>
    %cst_44 = arith.constant dense<0.000000e+00> : vector<32xf32>
    %150 = vector.multi_reduction <add>, %149, %cst_44 [1] : vector<32x32xf32> to vector<32xf32>
    %151 = vector.shape_cast %150 : vector<32xf32> to vector<32x1xf32>
    %cst_45 = arith.constant 3.200000e+01 : f32
    %152 = vector.broadcast %cst_45 : f32 to vector<32x1xf32>
    %153 = arith.divf %151, %152 : vector<32x1xf32>
    %154 = vector.broadcast %146 : vector<32x1xf32> to vector<32x32xf32>
    %155 = arith.subf %142, %154 : vector<32x32xf32>
    %cst_46 = arith.constant 9.99999997E-7 : f32
    %156 = vector.broadcast %cst_46 : f32 to vector<32x1xf32>
    %157 = arith.addf %153, %156 : vector<32x1xf32>
    %158 = math.rsqrt %157 : vector<32x1xf32>
    %159 = vector.broadcast %158 : vector<32x1xf32> to vector<32x32xf32>
    %160 = arith.mulf %155, %159 : vector<32x32xf32>
    %161 = vector.broadcast %15 : vector<1x32xf32> to vector<32x32xf32>
    %162 = arith.mulf %160, %161 : vector<32x32xf32>
    %163 = vector.broadcast %16 : vector<1x32xf32> to vector<32x32xf32>
    %164 = arith.addf %162, %163 : vector<32x32xf32>
    %c0_47 = arith.constant 0 : index
    %c0_48 = arith.constant 0 : index
    %c0_49 = arith.constant 0 : index
    %165 = vector.load %arg7[%c0_47, %c0_48, %c0_49] : memref<2x32x128xbf16, #tpu.memory_space<vmem>>, vector<1x32x128xbf16>
    %166 = vector.shape_cast %165 : vector<1x32x128xbf16> to vector<32x128xbf16>
    %167 = arith.truncf %164 : vector<32x32xf32> to vector<32x32xbf16>
    %cst_50 = arith.constant dense<0.000000e+00> : vector<32x128xf32>
    %168 = tpu.matmul %167, %166, %cst_50 {dimension_numbers = #tpu.dot_dimension_numbers<[1], [0], [0], [1], [0, 0, 1, 1], [], []>} : vector<32x32xbf16>, vector<32x128xbf16>, vector<32x128xf32> -> vector<32x128xf32>
    %169 = vector.broadcast %17 : vector<1x128xf32> to vector<32x128xf32>
    %170 = arith.addf %168, %169 : vector<32x128xf32>
    %cst_51 = arith.constant 5.000000e-01 : f32
    %171 = vector.broadcast %cst_51 : f32 to vector<32x128xf32>
    %172 = arith.mulf %171, %170 : vector<32x128xf32>
    %cst_52 = arith.constant 0.707106769 : f32
    %173 = vector.broadcast %cst_52 : f32 to vector<32x128xf32>
    %174 = arith.mulf %170, %173 : vector<32x128xf32>
    %175 = math.erf %174 : vector<32x128xf32>
    %cst_53 = arith.constant 1.000000e+00 : f32
    %176 = vector.broadcast %cst_53 : f32 to vector<32x128xf32>
    %177 = arith.addf %176, %175 : vector<32x128xf32>
    %178 = arith.mulf %172, %177 : vector<32x128xf32>
    %c0_54 = arith.constant 0 : index
    %c0_55 = arith.constant 0 : index
    %c0_56 = arith.constant 0 : index
    %179 = vector.load %arg8[%c0_54, %c0_55, %c0_56] : memref<2x128x32xbf16, #tpu.memory_space<vmem>>, vector<1x128x32xbf16>
    %180 = vector.shape_cast %179 : vector<1x128x32xbf16> to vector<128x32xbf16>
    %181 = arith.truncf %178 : vector<32x128xf32> to vector<32x128xbf16>
    %cst_57 = arith.constant dense<0.000000e+00> : vector<32x32xf32>
    %182 = tpu.matmul %181, %180, %cst_57 {dimension_numbers = #tpu.dot_dimension_numbers<[1], [0], [0], [1], [0, 0, 1, 1], [], []>} : vector<32x128xbf16>, vector<128x32xbf16>, vector<32x32xf32> -> vector<32x32xf32>
    %183 = arith.addf %142, %182 : vector<32x32xf32>
    %184 = vector.broadcast %18 : vector<1x32xf32> to vector<32x32xf32>
    %185 = arith.addf %183, %184 : vector<32x32xf32>
    %186 = vector.extract_strided_slice %0 {offsets = [8, 0], sizes = [1, 32], strides = [1, 1]} : vector<24x128xf32> to vector<1x32xf32>
    %187 = vector.extract_strided_slice %0 {offsets = [9, 0], sizes = [1, 32], strides = [1, 1]} : vector<24x128xf32> to vector<1x32xf32>
    %188 = vector.extract_strided_slice %0 {offsets = [10, 0], sizes = [1, 96], strides = [1, 1]} : vector<24x128xf32> to vector<1x96xf32>
    %189 = vector.extract_strided_slice %0 {offsets = [11, 0], sizes = [1, 32], strides = [1, 1]} : vector<24x128xf32> to vector<1x32xf32>
    %190 = vector.extract_strided_slice %0 {offsets = [12, 0], sizes = [1, 32], strides = [1, 1]} : vector<24x128xf32> to vector<1x32xf32>
    %191 = vector.extract_strided_slice %0 {offsets = [13, 0], sizes = [1, 32], strides = [1, 1]} : vector<24x128xf32> to vector<1x32xf32>
    %192 = vector.extract_strided_slice %0 {offsets = [14, 0], sizes = [1, 128], strides = [1, 1]} : vector<24x128xf32> to vector<1x128xf32>
    %193 = vector.extract_strided_slice %0 {offsets = [15, 0], sizes = [1, 32], strides = [1, 1]} : vector<24x128xf32> to vector<1x32xf32>
    %cst_58 = arith.constant dense<0.000000e+00> : vector<32xf32>
    %194 = vector.multi_reduction <add>, %185, %cst_58 [1] : vector<32x32xf32> to vector<32xf32>
    %195 = vector.shape_cast %194 : vector<32xf32> to vector<32x1xf32>
    %cst_59 = arith.constant 3.200000e+01 : f32
    %196 = vector.broadcast %cst_59 : f32 to vector<32x1xf32>
    %197 = arith.divf %195, %196 : vector<32x1xf32>
    %198 = vector.broadcast %197 : vector<32x1xf32> to vector<32x32xf32>
    %199 = arith.subf %185, %198 : vector<32x32xf32>
    %200 = arith.mulf %199, %199 : vector<32x32xf32>
    %cst_60 = arith.constant dense<0.000000e+00> : vector<32xf32>
    %201 = vector.multi_reduction <add>, %200, %cst_60 [1] : vector<32x32xf32> to vector<32xf32>
    %202 = vector.shape_cast %201 : vector<32xf32> to vector<32x1xf32>
    %cst_61 = arith.constant 3.200000e+01 : f32
    %203 = vector.broadcast %cst_61 : f32 to vector<32x1xf32>
    %204 = arith.divf %202, %203 : vector<32x1xf32>
    %205 = vector.broadcast %197 : vector<32x1xf32> to vector<32x32xf32>
    %206 = arith.subf %185, %205 : vector<32x32xf32>
    %cst_62 = arith.constant 9.99999997E-7 : f32
    %207 = vector.broadcast %cst_62 : f32 to vector<32x1xf32>
    %208 = arith.addf %204, %207 : vector<32x1xf32>
    %209 = math.rsqrt %208 : vector<32x1xf32>
    %210 = vector.broadcast %209 : vector<32x1xf32> to vector<32x32xf32>
    %211 = arith.mulf %206, %210 : vector<32x32xf32>
    %212 = vector.broadcast %186 : vector<1x32xf32> to vector<32x32xf32>
    %213 = arith.mulf %211, %212 : vector<32x32xf32>
    %214 = vector.broadcast %187 : vector<1x32xf32> to vector<32x32xf32>
    %215 = arith.addf %213, %214 : vector<32x32xf32>
    %c1 = arith.constant 1 : index
    %c0_63 = arith.constant 0 : index
    %c0_64 = arith.constant 0 : index
    %216 = vector.load %arg5[%c1, %c0_63, %c0_64] : memref<2x32x96xbf16, #tpu.memory_space<vmem>>, vector<1x32x96xbf16>
    %217 = vector.shape_cast %216 : vector<1x32x96xbf16> to vector<32x96xbf16>
    %218 = arith.truncf %215 : vector<32x32xf32> to vector<32x32xbf16>
    %cst_65 = arith.constant dense<0.000000e+00> : vector<32x96xf32>
    %219 = tpu.matmul %218, %217, %cst_65 {dimension_numbers = #tpu.dot_dimension_numbers<[1], [0], [0], [1], [0, 0, 1, 1], [], []>} : vector<32x32xbf16>, vector<32x96xbf16>, vector<32x96xf32> -> vector<32x96xf32>
    %220 = vector.broadcast %188 : vector<1x96xf32> to vector<32x96xf32>
    %221 = arith.addf %219, %220 : vector<32x96xf32>
    %222 = vector.extract_strided_slice %221 {offsets = [0, 0], sizes = [32, 8], strides = [1, 1]} : vector<32x96xf32> to vector<32x8xf32>
    %cst_66 = arith.constant 0.353553385 : f32
    %223 = vector.broadcast %cst_66 : f32 to vector<32x8xf32>
    %224 = arith.mulf %222, %223 : vector<32x8xf32>
    %225 = arith.truncf %224 : vector<32x8xf32> to vector<32x8xbf16>
    %226 = vector.extract_strided_slice %221 {offsets = [0, 32], sizes = [32, 8], strides = [1, 1]} : vector<32x96xf32> to vector<32x8xf32>
    %227 = arith.truncf %226 : vector<32x8xf32> to vector<32x8xbf16>
    %228 = vector.extract_strided_slice %221 {offsets = [0, 64], sizes = [32, 8], strides = [1, 1]} : vector<32x96xf32> to vector<32x8xf32>
    %229 = arith.truncf %228 : vector<32x8xf32> to vector<32x8xbf16>
    %cst_67 = arith.constant dense<0.000000e+00> : vector<32x32xf32>
    %230 = tpu.matmul %225, %227, %cst_67 {dimension_numbers = #tpu.dot_dimension_numbers<[1], [1], [0], [0], [0, 0, 1, 0], [], []>} : vector<32x8xbf16>, vector<32x8xbf16>, vector<32x32xf32> -> vector<32x32xf32>
    %231 = arith.addf %230, %1 : vector<32x32xf32>
    %cst_68 = arith.constant dense<0xFF800000> : vector<32xf32>
    %232 = vector.multi_reduction <maximumf>, %231, %cst_68 [1] : vector<32x32xf32> to vector<32xf32>
    %233 = vector.shape_cast %232 : vector<32xf32> to vector<32x1xf32>
    %234 = vector.broadcast %233 : vector<32x1xf32> to vector<32x32xf32>
    %235 = arith.subf %231, %234 : vector<32x32xf32>
    %236 = math.exp %235 : vector<32x32xf32>
    %cst_69 = arith.constant dense<0.000000e+00> : vector<32xf32>
    %237 = vector.multi_reduction <add>, %236, %cst_69 [1] : vector<32x32xf32> to vector<32xf32>
    %238 = vector.shape_cast %237 : vector<32xf32> to vector<32x1xf32>
    %239 = tpu.reciprocal %238 {approx = true} : vector<32x1xf32> -> vector<32x1xf32>
    %240 = vector.broadcast %239 : vector<32x1xf32> to vector<32x32xf32>
    %241 = arith.mulf %236, %240 : vector<32x32xf32>
    %242 = arith.truncf %241 : vector<32x32xf32> to vector<32x32xbf16>
    %cst_70 = arith.constant dense<0.000000e+00> : vector<32x8xf32>
    %243 = tpu.matmul %242, %229, %cst_70 {dimension_numbers = #tpu.dot_dimension_numbers<[1], [0], [0], [1], [0, 0, 1, 1], [], []>} : vector<32x32xbf16>, vector<32x8xbf16>, vector<32x8xf32> -> vector<32x8xf32>
    %244 = vector.extract_strided_slice %221 {offsets = [0, 8], sizes = [32, 8], strides = [1, 1]} : vector<32x96xf32> to vector<32x8xf32>
    %cst_71 = arith.constant 0.353553385 : f32
    %245 = vector.broadcast %cst_71 : f32 to vector<32x8xf32>
    %246 = arith.mulf %244, %245 : vector<32x8xf32>
    %247 = arith.truncf %246 : vector<32x8xf32> to vector<32x8xbf16>
    %248 = vector.extract_strided_slice %221 {offsets = [0, 40], sizes = [32, 8], strides = [1, 1]} : vector<32x96xf32> to vector<32x8xf32>
    %249 = arith.truncf %248 : vector<32x8xf32> to vector<32x8xbf16>
    %250 = vector.extract_strided_slice %221 {offsets = [0, 72], sizes = [32, 8], strides = [1, 1]} : vector<32x96xf32> to vector<32x8xf32>
    %251 = arith.truncf %250 : vector<32x8xf32> to vector<32x8xbf16>
    %cst_72 = arith.constant dense<0.000000e+00> : vector<32x32xf32>
    %252 = tpu.matmul %247, %249, %cst_72 {dimension_numbers = #tpu.dot_dimension_numbers<[1], [1], [0], [0], [0, 0, 1, 0], [], []>} : vector<32x8xbf16>, vector<32x8xbf16>, vector<32x32xf32> -> vector<32x32xf32>
    %253 = arith.addf %252, %1 : vector<32x32xf32>
    %cst_73 = arith.constant dense<0xFF800000> : vector<32xf32>
    %254 = vector.multi_reduction <maximumf>, %253, %cst_73 [1] : vector<32x32xf32> to vector<32xf32>
    %255 = vector.shape_cast %254 : vector<32xf32> to vector<32x1xf32>
    %256 = vector.broadcast %255 : vector<32x1xf32> to vector<32x32xf32>
    %257 = arith.subf %253, %256 : vector<32x32xf32>
    %258 = math.exp %257 : vector<32x32xf32>
    %cst_74 = arith.constant dense<0.000000e+00> : vector<32xf32>
    %259 = vector.multi_reduction <add>, %258, %cst_74 [1] : vector<32x32xf32> to vector<32xf32>
    %260 = vector.shape_cast %259 : vector<32xf32> to vector<32x1xf32>
    %261 = tpu.reciprocal %260 {approx = true} : vector<32x1xf32> -> vector<32x1xf32>
    %262 = vector.broadcast %261 : vector<32x1xf32> to vector<32x32xf32>
    %263 = arith.mulf %258, %262 : vector<32x32xf32>
    %264 = arith.truncf %263 : vector<32x32xf32> to vector<32x32xbf16>
    %cst_75 = arith.constant dense<0.000000e+00> : vector<32x8xf32>
    %265 = tpu.matmul %264, %251, %cst_75 {dimension_numbers = #tpu.dot_dimension_numbers<[1], [0], [0], [1], [0, 0, 1, 1], [], []>} : vector<32x32xbf16>, vector<32x8xbf16>, vector<32x8xf32> -> vector<32x8xf32>
    %266 = vector.extract_strided_slice %221 {offsets = [0, 16], sizes = [32, 8], strides = [1, 1]} : vector<32x96xf32> to vector<32x8xf32>
    %cst_76 = arith.constant 0.353553385 : f32
    %267 = vector.broadcast %cst_76 : f32 to vector<32x8xf32>
    %268 = arith.mulf %266, %267 : vector<32x8xf32>
    %269 = arith.truncf %268 : vector<32x8xf32> to vector<32x8xbf16>
    %270 = vector.extract_strided_slice %221 {offsets = [0, 48], sizes = [32, 8], strides = [1, 1]} : vector<32x96xf32> to vector<32x8xf32>
    %271 = arith.truncf %270 : vector<32x8xf32> to vector<32x8xbf16>
    %272 = vector.extract_strided_slice %221 {offsets = [0, 80], sizes = [32, 8], strides = [1, 1]} : vector<32x96xf32> to vector<32x8xf32>
    %273 = arith.truncf %272 : vector<32x8xf32> to vector<32x8xbf16>
    %cst_77 = arith.constant dense<0.000000e+00> : vector<32x32xf32>
    %274 = tpu.matmul %269, %271, %cst_77 {dimension_numbers = #tpu.dot_dimension_numbers<[1], [1], [0], [0], [0, 0, 1, 0], [], []>} : vector<32x8xbf16>, vector<32x8xbf16>, vector<32x32xf32> -> vector<32x32xf32>
    %275 = arith.addf %274, %1 : vector<32x32xf32>
    %cst_78 = arith.constant dense<0xFF800000> : vector<32xf32>
    %276 = vector.multi_reduction <maximumf>, %275, %cst_78 [1] : vector<32x32xf32> to vector<32xf32>
    %277 = vector.shape_cast %276 : vector<32xf32> to vector<32x1xf32>
    %278 = vector.broadcast %277 : vector<32x1xf32> to vector<32x32xf32>
    %279 = arith.subf %275, %278 : vector<32x32xf32>
    %280 = math.exp %279 : vector<32x32xf32>
    %cst_79 = arith.constant dense<0.000000e+00> : vector<32xf32>
    %281 = vector.multi_reduction <add>, %280, %cst_79 [1] : vector<32x32xf32> to vector<32xf32>
    %282 = vector.shape_cast %281 : vector<32xf32> to vector<32x1xf32>
    %283 = tpu.reciprocal %282 {approx = true} : vector<32x1xf32> -> vector<32x1xf32>
    %284 = vector.broadcast %283 : vector<32x1xf32> to vector<32x32xf32>
    %285 = arith.mulf %280, %284 : vector<32x32xf32>
    %286 = arith.truncf %285 : vector<32x32xf32> to vector<32x32xbf16>
    %cst_80 = arith.constant dense<0.000000e+00> : vector<32x8xf32>
    %287 = tpu.matmul %286, %273, %cst_80 {dimension_numbers = #tpu.dot_dimension_numbers<[1], [0], [0], [1], [0, 0, 1, 1], [], []>} : vector<32x32xbf16>, vector<32x8xbf16>, vector<32x8xf32> -> vector<32x8xf32>
    %288 = vector.extract_strided_slice %221 {offsets = [0, 24], sizes = [32, 8], strides = [1, 1]} : vector<32x96xf32> to vector<32x8xf32>
    %cst_81 = arith.constant 0.353553385 : f32
    %289 = vector.broadcast %cst_81 : f32 to vector<32x8xf32>
    %290 = arith.mulf %288, %289 : vector<32x8xf32>
    %291 = arith.truncf %290 : vector<32x8xf32> to vector<32x8xbf16>
    %292 = vector.extract_strided_slice %221 {offsets = [0, 56], sizes = [32, 8], strides = [1, 1]} : vector<32x96xf32> to vector<32x8xf32>
    %293 = arith.truncf %292 : vector<32x8xf32> to vector<32x8xbf16>
    %294 = vector.extract_strided_slice %221 {offsets = [0, 88], sizes = [32, 8], strides = [1, 1]} : vector<32x96xf32> to vector<32x8xf32>
    %295 = arith.truncf %294 : vector<32x8xf32> to vector<32x8xbf16>
    %cst_82 = arith.constant dense<0.000000e+00> : vector<32x32xf32>
    %296 = tpu.matmul %291, %293, %cst_82 {dimension_numbers = #tpu.dot_dimension_numbers<[1], [1], [0], [0], [0, 0, 1, 0], [], []>} : vector<32x8xbf16>, vector<32x8xbf16>, vector<32x32xf32> -> vector<32x32xf32>
    %297 = arith.addf %296, %1 : vector<32x32xf32>
    %cst_83 = arith.constant dense<0xFF800000> : vector<32xf32>
    %298 = vector.multi_reduction <maximumf>, %297, %cst_83 [1] : vector<32x32xf32> to vector<32xf32>
    %299 = vector.shape_cast %298 : vector<32xf32> to vector<32x1xf32>
    %300 = vector.broadcast %299 : vector<32x1xf32> to vector<32x32xf32>
    %301 = arith.subf %297, %300 : vector<32x32xf32>
    %302 = math.exp %301 : vector<32x32xf32>
    %cst_84 = arith.constant dense<0.000000e+00> : vector<32xf32>
    %303 = vector.multi_reduction <add>, %302, %cst_84 [1] : vector<32x32xf32> to vector<32xf32>
    %304 = vector.shape_cast %303 : vector<32xf32> to vector<32x1xf32>
    %305 = tpu.reciprocal %304 {approx = true} : vector<32x1xf32> -> vector<32x1xf32>
    %306 = vector.broadcast %305 : vector<32x1xf32> to vector<32x32xf32>
    %307 = arith.mulf %302, %306 : vector<32x32xf32>
    %308 = arith.truncf %307 : vector<32x32xf32> to vector<32x32xbf16>
    %cst_85 = arith.constant dense<0.000000e+00> : vector<32x8xf32>
    %309 = tpu.matmul %308, %295, %cst_85 {dimension_numbers = #tpu.dot_dimension_numbers<[1], [0], [0], [1], [0, 0, 1, 1], [], []>} : vector<32x32xbf16>, vector<32x8xbf16>, vector<32x8xf32> -> vector<32x8xf32>
    %310 = tpu.concatenate %243, %265, %287, %309 in 1 : vector<32x8xf32>, vector<32x8xf32>, vector<32x8xf32>, vector<32x8xf32> -> vector<32x32xf32>
    %c1_86 = arith.constant 1 : index
    %c0_87 = arith.constant 0 : index
    %c0_88 = arith.constant 0 : index
    %311 = vector.load %arg6[%c1_86, %c0_87, %c0_88] : memref<2x32x32xbf16, #tpu.memory_space<vmem>>, vector<1x32x32xbf16>
    %312 = vector.shape_cast %311 : vector<1x32x32xbf16> to vector<32x32xbf16>
    %313 = arith.truncf %310 : vector<32x32xf32> to vector<32x32xbf16>
    %cst_89 = arith.constant dense<0.000000e+00> : vector<32x32xf32>
    %314 = tpu.matmul %313, %312, %cst_89 {dimension_numbers = #tpu.dot_dimension_numbers<[1], [0], [0], [1], [0, 0, 1, 1], [], []>} : vector<32x32xbf16>, vector<32x32xbf16>, vector<32x32xf32> -> vector<32x32xf32>
    %315 = arith.addf %185, %314 : vector<32x32xf32>
    %316 = vector.broadcast %189 : vector<1x32xf32> to vector<32x32xf32>
    %317 = arith.addf %315, %316 : vector<32x32xf32>
    %cst_90 = arith.constant dense<0.000000e+00> : vector<32xf32>
    %318 = vector.multi_reduction <add>, %317, %cst_90 [1] : vector<32x32xf32> to vector<32xf32>
    %319 = vector.shape_cast %318 : vector<32xf32> to vector<32x1xf32>
    %cst_91 = arith.constant 3.200000e+01 : f32
    %320 = vector.broadcast %cst_91 : f32 to vector<32x1xf32>
    %321 = arith.divf %319, %320 : vector<32x1xf32>
    %322 = vector.broadcast %321 : vector<32x1xf32> to vector<32x32xf32>
    %323 = arith.subf %317, %322 : vector<32x32xf32>
    %324 = arith.mulf %323, %323 : vector<32x32xf32>
    %cst_92 = arith.constant dense<0.000000e+00> : vector<32xf32>
    %325 = vector.multi_reduction <add>, %324, %cst_92 [1] : vector<32x32xf32> to vector<32xf32>
    %326 = vector.shape_cast %325 : vector<32xf32> to vector<32x1xf32>
    %cst_93 = arith.constant 3.200000e+01 : f32
    %327 = vector.broadcast %cst_93 : f32 to vector<32x1xf32>
    %328 = arith.divf %326, %327 : vector<32x1xf32>
    %329 = vector.broadcast %321 : vector<32x1xf32> to vector<32x32xf32>
    %330 = arith.subf %317, %329 : vector<32x32xf32>
    %cst_94 = arith.constant 9.99999997E-7 : f32
    %331 = vector.broadcast %cst_94 : f32 to vector<32x1xf32>
    %332 = arith.addf %328, %331 : vector<32x1xf32>
    %333 = math.rsqrt %332 : vector<32x1xf32>
    %334 = vector.broadcast %333 : vector<32x1xf32> to vector<32x32xf32>
    %335 = arith.mulf %330, %334 : vector<32x32xf32>
    %336 = vector.broadcast %190 : vector<1x32xf32> to vector<32x32xf32>
    %337 = arith.mulf %335, %336 : vector<32x32xf32>
    %338 = vector.broadcast %191 : vector<1x32xf32> to vector<32x32xf32>
    %339 = arith.addf %337, %338 : vector<32x32xf32>
    %c1_95 = arith.constant 1 : index
    %c0_96 = arith.constant 0 : index
    %c0_97 = arith.constant 0 : index
    %340 = vector.load %arg7[%c1_95, %c0_96, %c0_97] : memref<2x32x128xbf16, #tpu.memory_space<vmem>>, vector<1x32x128xbf16>
    %341 = vector.shape_cast %340 : vector<1x32x128xbf16> to vector<32x128xbf16>
    %342 = arith.truncf %339 : vector<32x32xf32> to vector<32x32xbf16>
    %cst_98 = arith.constant dense<0.000000e+00> : vector<32x128xf32>
    %343 = tpu.matmul %342, %341, %cst_98 {dimension_numbers = #tpu.dot_dimension_numbers<[1], [0], [0], [1], [0, 0, 1, 1], [], []>} : vector<32x32xbf16>, vector<32x128xbf16>, vector<32x128xf32> -> vector<32x128xf32>
    %344 = vector.broadcast %192 : vector<1x128xf32> to vector<32x128xf32>
    %345 = arith.addf %343, %344 : vector<32x128xf32>
    %cst_99 = arith.constant 5.000000e-01 : f32
    %346 = vector.broadcast %cst_99 : f32 to vector<32x128xf32>
    %347 = arith.mulf %346, %345 : vector<32x128xf32>
    %cst_100 = arith.constant 0.707106769 : f32
    %348 = vector.broadcast %cst_100 : f32 to vector<32x128xf32>
    %349 = arith.mulf %345, %348 : vector<32x128xf32>
    %350 = math.erf %349 : vector<32x128xf32>
    %cst_101 = arith.constant 1.000000e+00 : f32
    %351 = vector.broadcast %cst_101 : f32 to vector<32x128xf32>
    %352 = arith.addf %351, %350 : vector<32x128xf32>
    %353 = arith.mulf %347, %352 : vector<32x128xf32>
    %c1_102 = arith.constant 1 : index
    %c0_103 = arith.constant 0 : index
    %c0_104 = arith.constant 0 : index
    %354 = vector.load %arg8[%c1_102, %c0_103, %c0_104] : memref<2x128x32xbf16, #tpu.memory_space<vmem>>, vector<1x128x32xbf16>
    %355 = vector.shape_cast %354 : vector<1x128x32xbf16> to vector<128x32xbf16>
    %356 = arith.truncf %353 : vector<32x128xf32> to vector<32x128xbf16>
    %cst_105 = arith.constant dense<0.000000e+00> : vector<32x32xf32>
    %357 = tpu.matmul %356, %355, %cst_105 {dimension_numbers = #tpu.dot_dimension_numbers<[1], [0], [0], [1], [0, 0, 1, 1], [], []>} : vector<32x128xbf16>, vector<128x32xbf16>, vector<32x32xf32> -> vector<32x32xf32>
    %358 = arith.addf %317, %357 : vector<32x32xf32>
    %359 = vector.broadcast %193 : vector<1x32xf32> to vector<32x32xf32>
    %360 = arith.addf %358, %359 : vector<32x32xf32>
    %361 = vector.extract_strided_slice %0 {offsets = [17, 0], sizes = [1, 16], strides = [1, 1]} : vector<24x128xf32> to vector<1x16xf32>
    %362 = vector.extract_strided_slice %0 {offsets = [18, 0], sizes = [1, 16], strides = [1, 1]} : vector<24x128xf32> to vector<1x16xf32>
    %363 = vector.extract_strided_slice %0 {offsets = [19, 0], sizes = [1, 16], strides = [1, 1]} : vector<24x128xf32> to vector<1x16xf32>
    %364 = vector.extract_strided_slice %0 {offsets = [20, 0], sizes = [1, 16], strides = [1, 1]} : vector<24x128xf32> to vector<1x16xf32>
    %c0_106 = arith.constant 0 : index
    %c0_107 = arith.constant 0 : index
    %365 = vector.load %arg9[%c0_106, %c0_107] : memref<32x16xbf16, #tpu.memory_space<vmem>>, vector<32x16xbf16>
    %366 = arith.truncf %360 : vector<32x32xf32> to vector<32x32xbf16>
    %cst_108 = arith.constant dense<0.000000e+00> : vector<32x16xf32>
    %367 = tpu.matmul %366, %365, %cst_108 {dimension_numbers = #tpu.dot_dimension_numbers<[1], [0], [0], [1], [0, 0, 1, 1], [], []>} : vector<32x32xbf16>, vector<32x16xbf16>, vector<32x16xf32> -> vector<32x16xf32>
    %cst_109 = arith.constant dense<0.000000e+00> : vector<32xf32>
    %368 = vector.multi_reduction <add>, %367, %cst_109 [1] : vector<32x16xf32> to vector<32xf32>
    %369 = vector.shape_cast %368 : vector<32xf32> to vector<32x1xf32>
    %cst_110 = arith.constant 1.600000e+01 : f32
    %370 = vector.broadcast %cst_110 : f32 to vector<32x1xf32>
    %371 = arith.divf %369, %370 : vector<32x1xf32>
    %372 = vector.broadcast %371 : vector<32x1xf32> to vector<32x16xf32>
    %373 = arith.subf %367, %372 : vector<32x16xf32>
    %374 = arith.mulf %373, %373 : vector<32x16xf32>
    %cst_111 = arith.constant dense<0.000000e+00> : vector<32xf32>
    %375 = vector.multi_reduction <add>, %374, %cst_111 [1] : vector<32x16xf32> to vector<32xf32>
    %376 = vector.shape_cast %375 : vector<32xf32> to vector<32x1xf32>
    %cst_112 = arith.constant 1.600000e+01 : f32
    %377 = vector.broadcast %cst_112 : f32 to vector<32x1xf32>
    %378 = arith.divf %376, %377 : vector<32x1xf32>
    %379 = vector.broadcast %371 : vector<32x1xf32> to vector<32x16xf32>
    %380 = arith.subf %367, %379 : vector<32x16xf32>
    %cst_113 = arith.constant 9.99999997E-7 : f32
    %381 = vector.broadcast %cst_113 : f32 to vector<32x1xf32>
    %382 = arith.addf %378, %381 : vector<32x1xf32>
    %383 = math.rsqrt %382 : vector<32x1xf32>
    %384 = vector.broadcast %383 : vector<32x1xf32> to vector<32x16xf32>
    %385 = arith.mulf %380, %384 : vector<32x16xf32>
    %386 = vector.broadcast %361 : vector<1x16xf32> to vector<32x16xf32>
    %387 = arith.mulf %385, %386 : vector<32x16xf32>
    %388 = vector.broadcast %362 : vector<1x16xf32> to vector<32x16xf32>
    %389 = arith.addf %387, %388 : vector<32x16xf32>
    %c0_114 = arith.constant 0 : index
    %c0_115 = arith.constant 0 : index
    %390 = vector.load %arg10[%c0_114, %c0_115] : memref<288x32xbf16, #tpu.memory_space<vmem>>, vector<288x32xbf16>
    %391 = arith.truncf %389 : vector<32x16xf32> to vector<32x16xbf16>
    %cst_116 = arith.constant dense<0.000000e+00> : vector<288x16xf32>
    %392 = tpu.matmul %390, %391, %cst_116 {dimension_numbers = #tpu.dot_dimension_numbers<[1], [0], [0], [1], [0, 0, 1, 1], [], []>} : vector<288x32xbf16>, vector<32x16xbf16>, vector<288x16xf32> -> vector<288x16xf32>
    %393 = vector.extract_strided_slice %392 {offsets = [0, 0], sizes = [32, 16], strides = [1, 1]} : vector<288x16xf32> to vector<32x16xf32>
    %394 = vector.extract_strided_slice %392 {offsets = [32, 0], sizes = [32, 16], strides = [1, 1]} : vector<288x16xf32> to vector<32x16xf32>
    %395 = vector.extract_strided_slice %392 {offsets = [64, 0], sizes = [32, 16], strides = [1, 1]} : vector<288x16xf32> to vector<32x16xf32>
    %396 = vector.extract_strided_slice %392 {offsets = [96, 0], sizes = [32, 16], strides = [1, 1]} : vector<288x16xf32> to vector<32x16xf32>
    %397 = vector.extract_strided_slice %392 {offsets = [128, 0], sizes = [32, 16], strides = [1, 1]} : vector<288x16xf32> to vector<32x16xf32>
    %398 = vector.extract_strided_slice %392 {offsets = [160, 0], sizes = [32, 16], strides = [1, 1]} : vector<288x16xf32> to vector<32x16xf32>
    %399 = vector.extract_strided_slice %392 {offsets = [192, 0], sizes = [32, 16], strides = [1, 1]} : vector<288x16xf32> to vector<32x16xf32>
    %400 = vector.extract_strided_slice %392 {offsets = [224, 0], sizes = [32, 16], strides = [1, 1]} : vector<288x16xf32> to vector<32x16xf32>
    %401 = vector.extract_strided_slice %392 {offsets = [256, 0], sizes = [32, 16], strides = [1, 1]} : vector<288x16xf32> to vector<32x16xf32>
    %402 = tpu.concatenate %393, %394, %395, %396, %397, %398, %399, %400, %401 in 1 : vector<32x16xf32>, vector<32x16xf32>, vector<32x16xf32>, vector<32x16xf32>, vector<32x16xf32>, vector<32x16xf32>, vector<32x16xf32>, vector<32x16xf32>, vector<32x16xf32> -> vector<32x144xf32>
    %c0_117 = arith.constant 0 : index
    %c0_118 = arith.constant 0 : index
    %403 = vector.load %arg11[%c0_117, %c0_118] : memref<144x16xbf16, #tpu.memory_space<vmem>>, vector<144x16xbf16>
    %404 = arith.truncf %402 : vector<32x144xf32> to vector<32x144xbf16>
    %cst_119 = arith.constant dense<0.000000e+00> : vector<32x16xf32>
    %405 = tpu.matmul %404, %403, %cst_119 {dimension_numbers = #tpu.dot_dimension_numbers<[1], [0], [0], [1], [0, 0, 1, 1], [], []>} : vector<32x144xbf16>, vector<144x16xbf16>, vector<32x16xf32> -> vector<32x16xf32>
    %cst_120 = arith.constant dense<0.000000e+00> : vector<32xf32>
    %406 = vector.multi_reduction <add>, %405, %cst_120 [1] : vector<32x16xf32> to vector<32xf32>
    %407 = vector.shape_cast %406 : vector<32xf32> to vector<32x1xf32>
    %cst_121 = arith.constant 1.600000e+01 : f32
    %408 = vector.broadcast %cst_121 : f32 to vector<32x1xf32>
    %409 = arith.divf %407, %408 : vector<32x1xf32>
    %410 = vector.broadcast %409 : vector<32x1xf32> to vector<32x16xf32>
    %411 = arith.subf %405, %410 : vector<32x16xf32>
    %412 = arith.mulf %411, %411 : vector<32x16xf32>
    %cst_122 = arith.constant dense<0.000000e+00> : vector<32xf32>
    %413 = vector.multi_reduction <add>, %412, %cst_122 [1] : vector<32x16xf32> to vector<32xf32>
    %414 = vector.shape_cast %413 : vector<32xf32> to vector<32x1xf32>
    %cst_123 = arith.constant 1.600000e+01 : f32
    %415 = vector.broadcast %cst_123 : f32 to vector<32x1xf32>
    %416 = arith.divf %414, %415 : vector<32x1xf32>
    %417 = vector.broadcast %409 : vector<32x1xf32> to vector<32x16xf32>
    %418 = arith.subf %405, %417 : vector<32x16xf32>
    %cst_124 = arith.constant 9.99999997E-7 : f32
    %419 = vector.broadcast %cst_124 : f32 to vector<32x1xf32>
    %420 = arith.addf %416, %419 : vector<32x1xf32>
    %421 = math.rsqrt %420 : vector<32x1xf32>
    %422 = vector.broadcast %421 : vector<32x1xf32> to vector<32x16xf32>
    %423 = arith.mulf %418, %422 : vector<32x16xf32>
    %424 = vector.broadcast %363 : vector<1x16xf32> to vector<32x16xf32>
    %425 = arith.mulf %423, %424 : vector<32x16xf32>
    %426 = vector.broadcast %364 : vector<1x16xf32> to vector<32x16xf32>
    %427 = arith.addf %425, %426 : vector<32x16xf32>
    %c0_125 = arith.constant 0 : index
    %c0_126 = arith.constant 0 : index
    %428 = vector.load %arg13[%c0_125, %c0_126] : memref<32x16xf32, #tpu.memory_space<vmem>>, vector<32x16xf32>
    tpu.vector_store %arg13[%c0_125, %c0_126], %427 {strides = array<i32>} : memref<32x16xf32, #tpu.memory_space<vmem>>, vector<32x16xf32>,
    return
  }
  func.func @transform_0(%arg0: i32) -> (i32, i32) {
    %c0_i32 = arith.constant 0 : i32
    %c0_i32_0 = arith.constant 0 : i32
    %c0_i32_1 = arith.constant 0 : i32
    return %c0_i32, %c0_i32_0 : i32, i32
  }
  func.func @transform_1(%arg0: i32) -> (i32, i32) {
    %c0_i32 = arith.constant 0 : i32
    %c0_i32_0 = arith.constant 0 : i32
    %c0_i32_1 = arith.constant 0 : i32
    return %c0_i32, %c0_i32_0 : i32, i32
  }
  func.func @transform_2(%arg0: i32) -> (i32, i32) {
    %c0_i32 = arith.constant 0 : i32
    %c0_i32_0 = arith.constant 0 : i32
    %c0_i32_1 = arith.constant 0 : i32
    return %c0_i32, %c0_i32_0 : i32, i32
  }
  func.func @transform_3(%arg0: i32) -> (i32, i32) {
    %c0_i32 = arith.constant 0 : i32
    %c0_i32_0 = arith.constant 0 : i32
    %c0_i32_1 = arith.constant 0 : i32
    return %c0_i32, %c0_i32_0 : i32, i32
  }
  func.func @transform_4(%arg0: i32) -> (i32, i32, i32) {
    %c0_i32 = arith.constant 0 : i32
    %c0_i32_0 = arith.constant 0 : i32
    %c0_i32_1 = arith.constant 0 : i32
    %c0_i32_2 = arith.constant 0 : i32
    return %c0_i32, %c0_i32_0, %c0_i32_1 : i32, i32, i32
  }
  func.func @transform_5(%arg0: i32) -> (i32, i32, i32) {
    %c0_i32 = arith.constant 0 : i32
    %c0_i32_0 = arith.constant 0 : i32
    %c0_i32_1 = arith.constant 0 : i32
    %c0_i32_2 = arith.constant 0 : i32
    return %c0_i32, %c0_i32_0, %c0_i32_1 : i32, i32, i32
  }
  func.func @transform_6(%arg0: i32) -> (i32, i32, i32) {
    %c0_i32 = arith.constant 0 : i32
    %c0_i32_0 = arith.constant 0 : i32
    %c0_i32_1 = arith.constant 0 : i32
    %c0_i32_2 = arith.constant 0 : i32
    return %c0_i32, %c0_i32_0, %c0_i32_1 : i32, i32, i32
  }
  func.func @transform_7(%arg0: i32) -> (i32, i32, i32) {
    %c0_i32 = arith.constant 0 : i32
    %c0_i32_0 = arith.constant 0 : i32
    %c0_i32_1 = arith.constant 0 : i32
    %c0_i32_2 = arith.constant 0 : i32
    return %c0_i32, %c0_i32_0, %c0_i32_1 : i32, i32, i32
  }
  func.func @transform_8(%arg0: i32) -> (i32, i32) {
    %c0_i32 = arith.constant 0 : i32
    %c0_i32_0 = arith.constant 0 : i32
    %c0_i32_1 = arith.constant 0 : i32
    return %c0_i32, %c0_i32_0 : i32, i32
  }
  func.func @transform_9(%arg0: i32) -> (i32, i32) {
    %c0_i32 = arith.constant 0 : i32
    %c0_i32_0 = arith.constant 0 : i32
    %c0_i32_1 = arith.constant 0 : i32
    return %c0_i32, %c0_i32_0 : i32, i32
  }
  func.func @transform_10(%arg0: i32) -> (i32, i32) {
    %c0_i32 = arith.constant 0 : i32
    %c0_i32_0 = arith.constant 0 : i32
    %c0_i32_1 = arith.constant 0 : i32
    return %c0_i32, %c0_i32_0 : i32, i32
  }
  func.func @transform_11(%arg0: i32) -> (i32, i32) {
    %c0_i32 = arith.constant 0 : i32
    %c0_i32_0 = arith.constant 0 : i32
    %c0_i32_1 = arith.constant 0 : i32
    return %c0_i32, %c0_i32_0 : i32, i32
  }
  func.func @transform_12(%arg0: i32) -> (i32, i32) {
    %c0_i32 = arith.constant 0 : i32
    %c0_i32_0 = arith.constant 0 : i32
    %c0_i32_1 = arith.constant 0 : i32
    return %c0_i32, %c0_i32_0 : i32, i32
  }
}

</mosaic_0001>

<llo_original>
// kernel: sam_image_encoder_forward.1
$region0: #{sam_image_encoder_forward.1}
  #allocation0 [shape = 'u32[]', space=smem, size = 0x4, offset = 0x4, fixed_abs, tag = 'smem constant byte address 0x4 - core index']
  #allocation1 [shape = 'u32[144,128]{1,0:T(1,128)}', space=vmem, size = 0x12000, scoped, tag = 'internal scratch']
  %s0 = inlined_call_operand.vmem [shape: f32[32,192], index: 0, kind: input, shape index: {}]
  %s1 = inlined_call_operand.vmem [shape: f32[32,32], index: 1, kind: input, shape index: {}]
  %s2 = inlined_call_operand.vmem [shape: bf16[192,32], index: 2, kind: input, shape index: {}]
  %s3 = inlined_call_operand.vmem [shape: f32[24,128], index: 3, kind: input, shape index: {}]
  %s4 = inlined_call_operand.vmem [shape: bf16[2,32,96], index: 4, kind: input, shape index: {}]
  %s5 = inlined_call_operand.vmem [shape: bf16[2,32,32], index: 5, kind: input, shape index: {}]
  %s6 = inlined_call_operand.vmem [shape: bf16[2,32,128], index: 6, kind: input, shape index: {}]
  %s7 = inlined_call_operand.vmem [shape: bf16[2,128,32], index: 7, kind: input, shape index: {}]
  %s8 = inlined_call_operand.vmem [shape: bf16[32,16], index: 8, kind: input, shape index: {}]
  %s9 = inlined_call_operand.vmem [shape: bf16[288,32], index: 9, kind: input, shape index: {}]
  %s10 = inlined_call_operand.vmem [shape: bf16[144,16], index: 10, kind: input, shape index: {}]
  %s11 = inlined_call_operand.vmem [shape: f32[32,32], index: 11, kind: input, shape index: {}]
  %s12 = inlined_call_operand.hbm [shape: f32[32,16], index: 12, kind: output, shape index: {}]
  %s13 = sld [smem:[#allocation0]]
  $region58: #{sam_image_encoder_forward.1} parent=0
    _
  %s15 = ssub.s32 1, %s13
  %s16 = scalar_select 0, %s15, %s13
  $region1: #{sam_image_encoder_forward.1} parent=0
    #allocation2 [shape = 'u8[16384]{0}', space=vmem, size = 0x4000, scoped, tag = 'output window, operand 0, single buffered']
    #allocation3 [shape = 's32[1]{0}', space=sflag, size = 0x4, scoped, tag = 'scoped memory for sam_image_encoder_forward.1']
    %17 = vsyncpa [#allocation3], 0
    // Predicated region
    $region2: #{sam_image_encoder_forward.1} parent=1 // pred_check
      _
    $region3: #{sam_image_encoder_forward.1} parent=1 // pred_check_branch
      %19 = sbr.rel (0) target = $region5
    $region4: #{sam_image_encoder_forward.1} parent=1 // pred_region
      _
    $region5: #{sam_image_encoder_forward.1} parent=1 // pred_fallthru
      _
    // Predicated region
    $region6: #{sam_image_encoder_forward.1} parent=1 // pred_check
      _
    $region7: #{sam_image_encoder_forward.1} parent=1 // pred_check_branch
      %21 = sbr.rel (0) target = $region9
    $region8: #{sam_image_encoder_forward.1} parent=1 // pred_region
      _
    $region9: #{sam_image_encoder_forward.1} parent=1 // pred_fallthru
      _
    // Predicated region
    $region10: #{sam_image_encoder_forward.1} parent=1 // pred_check
      _
    $region11: #{sam_image_encoder_forward.1} parent=1 // pred_check_branch
      %23 = sbr.rel (0) target = $region13
    $region12: #{sam_image_encoder_forward.1} parent=1 // pred_region
      _
    $region13: #{sam_image_encoder_forward.1} parent=1 // pred_fallthru
      _
    // Predicated region
    $region14: #{sam_image_encoder_forward.1} parent=1 // pred_check
      _
    $region15: #{sam_image_encoder_forward.1} parent=1 // pred_check_branch
      %25 = sbr.rel (0) target = $region17
    $region16: #{sam_image_encoder_forward.1} parent=1 // pred_region
      _
    $region17: #{sam_image_encoder_forward.1} parent=1 // pred_fallthru
      _
    // Predicated region
    $region18: #{sam_image_encoder_forward.1} parent=1 // pred_check
      _
    $region19: #{sam_image_encoder_forward.1} parent=1 // pred_check_branch
      %27 = sbr.rel (0) target = $region21
    $region20: #{sam_image_encoder_forward.1} parent=1 // pred_region
      _
    $region21: #{sam_image_encoder_forward.1} parent=1 // pred_fallthru
      _
    // Predicated region
    $region22: #{sam_image_encoder_forward.1} parent=1 // pred_check
      _
    $region23: #{sam_image_encoder_forward.1} parent=1 // pred_check_branch
      %29 = sbr.rel (0) target = $region25
    $region24: #{sam_image_encoder_forward.1} parent=1 // pred_region
      _
    $region25: #{sam_image_encoder_forward.1} parent=1 // pred_fallthru
      _
    // Predicated region
    $region26: #{sam_image_encoder_forward.1} parent=1 // pred_check
      _
    $region27: #{sam_image_encoder_forward.1} parent=1 // pred_check_branch
      %31 = sbr.rel (0) target = $region29
    $region28: #{sam_image_encoder_forward.1} parent=1 // pred_region
      _
    $region29: #{sam_image_encoder_forward.1} parent=1 // pred_fallthru
      _
    // Predicated region
    $region30: #{sam_image_encoder_forward.1} parent=1 // pred_check
      _
    $region31: #{sam_image_encoder_forward.1} parent=1 // pred_check_branch
      %33 = sbr.rel (0) target = $region33
    $region32: #{sam_image_encoder_forward.1} parent=1 // pred_region
      _
    $region33: #{sam_image_encoder_forward.1} parent=1 // pred_fallthru
      _
    // Predicated region
    $region34: #{sam_image_encoder_forward.1} parent=1 // pred_check
      _
    $region35: #{sam_image_encoder_forward.1} parent=1 // pred_check_branch
      %35 = sbr.rel (0) target = $region37
    $region36: #{sam_image_encoder_forward.1} parent=1 // pred_region
      _
    $region37: #{sam_image_encoder_forward.1} parent=1 // pred_fallthru
      _
    // Predicated region
    $region38: #{sam_image_encoder_forward.1} parent=1 // pred_check
      _
    $region39: #{sam_image_encoder_forward.1} parent=1 // pred_check_branch
      %37 = sbr.rel (0) target = $region41
    $region40: #{sam_image_encoder_forward.1} parent=1 // pred_region
      _
    $region41: #{sam_image_encoder_forward.1} parent=1 // pred_fallthru
      _
    // Predicated region
    $region42: #{sam_image_encoder_forward.1} parent=1 // pred_check
      _
    $region43: #{sam_image_encoder_forward.1} parent=1 // pred_check_branch
      %39 = sbr.rel (0) target = $region45
    $region44: #{sam_image_encoder_forward.1} parent=1 // pred_region
      _
    $region45: #{sam_image_encoder_forward.1} parent=1 // pred_fallthru
      _
    // Predicated region
    $region46: #{sam_image_encoder_forward.1} parent=1 // pred_check
      _
    $region47: #{sam_image_encoder_forward.1} parent=1 // pred_check_branch
      %41 = sbr.rel (0) target = $region49
    $region48: #{sam_image_encoder_forward.1} parent=1 // pred_region
      _
    $region49: #{sam_image_encoder_forward.1} parent=1 // pred_fallthru
      _
    %v43 = vld [vmem:[%s3] sm:$0xff]
    %v44 = vld [vmem:[%s3 + $0x8] sm:$0xff]
    %v45 = vld [vmem:[%s3 + $0x10] sm:$0xff]
    %v46 = vld [vmem:[%s11] sm:$0xff]
    %v47 = vld [vmem:[%s11 + $0x8] sm:$0xff]
    %v48 = vld [vmem:[%s11 + $0x10] sm:$0xff]
    %v49 = vld [vmem:[%s11 + $0x18] sm:$0xff]
    %v50 = vld [vmem:[%s0] sm:$0xff]
    %v51 = vld [vmem:[%s0 + $0x8] sm:$0xff]
    %v52 = vld [vmem:[%s0 + $0x10] sm:$0xff]
    %v53 = vld [vmem:[%s0 + $0x18] sm:$0xff]
    %v54 = vld [vmem:[%s0 + $0x20] sm:$0xff]
    %v55 = vld [vmem:[%s0 + $0x28] sm:$0xff]
    %v56 = vld [vmem:[%s0 + $0x30] sm:$0xff]
    %v57 = vld [vmem:[%s0 + $0x38] sm:$0xff]
    %v58 = vld [vmem:[%s2] sm:$0xf]
    %v59 = vld [vmem:[%s2 + $0x4] sm:$0xf]
    %v60 = vld [vmem:[%s2 + $0x8] sm:$0xf]
    %v61 = vld [vmem:[%s2 + $0xc] sm:$0xf]
    %v62 = vld [vmem:[%s2 + $0x10] sm:$0xf]
    %v63 = vld [vmem:[%s2 + $0x14] sm:$0xf]
    %v64 = vld [vmem:[%s2 + $0x18] sm:$0xf]
    %v65 = vld [vmem:[%s2 + $0x1c] sm:$0xf]
    %v66 = vld [vmem:[%s2 + $0x20] sm:$0xf]
    %v67 = vld [vmem:[%s2 + $0x24] sm:$0xf]
    %v68 = vld [vmem:[%s2 + $0x28] sm:$0xf]
    %v69 = vld [vmem:[%s2 + $0x2c] sm:$0xf]
    %v70 = vld [vmem:[%s2 + $0x30] sm:$0xf]
    %v71 = vld [vmem:[%s2 + $0x34] sm:$0xf]
    %v72 = vld [vmem:[%s2 + $0x38] sm:$0xf]
    %v73 = vld [vmem:[%s2 + $0x3c] sm:$0xf]
    %v74 = vld [vmem:[%s2 + $0x40] sm:$0xf]
    %v75 = vld [vmem:[%s2 + $0x44] sm:$0xf]
    %v76 = vld [vmem:[%s2 + $0x48] sm:$0xf]
    %v77 = vld [vmem:[%s2 + $0x4c] sm:$0xf]
    %v78 = vld [vmem:[%s2 + $0x50] sm:$0xf]
    %v79 = vld [vmem:[%s2 + $0x54] sm:$0xf]
    %v80 = vld [vmem:[%s2 + $0x58] sm:$0xf]
    %v81 = vld [vmem:[%s2 + $0x5c] sm:$0xf]
    %v82 = vpack.c.bf16 %v52, %v50
    %v83 = vpack.c.bf16 %v53, %v51
    %v84 = vpack.c.bf16 %v56, %v54
    %v85 = vpack.c.bf16 %v57, %v55
    %v86 = vlaneseq
    %v87 = vshrl.u32 %v86, 7
    %v88 = vsub.s32 0, %v87
    %v89 = vrot.slane %v45, %v88
    %v114 = vunpack.c.l.b16 %v58
    %v115 = vunpack.c.l.b16 %v59
    %v116 = vunpack.c.l.b16 %v60
    %v117 = vunpack.c.l.b16 %v61
    %v118 = vunpack.c.l.b16 %v62
    %v119 = vunpack.c.l.b16 %v63
    %v120 = vunpack.c.l.b16 %v64
    %v121 = vunpack.c.l.b16 %v65
    %v122 = vunpack.c.l.b16 %v66
    %v123 = vunpack.c.l.b16 %v67
    %v124 = vunpack.c.l.b16 %v68
    %v125 = vunpack.c.l.b16 %v69
    %v126 = vunpack.c.l.b16 %v70
    %v127 = vunpack.c.l.b16 %v71
    %v128 = vunpack.c.l.b16 %v72
    %v129 = vunpack.c.l.b16 %v73
    %v130 = vunpack.c.l.b16 %v74
    %v131 = vunpack.c.l.b16 %v75
    %v132 = vunpack.c.l.b16 %v76
    %v133 = vunpack.c.l.b16 %v77
    %v134 = vunpack.c.l.b16 %v78
    %v135 = vunpack.c.l.b16 %v79
    %v136 = vunpack.c.l.b16 %v80
    %v137 = vunpack.c.l.b16 %v81
    %v138 = vpack.c.b16 %v115, %v114
    %v139 = vpack.c.b16 %v117, %v116
    %v140 = vpack.c.b16 %v119, %v118
    %v141 = vpack.c.b16 %v121, %v120
    %v142 = vpack.c.b16 %v123, %v122
    %v143 = vpack.c.b16 %v125, %v124
    %v144 = vpack.c.b16 %v127, %v126
    %v145 = vpack.c.b16 %v129, %v128
    %v146 = vpack.c.b16 %v131, %v130
    %v147 = vpack.c.b16 %v133, %v132
    %v148 = vpack.c.b16 %v135, %v134
    %v149 = vpack.c.b16 %v137, %v136
    %vm162 = vcmask 523264
    %v164 = vsel %vm162, %v83, 0
    %v167 = vsel %vm162, %v85, 0
    %169 = vmatprep.subr.bf16.mxu0 0
    %170 = vmatpush1.bf16.msra.mxu0 %v138
    %171 = vmatprep.subr.bf16.mxu0 0
    %172 = vmatpush1.bf16.msra.mxu0 %v139
    %173 = vmatprep.subr.bf16.mxu0 0
    %174 = vmatpush1.bf16.msra.mxu0 %v140
    %175 = vmatprep.subr.bf16.mxu0 0
    %176 = vmatpush1.bf16.msra.mxu0 %v141
    %177 = vmatprep.subr.bf16.mxu0 0
    %178 = vmatpush1.bf16.msra.mxu0 %v142
    %179 = vmatprep.subr.bf16.mxu0 0
    %180 = vmatpush1.bf16.msra.mxu0 %v143
    %181 = vmatprep.subr.bf16.mxu0 0
    %182 = vmatpush1.bf16.msra.mxu0 %v144
    %183 = vmatprep.subr.bf16.mxu0 0
    %184 = vmatpush1.bf16.msra.mxu0 %v145
    %185 = vmatprep.subr.bf16.mxu0 0
    %186 = vmatpush1.bf16.msra.mxu0 %v146
    %187 = vmatprep.subr.bf16.mxu0 0
    %188 = vmatpush1.bf16.msra.mxu0 %v147
    %189 = vmatprep.subr.bf16.mxu0 0
    %190 = vmatpush1.bf16.msra.mxu0 %v148
    %191 = vmatprep.subr.bf16.mxu0 0
    %192 = vmatpush1.bf16.msra.mxu0 %v149
    %193 = vmatprep.subr.bf16.mxu0 0
    %194 = vmatpush1.bf16.msra.mxu0 0
    %195 = vmatprep.subr.bf16.mxu0 0
    %196 = vmatpush1.bf16.msra.mxu0 0
    %197 = vmatprep.subr.bf16.mxu0 0
    %198 = vmatpush1.bf16.msra.mxu0 0
    %199 = vmatprep.subr.bf16.mxu0 0
    %200 = vmatpush1.bf16.msra.mxu0 0
    %201 = vmatprep.mubr.bf16.mxu0 %v164
    %202 = vmatmul.mubr.bf16.gmra.mrb[0].mxu0 %v82
    %v203 = vpop.f32.mrb[0].mxu0
    %v204 = vadd.f32 %v89, %v203
    %v205 = vpop.f32.mrb[0].mxu0
    %v206 = vpop.f32.mrb[0].mxu0
    %v207 = vadd.f32 %v89, %v206
    %v208 = vpop.f32.mrb[0].mxu0
    %209 = vmatprep.mubr.bf16.mxu0 %v167
    %210 = vmatmul.mubr.bf16.gmra.mrb[0].mxu0 %v84
    %v211 = vpop.f32.mrb[0].mxu0
    %v212 = vadd.f32 %v89, %v211
    %v213 = vpop.f32.mrb[0].mxu0
    %v214 = vpop.f32.mrb[0].mxu0
    %v215 = vadd.f32 %v89, %v214
    %v216 = vpop.f32.mrb[0].mxu0
    %217 = vdwg.mxu0
    %v218 = vld [vmem:[%s1] sm:$0xff]
    %v219 = vld [vmem:[%s1 + $0x8] sm:$0xff]
    %v220 = vld [vmem:[%s1 + $0x10] sm:$0xff]
    %v221 = vld [vmem:[%s1 + $0x18] sm:$0xff]
    %v222 = vadd.f32 %v204, %v218
    %v223 = vadd.f32 %v207, %v219
    %v224 = vadd.f32 %v212, %v220
    %v225 = vadd.f32 %v215, %v221
    %vm226 = vcmask 261120
    %v227 = vsel %vm226, %v222, 0.0
    %228 = vadd.xlane.f32.xlu0 %v227
    %v229 = vpop.xlane.xlu0 %228
    %v230 = vsel %vm226, %v223, 0.0
    %231 = vadd.xlane.f32.xlu0 %v230
    %v232 = vpop.xlane.xlu0 %231
    %v233 = vsel %vm226, %v224, 0.0
    %234 = vadd.xlane.f32.xlu0 %v233
    %v235 = vpop.xlane.xlu0 %234
    %v236 = vsel %vm226, %v225, 0.0
    %237 = vadd.xlane.f32.xlu0 %v236
    %v238 = vpop.xlane.xlu0 %237
    %v239 = vrcp.pop 32.0
    %v240 = vmul.f32 %v229, %v239
    %v241 = vmul.f32 %v232, %v239
    %v242 = vmul.f32 %v235, %v239
    %v243 = vmul.f32 %v238, %v239
    %v244 = vsub.f32 %v222, %v240
    %v245 = vsub.f32 %v223, %v241
    %v246 = vsub.f32 %v224, %v242
    %v247 = vsub.f32 %v225, %v243
    %v248 = vmul.f32 %v244, %v244
    %v249 = vmul.f32 %v245, %v245
    %v250 = vmul.f32 %v246, %v246
    %v251 = vmul.f32 %v247, %v247
    %v252 = vsel %vm226, %v248, 0.0
    %253 = vadd.xlane.f32.xlu0 %v252
    %v254 = vpop.xlane.xlu0 %253
    %v255 = vsel %vm226, %v249, 0.0
    %256 = vadd.xlane.f32.xlu0 %v255
    %v257 = vpop.xlane.xlu0 %256
    %v258 = vsel %vm226, %v250, 0.0
    %259 = vadd.xlane.f32.xlu0 %v258
    %v260 = vpop.xlane.xlu0 %259
    %v261 = vsel %vm226, %v251, 0.0
    %262 = vadd.xlane.f32.xlu0 %v261
    %v263 = vpop.xlane.xlu0 %262
    %v264 = vmul.f32 %v254, %v239
    %v265 = vmul.f32 %v257, %v239
    %v266 = vmul.f32 %v260, %v239
    %v267 = vmul.f32 %v263, %v239
    %v268 = vadd.f32 %v264, 1e-06
    %v269 = vadd.f32 %v265, 1e-06
    %v270 = vadd.f32 %v266, 1e-06
    %v271 = vadd.f32 %v267, 1e-06
    %v272 = vrsqrt.pop %v268
    %v273 = vrsqrt.pop %v269
    %v274 = vrsqrt.pop %v270
    %v275 = vrsqrt.pop %v271
    %v276 = vmul.f32 %v244, %v272
    %v277 = vmul.f32 %v245, %v273
    %v278 = vmul.f32 %v246, %v274
    %v279 = vmul.f32 %v247, %v275
    %v280 = vlaneseq
    %v281 = vshrl.u32 %v280, 7
    %v282 = vsub.s32 0, %v281
    %v283 = vrot.slane %v43, %v282
    %v284 = vmul.f32 %v276, %v283
    %v285 = vmul.f32 %v277, %v283
    %v286 = vmul.f32 %v278, %v283
    %v287 = vmul.f32 %v279, %v283
    %v288 = vlaneseq
    %v289 = vshrl.u32 %v288, 7
    %v290 = vsub.s32 1, %v289
    %v291 = vrot.slane %v43, %v290
    %v292 = vadd.f32 %v284, %v291
    %v293 = vadd.f32 %v285, %v291
    %v294 = vadd.f32 %v286, %v291
    %v295 = vadd.f32 %v287, %v291
    %v296 = vld [vmem:[%s4] sm:$0xf]
    %v297 = vld [vmem:[%s4 + $0x4] sm:$0xf]
    %v298 = vld [vmem:[%s4 + $0x8] sm:$0xf]
    %v299 = vld [vmem:[%s4 + $0xc] sm:$0xf]
    %v300 = vpack.c.bf16 %v293, %v292
    %v301 = vpack.c.bf16 %v295, %v294
    %v302 = vlaneseq
    %v303 = vshrl.u32 %v302, 7
    %v304 = vsub.s32 2, %v303
    %v305 = vrot.slane %v43, %v304
    %v310 = vunpack.c.l.b16 %v296
    %v311 = vunpack.c.l.b16 %v297
    %v312 = vunpack.c.l.b16 %v298
    %v313 = vunpack.c.l.b16 %v299
    %v314 = vpack.c.b16 %v311, %v310
    %v315 = vpack.c.b16 %v313, %v312
    %v319 = vsel %vm226, %v300, 0
    %v322 = vsel %vm226, %v301, 0
    %324 = vmatprep.subr.bf16.mxu0 0
    %325 = vmatpush1.bf16.msra.mxu0 %v314
    %326 = vmatprep.subr.bf16.mxu0 0
    %327 = vmatpush1.bf16.msra.mxu0 %v315
    %328 = vmatprep.subr.bf16.mxu0 0
    %329 = vmatpush1.bf16.msra.mxu0 0
    %330 = vmatprep.subr.bf16.mxu0 0
    %331 = vmatpush1.bf16.msra.mxu0 0
    %332 = vmatprep.subr.bf16.mxu0 0
    %333 = vmatpush1.bf16.msra.mxu0 0
    %334 = vmatprep.subr.bf16.mxu0 0
    %335 = vmatpush1.bf16.msra.mxu0 0
    %336 = vmatprep.subr.bf16.mxu0 0
    %337 = vmatpush1.bf16.msra.mxu0 0
    %338 = vmatprep.subr.bf16.mxu0 0
    %339 = vmatpush1.bf16.msra.mxu0 0
    %340 = vmatprep.subr.bf16.mxu0 0
    %341 = vmatpush1.bf16.msra.mxu0 0
    %342 = vmatprep.subr.bf16.mxu0 0
    %343 = vmatpush1.bf16.msra.mxu0 0
    %344 = vmatprep.subr.bf16.mxu0 0
    %345 = vmatpush1.bf16.msra.mxu0 0
    %346 = vmatprep.subr.bf16.mxu0 0
    %347 = vmatpush1.bf16.msra.mxu0 0
    %348 = vmatprep.subr.bf16.mxu0 0
    %349 = vmatpush1.bf16.msra.mxu0 0
    %350 = vmatprep.subr.bf16.mxu0 0
    %351 = vmatpush1.bf16.msra.mxu0 0
    %352 = vmatprep.subr.bf16.mxu0 0
    %353 = vmatpush1.bf16.msra.mxu0 0
    %354 = vmatprep.subr.bf16.mxu0 0
    %355 = vmatpush1.bf16.msra.mxu0 0
    %356 = vmatprep.mubr.bf16.mxu0 0
    %357 = vmatmul.mubr.bf16.gmra.mrb[0].mxu0 %v319
    %v358 = vpop.f32.mrb[0].mxu0
    %v359 = vadd.f32 %v305, %v358
    %v360 = vpop.f32.mrb[0].mxu0
    %v361 = vpop.f32.mrb[0].mxu0
    %v362 = vadd.f32 %v305, %v361
    %v363 = vpop.f32.mrb[0].mxu0
    %364 = vmatprep.mubr.bf16.mxu0 0
    %365 = vmatmul.mubr.bf16.gmra.mrb[0].mxu0 %v322
    %v366 = vpop.f32.mrb[0].mxu0
    %v367 = vadd.f32 %v305, %v366
    %v368 = vpop.f32.mrb[0].mxu0
    %v369 = vpop.f32.mrb[0].mxu0
    %v370 = vadd.f32 %v305, %v369
    %v371 = vpop.f32.mrb[0].mxu0
    %372 = vdwg.mxu0
    %v373 = vmul.f32 %v359, 0.35355338
    %v374 = vmul.f32 %v362, 0.35355338
    %v375 = vmul.f32 %v367, 0.35355338
    %v376 = vmul.f32 %v370, 0.35355338
    %v377 = vpack.c.bf16 %v374, %v373
    %v378 = vpack.c.bf16 %v376, %v375
    %v379 = vpack.c.bf16 %v362, %v359
    %v380 = vpack.c.bf16 %v370, %v367
    %383 = vrot.lane.b32.xlu0 %v379, 96
    %v384 = vpop.permute.xlu0 %383
    %385 = vrot.lane.b32.xlu0 %v380, 96
    %v386 = vpop.permute.xlu0 %385
    %vm387 = vcmask 64512
    %v389 = vsel %vm387, %v377, 0
    %v392 = vsel %vm387, %v378, 0
    %v395 = vsel %vm387, %v384, 0
    %v398 = vsel %vm387, %v386, 0
    %400 = vmatprep.subr.bf16.mxu0 0
    %401 = vmatpush1.bf16.xpose.msra.mxu0 %v395
    %402 = vmatprep.subr.bf16.mxu0 0
    %403 = vmatpush1.bf16.xpose.msra.mxu0 %v398
    %404 = vmatprep.subr.bf16.mxu0 0
    %405 = vmatpush1.bf16.xpose.msra.mxu0 0
    %406 = vmatprep.subr.bf16.mxu0 0
    %407 = vmatpush1.bf16.xpose.msra.mxu0 0
    %408 = vmatprep.subr.bf16.mxu0 0
    %409 = vmatpush1.bf16.xpose.msra.mxu0 0
    %410 = vmatprep.subr.bf16.mxu0 0
    %411 = vmatpush1.bf16.xpose.msra.mxu0 0
    %412 = vmatprep.subr.bf16.mxu0 0
    %413 = vmatpush1.bf16.xpose.msra.mxu0 0
    %414 = vmatprep.subr.bf16.mxu0 0
    %415 = vmatpush1.bf16.xpose.msra.mxu0 0
    %416 = vmatprep.subr.bf16.mxu0 0
    %417 = vmatpush1.bf16.xpose.msra.mxu0 0
    %418 = vmatprep.subr.bf16.mxu0 0
    %419 = vmatpush1.bf16.xpose.msra.mxu0 0
    %420 = vmatprep.subr.bf16.mxu0 0
    %421 = vmatpush1.bf16.xpose.msra.mxu0 0
    %422 = vmatprep.subr.bf16.mxu0 0
    %423 = vmatpush1.bf16.xpose.msra.mxu0 0
    %424 = vmatprep.subr.bf16.mxu0 0
    %425 = vmatpush1.bf16.xpose.msra.mxu0 0
    %426 = vmatprep.subr.bf16.mxu0 0
    %427 = vmatpush1.bf16.xpose.msra.mxu0 0
    %428 = vmatprep.subr.bf16.mxu0 0
    %429 = vmatpush1.bf16.xpose.msra.mxu0 0
    %430 = vmatprep.subr.bf16.mxu0 0
    %431 = vmatpush1.bf16.xpose.msra.mxu0 0
    %432 = vmatprep.mubr.bf16.mxu0 0
    %433 = vmatmul.mubr.bf16.gmra.mrb[0].mxu0 %v389
    %v434 = vpop.f32.mrb[0].mxu0
    %v435 = vadd.f32 %v46, %v434
    %v436 = vpop.f32.mrb[0].mxu0
    %v437 = vpop.f32.mrb[0].mxu0
    %v438 = vadd.f32 %v47, %v437
    %v439 = vpop.f32.mrb[0].mxu0
    %440 = vmatprep.mubr.bf16.mxu0 0
    %441 = vmatmul.mubr.bf16.gmra.mrb[0].mxu0 %v392
    %v442 = vpop.f32.mrb[0].mxu0
    %v443 = vadd.f32 %v48, %v442
    %v444 = vpop.f32.mrb[0].mxu0
    %v445 = vpop.f32.mrb[0].mxu0
    %v446 = vadd.f32 %v49, %v445
    %v447 = vpop.f32.mrb[0].mxu0
    %448 = vdwg.mxu0
    %v449 = vsel %vm226, %v435, -inf
    %450 = vmax.xlane.f32.xlu0 %v449
    %v451 = vpop.xlane.xlu0 %450
    %v452 = vsel %vm226, %v438, -inf
    %453 = vmax.xlane.f32.xlu0 %v452
    %v454 = vpop.xlane.xlu0 %453
    %v455 = vsel %vm226, %v443, -inf
    %456 = vmax.xlane.f32.xlu0 %v455
    %v457 = vpop.xlane.xlu0 %456
    %v458 = vsel %vm226, %v446, -inf
    %459 = vmax.xlane.f32.xlu0 %v458
    %v460 = vpop.xlane.xlu0 %459
    %v461 = vsub.f32 %v435, %v451
    %v462 = vsub.f32 %v438, %v454
    %v463 = vsub.f32 %v443, %v457
    %v464 = vsub.f32 %v446, %v460
    %v465 = vmul.f32 %v461, 1.442695
    %v466 = vpow.pop %v465
    %v467 = vmul.f32 %v462, 1.442695
    %v468 = vpow.pop %v467
    %v469 = vmul.f32 %v463, 1.442695
    %v470 = vpow.pop %v469
    %v471 = vmul.f32 %v464, 1.442695
    %v472 = vpow.pop %v471
    %v473 = vsel %vm226, %v466, 0.0
    %474 = vadd.xlane.f32.xlu0 %v473
    %v475 = vpop.xlane.xlu0 %474
    %v476 = vsel %vm226, %v468, 0.0
    %477 = vadd.xlane.f32.xlu0 %v476
    %v478 = vpop.xlane.xlu0 %477
    %v479 = vsel %vm226, %v470, 0.0
    %480 = vadd.xlane.f32.xlu0 %v479
    %v481 = vpop.xlane.xlu0 %480
    %v482 = vsel %vm226, %v472, 0.0
    %483 = vadd.xlane.f32.xlu0 %v482
    %v484 = vpop.xlane.xlu0 %483
    %v485 = vrcp.pop %v475
    %v486 = vrcp.pop %v478
    %v487 = vrcp.pop %v481
    %v488 = vrcp.pop %v484
    %v489 = vmul.f32 %v466, %v485
    %v490 = vmul.f32 %v468, %v486
    %v491 = vmul.f32 %v470, %v487
    %v492 = vmul.f32 %v472, %v488
    %v493 = vpack.c.bf16 %v490, %v489
    %v494 = vpack.c.bf16 %v492, %v491
    %495 = vrot.lane.b32.xlu0 %v379, 64
    %v496 = vpop.permute.xlu0 %495
    %497 = vrot.lane.b32.xlu0 %v380, 64
    %v498 = vpop.permute.xlu0 %497
    %v502 = vsel %vm226, %v493, 0
    %v505 = vsel %vm226, %v494, 0
    %507 = vmatprep.subr.bf16.mxu0 0
    %508 = vmatpush1.bf16.msra.mxu0 %v496
    %509 = vmatprep.subr.bf16.mxu0 0
    %510 = vmatpush1.bf16.msra.mxu0 %v498
    %511 = vmatprep.subr.bf16.mxu0 0
    %512 = vmatpush1.bf16.msra.mxu0 0
    %513 = vmatprep.subr.bf16.mxu0 0
    %514 = vmatpush1.bf16.msra.mxu0 0
    %515 = vmatprep.subr.bf16.mxu0 0
    %516 = vmatpush1.bf16.msra.mxu0 0
    %517 = vmatprep.subr.bf16.mxu0 0
    %518 = vmatpush1.bf16.msra.mxu0 0
    %519 = vmatprep.subr.bf16.mxu0 0
    %520 = vmatpush1.bf16.msra.mxu0 0
    %521 = vmatprep.subr.bf16.mxu0 0
    %522 = vmatpush1.bf16.msra.mxu0 0
    %523 = vmatprep.subr.bf16.mxu0 0
    %524 = vmatpush1.bf16.msra.mxu0 0
    %525 = vmatprep.subr.bf16.mxu0 0
    %526 = vmatpush1.bf16.msra.mxu0 0
    %527 = vmatprep.subr.bf16.mxu0 0
    %528 = vmatpush1.bf16.msra.mxu0 0
    %529 = vmatprep.subr.bf16.mxu0 0
    %530 = vmatpush1.bf16.msra.mxu0 0
    %531 = vmatprep.subr.bf16.mxu0 0
    %532 = vmatpush1.bf16.msra.mxu0 0
    %533 = vmatprep.subr.bf16.mxu0 0
    %534 = vmatpush1.bf16.msra.mxu0 0
    %535 = vmatprep.subr.bf16.mxu0 0
    %536 = vmatpush1.bf16.msra.mxu0 0
    %537 = vmatprep.subr.bf16.mxu0 0
    %538 = vmatpush1.bf16.msra.mxu0 0
    %539 = vmatprep.mubr.bf16.mxu0 0
    %540 = vmatmul.mubr.bf16.gmra.mrb[0].mxu0 %v502
    %v541 = vpop.f32.mrb[0].mxu0
    %v542 = vadd.f32 0.0, %v541
    %v543 = vpop.f32.mrb[0].mxu0
    %v544 = vpop.f32.mrb[0].mxu0
    %v545 = vadd.f32 0.0, %v544
    %v546 = vpop.f32.mrb[0].mxu0
    %547 = vmatprep.mubr.bf16.mxu0 0
    %548 = vmatmul.mubr.bf16.gmra.mrb[0].mxu0 %v505
    %v549 = vpop.f32.mrb[0].mxu0
    %v550 = vadd.f32 0.0, %v549
    %v551 = vpop.f32.mrb[0].mxu0
    %v552 = vpop.f32.mrb[0].mxu0
    %v553 = vadd.f32 0.0, %v552
    %v554 = vpop.f32.mrb[0].mxu0
    %555 = vdwg.mxu0
    %558 = vrot.lane.b32.xlu0 %v377, 120
    %v559 = vpop.permute.xlu0 %558
    %560 = vrot.lane.b32.xlu0 %v378, 120
    %v561 = vpop.permute.xlu0 %560
    %562 = vrot.lane.b32.xlu0 %v379, 88
    %v563 = vpop.permute.xlu0 %562
    %564 = vrot.lane.b32.xlu0 %v380, 88
    %v565 = vpop.permute.xlu0 %564
    %v567 = vsel %vm387, %v559, 0
    %v570 = vsel %vm387, %v561, 0
    %v573 = vsel %vm387, %v563, 0
    %v576 = vsel %vm387, %v565, 0
    %578 = vmatprep.subr.bf16.mxu0 0
    %579 = vmatpush1.bf16.xpose.msra.mxu0 %v573
    %580 = vmatprep.subr.bf16.mxu0 0
    %581 = vmatpush1.bf16.xpose.msra.mxu0 %v576
    %582 = vmatprep.subr.bf16.mxu0 0
    %583 = vmatpush1.bf16.xpose.msra.mxu0 0
    %584 = vmatprep.subr.bf16.mxu0 0
    %585 = vmatpush1.bf16.xpose.msra.mxu0 0
    %586 = vmatprep.subr.bf16.mxu0 0
    %587 = vmatpush1.bf16.xpose.msra.mxu0 0
    %588 = vmatprep.subr.bf16.mxu0 0
    %589 = vmatpush1.bf16.xpose.msra.mxu0 0
    %590 = vmatprep.subr.bf16.mxu0 0
    %591 = vmatpush1.bf16.xpose.msra.mxu0 0
    %592 = vmatprep.subr.bf16.mxu0 0
    %593 = vmatpush1.bf16.xpose.msra.mxu0 0
    %594 = vmatprep.subr.bf16.mxu0 0
    %595 = vmatpush1.bf16.xpose.msra.mxu0 0
    %596 = vmatprep.subr.bf16.mxu0 0
    %597 = vmatpush1.bf16.xpose.msra.mxu0 0
    %598 = vmatprep.subr.bf16.mxu0 0
    %599 = vmatpush1.bf16.xpose.msra.mxu0 0
    %600 = vmatprep.subr.bf16.mxu0 0
    %601 = vmatpush1.bf16.xpose.msra.mxu0 0
    %602 = vmatprep.subr.bf16.mxu0 0
    %603 = vmatpush1.bf16.xpose.msra.mxu0 0
    %604 = vmatprep.subr.bf16.mxu0 0
    %605 = vmatpush1.bf16.xpose.msra.mxu0 0
    %606 = vmatprep.subr.bf16.mxu0 0
    %607 = vmatpush1.bf16.xpose.msra.mxu0 0
    %608 = vmatprep.subr.bf16.mxu0 0
    %609 = vmatpush1.bf16.xpose.msra.mxu0 0
    %610 = vmatprep.mubr.bf16.mxu0 0
    %611 = vmatmul.mubr.bf16.gmra.mrb[0].mxu0 %v567
    %v612 = vpop.f32.mrb[0].mxu0
    %v613 = vadd.f32 %v46, %v612
    %v614 = vpop.f32.mrb[0].mxu0
    %v615 = vpop.f32.mrb[0].mxu0
    %v616 = vadd.f32 %v47, %v615
    %v617 = vpop.f32.mrb[0].mxu0
    %618 = vmatprep.mubr.bf16.mxu0 0
    %619 = vmatmul.mubr.bf16.gmra.mrb[0].mxu0 %v570
    %v620 = vpop.f32.mrb[0].mxu0
    %v621 = vadd.f32 %v48, %v620
    %v622 = vpop.f32.mrb[0].mxu0
    %v623 = vpop.f32.mrb[0].mxu0
    %v624 = vadd.f32 %v49, %v623
    %v625 = vpop.f32.mrb[0].mxu0
    %626 = vdwg.mxu0
    %v627 = vsel %vm226, %v613, -inf
    %628 = vmax.xlane.f32.xlu0 %v627
    %v629 = vpop.xlane.xlu0 %628
    %v630 = vsel %vm226, %v616, -inf
    %631 = vmax.xlane.f32.xlu0 %v630
    %v632 = vpop.xlane.xlu0 %631
    %v633 = vsel %vm226, %v621, -inf
    %634 = vmax.xlane.f32.xlu0 %v633
    %v635 = vpop.xlane.xlu0 %634
    %v636 = vsel %vm226, %v624, -inf
    %637 = vmax.xlane.f32.xlu0 %v636
    %v638 = vpop.xlane.xlu0 %637
    %v639 = vsub.f32 %v613, %v629
    %v640 = vsub.f32 %v616, %v632
    %v641 = vsub.f32 %v621, %v635
    %v642 = vsub.f32 %v624, %v638
    %v643 = vmul.f32 %v639, 1.442695
    %v644 = vpow.pop %v643
    %v645 = vmul.f32 %v640, 1.442695
    %v646 = vpow.pop %v645
    %v647 = vmul.f32 %v641, 1.442695
    %v648 = vpow.pop %v647
    %v649 = vmul.f32 %v642, 1.442695
    %v650 = vpow.pop %v649
    %v651 = vsel %vm226, %v644, 0.0
    %652 = vadd.xlane.f32.xlu0 %v651
    %v653 = vpop.xlane.xlu0 %652
    %v654 = vsel %vm226, %v646, 0.0
    %655 = vadd.xlane.f32.xlu0 %v654
    %v656 = vpop.xlane.xlu0 %655
    %v657 = vsel %vm226, %v648, 0.0
    %658 = vadd.xlane.f32.xlu0 %v657
    %v659 = vpop.xlane.xlu0 %658
    %v660 = vsel %vm226, %v650, 0.0
    %661 = vadd.xlane.f32.xlu0 %v660
    %v662 = vpop.xlane.xlu0 %661
    %v663 = vrcp.pop %v653
    %v664 = vrcp.pop %v656
    %v665 = vrcp.pop %v659
    %v666 = vrcp.pop %v662
    %v667 = vmul.f32 %v644, %v663
    %v668 = vmul.f32 %v646, %v664
    %v669 = vmul.f32 %v648, %v665
    %v670 = vmul.f32 %v650, %v666
    %v671 = vpack.c.bf16 %v668, %v667
    %v672 = vpack.c.bf16 %v670, %v669
    %673 = vrot.lane.b32.xlu0 %v379, 56
    %v674 = vpop.permute.xlu0 %673
    %675 = vrot.lane.b32.xlu0 %v380, 56
    %v676 = vpop.permute.xlu0 %675
    %v680 = vsel %vm226, %v671, 0
    %v683 = vsel %vm226, %v672, 0
    %685 = vmatprep.subr.bf16.mxu0 0
    %686 = vmatpush1.bf16.msra.mxu0 %v674
    %687 = vmatprep.subr.bf16.mxu0 0
    %688 = vmatpush1.bf16.msra.mxu0 %v676
    %689 = vmatprep.subr.bf16.mxu0 0
    %690 = vmatpush1.bf16.msra.mxu0 0
    %691 = vmatprep.subr.bf16.mxu0 0
    %692 = vmatpush1.bf16.msra.mxu0 0
    %693 = vmatprep.subr.bf16.mxu0 0
    %694 = vmatpush1.bf16.msra.mxu0 0
    %695 = vmatprep.subr.bf16.mxu0 0
    %696 = vmatpush1.bf16.msra.mxu0 0
    %697 = vmatprep.subr.bf16.mxu0 0
    %698 = vmatpush1.bf16.msra.mxu0 0
    %699 = vmatprep.subr.bf16.mxu0 0
    %700 = vmatpush1.bf16.msra.mxu0 0
    %701 = vmatprep.subr.bf16.mxu0 0
    %702 = vmatpush1.bf16.msra.mxu0 0
    %703 = vmatprep.subr.bf16.mxu0 0
    %704 = vmatpush1.bf16.msra.mxu0 0
    %705 = vmatprep.subr.bf16.mxu0 0
    %706 = vmatpush1.bf16.msra.mxu0 0
    %707 = vmatprep.subr.bf16.mxu0 0
    %708 = vmatpush1.bf16.msra.mxu0 0
    %709 = vmatprep.subr.bf16.mxu0 0
    %710 = vmatpush1.bf16.msra.mxu0 0
    %711 = vmatprep.subr.bf16.mxu0 0
    %712 = vmatpush1.bf16.msra.mxu0 0
    %713 = vmatprep.subr.bf16.mxu0 0
    %714 = vmatpush1.bf16.msra.mxu0 0
    %715 = vmatprep.subr.bf16.mxu0 0
    %716 = vmatpush1.bf16.msra.mxu0 0
    %717 = vmatprep.mubr.bf16.mxu0 0
    %718 = vmatmul.mubr.bf16.gmra.mrb[0].mxu0 %v680
    %v719 = vpop.f32.mrb[0].mxu0
    %v720 = vadd.f32 0.0, %v719
    %v721 = vpop.f32.mrb[0].mxu0
    %v722 = vpop.f32.mrb[0].mxu0
    %v723 = vadd.f32 0.0, %v722
    %v724 = vpop.f32.mrb[0].mxu0
    %725 = vmatprep.mubr.bf16.mxu0 0
    %726 = vmatmul.mubr.bf16.gmra.mrb[0].mxu0 %v683
    %v727 = vpop.f32.mrb[0].mxu0
    %v728 = vadd.f32 0.0, %v727
    %v729 = vpop.f32.mrb[0].mxu0
    %v730 = vpop.f32.mrb[0].mxu0
    %v731 = vadd.f32 0.0, %v730
    %v732 = vpop.f32.mrb[0].mxu0
    %733 = vdwg.mxu0
    %734 = vrot.lane.b32.xlu0 %v377, 112
    %v735 = vpop.permute.xlu0 %734
    %736 = vrot.lane.b32.xlu0 %v378, 112
    %v737 = vpop.permute.xlu0 %736
    %738 = vrot.lane.b32.xlu0 %v379, 80
    %v739 = vpop.permute.xlu0 %738
    %740 = vrot.lane.b32.xlu0 %v380, 80
    %v741 = vpop.permute.xlu0 %740
    %v743 = vsel %vm387, %v735, 0
    %v746 = vsel %vm387, %v737, 0
    %v749 = vsel %vm387, %v739, 0
    %v752 = vsel %vm387, %v741, 0
    %754 = vmatprep.subr.bf16.mxu0 0
    %755 = vmatpush1.bf16.xpose.msra.mxu0 %v749
    %756 = vmatprep.subr.bf16.mxu0 0
    %757 = vmatpush1.bf16.xpose.msra.mxu0 %v752
    %758 = vmatprep.subr.bf16.mxu0 0
    %759 = vmatpush1.bf16.xpose.msra.mxu0 0
    %760 = vmatprep.subr.bf16.mxu0 0
    %761 = vmatpush1.bf16.xpose.msra.mxu0 0
    %762 = vmatprep.subr.bf16.mxu0 0
    %763 = vmatpush1.bf16.xpose.msra.mxu0 0
    %764 = vmatprep.subr.bf16.mxu0 0
    %765 = vmatpush1.bf16.xpose.msra.mxu0 0
    %766 = vmatprep.subr.bf16.mxu0 0
    %767 = vmatpush1.bf16.xpose.msra.mxu0 0
    %768 = vmatprep.subr.bf16.mxu0 0
    %769 = vmatpush1.bf16.xpose.msra.mxu0 0
    %770 = vmatprep.subr.bf16.mxu0 0
    %771 = vmatpush1.bf16.xpose.msra.mxu0 0
    %772 = vmatprep.subr.bf16.mxu0 0
    %773 = vmatpush1.bf16.xpose.msra.mxu0 0
    %774 = vmatprep.subr.bf16.mxu0 0
    %775 = vmatpush1.bf16.xpose.msra.mxu0 0
    %776 = vmatprep.subr.bf16.mxu0 0
    %777 = vmatpush1.bf16.xpose.msra.mxu0 0
    %778 = vmatprep.subr.bf16.mxu0 0
    %779 = vmatpush1.bf16.xpose.msra.mxu0 0
    %780 = vmatprep.subr.bf16.mxu0 0
    %781 = vmatpush1.bf16.xpose.msra.mxu0 0
    %782 = vmatprep.subr.bf16.mxu0 0
    %783 = vmatpush1.bf16.xpose.msra.mxu0 0
    %784 = vmatprep.subr.bf16.mxu0 0
    %785 = vmatpush1.bf16.xpose.msra.mxu0 0
    %786 = vmatprep.mubr.bf16.mxu0 0
    %787 = vmatmul.mubr.bf16.gmra.mrb[0].mxu0 %v743
    %v788 = vpop.f32.mrb[0].mxu0
    %v789 = vadd.f32 %v46, %v788
    %v790 = vpop.f32.mrb[0].mxu0
    %v791 = vpop.f32.mrb[0].mxu0
    %v792 = vadd.f32 %v47, %v791
    %v793 = vpop.f32.mrb[0].mxu0
    %794 = vmatprep.mubr.bf16.mxu0 0
    %795 = vmatmul.mubr.bf16.gmra.mrb[0].mxu0 %v746
    %v796 = vpop.f32.mrb[0].mxu0
    %v797 = vadd.f32 %v48, %v796
    %v798 = vpop.f32.mrb[0].mxu0
    %v799 = vpop.f32.mrb[0].mxu0
    %v800 = vadd.f32 %v49, %v799
    %v801 = vpop.f32.mrb[0].mxu0
    %802 = vdwg.mxu0
    %v803 = vsel %vm226, %v789, -inf
    %804 = vmax.xlane.f32.xlu0 %v803
    %v805 = vpop.xlane.xlu0 %804
    %v806 = vsel %vm226, %v792, -inf
    %807 = vmax.xlane.f32.xlu0 %v806
    %v808 = vpop.xlane.xlu0 %807
    %v809 = vsel %vm226, %v797, -inf
    %810 = vmax.xlane.f32.xlu0 %v809
    %v811 = vpop.xlane.xlu0 %810
    %v812 = vsel %vm226, %v800, -inf
    %813 = vmax.xlane.f32.xlu0 %v812
    %v814 = vpop.xlane.xlu0 %813
    %v815 = vsub.f32 %v789, %v805
    %v816 = vsub.f32 %v792, %v808
    %v817 = vsub.f32 %v797, %v811
    %v818 = vsub.f32 %v800, %v814
    %v819 = vmul.f32 %v815, 1.442695
    %v820 = vpow.pop %v819
    %v821 = vmul.f32 %v816, 1.442695
    %v822 = vpow.pop %v821
    %v823 = vmul.f32 %v817, 1.442695
    %v824 = vpow.pop %v823
    %v825 = vmul.f32 %v818, 1.442695
    %v826 = vpow.pop %v825
    %v827 = vsel %vm226, %v820, 0.0
    %828 = vadd.xlane.f32.xlu0 %v827
    %v829 = vpop.xlane.xlu0 %828
    %v830 = vsel %vm226, %v822, 0.0
    %831 = vadd.xlane.f32.xlu0 %v830
    %v832 = vpop.xlane.xlu0 %831
    %v833 = vsel %vm226, %v824, 0.0
    %834 = vadd.xlane.f32.xlu0 %v833
    %v835 = vpop.xlane.xlu0 %834
    %v836 = vsel %vm226, %v826, 0.0
    %837 = vadd.xlane.f32.xlu0 %v836
    %v838 = vpop.xlane.xlu0 %837
    %v839 = vrcp.pop %v829
    %v840 = vrcp.pop %v832
    %v841 = vrcp.pop %v835
    %v842 = vrcp.pop %v838
    %v843 = vmul.f32 %v820, %v839
    %v844 = vmul.f32 %v822, %v840
    %v845 = vmul.f32 %v824, %v841
    %v846 = vmul.f32 %v826, %v842
    %v847 = vpack.c.bf16 %v844, %v843
    %v848 = vpack.c.bf16 %v846, %v845
    %849 = vrot.lane.b32.xlu0 %v379, 48
    %v850 = vpop.permute.xlu0 %849
    %851 = vrot.lane.b32.xlu0 %v380, 48
    %v852 = vpop.permute.xlu0 %851
    %v856 = vsel %vm226, %v847, 0
    %v859 = vsel %vm226, %v848, 0
    %861 = vmatprep.subr.bf16.mxu0 0
    %862 = vmatpush1.bf16.msra.mxu0 %v850
    %863 = vmatprep.subr.bf16.mxu0 0
    %864 = vmatpush1.bf16.msra.mxu0 %v852
    %865 = vmatprep.subr.bf16.mxu0 0
    %866 = vmatpush1.bf16.msra.mxu0 0
    %867 = vmatprep.subr.bf16.mxu0 0
    %868 = vmatpush1.bf16.msra.mxu0 0
    %869 = vmatprep.subr.bf16.mxu0 0
    %870 = vmatpush1.bf16.msra.mxu0 0
    %871 = vmatprep.subr.bf16.mxu0 0
    %872 = vmatpush1.bf16.msra.mxu0 0
    %873 = vmatprep.subr.bf16.mxu0 0
    %874 = vmatpush1.bf16.msra.mxu0 0
    %875 = vmatprep.subr.bf16.mxu0 0
    %876 = vmatpush1.bf16.msra.mxu0 0
    %877 = vmatprep.subr.bf16.mxu0 0
    %878 = vmatpush1.bf16.msra.mxu0 0
    %879 = vmatprep.subr.bf16.mxu0 0
    %880 = vmatpush1.bf16.msra.mxu0 0
    %881 = vmatprep.subr.bf16.mxu0 0
    %882 = vmatpush1.bf16.msra.mxu0 0
    %883 = vmatprep.subr.bf16.mxu0 0
    %884 = vmatpush1.bf16.msra.mxu0 0
    %885 = vmatprep.subr.bf16.mxu0 0
    %886 = vmatpush1.bf16.msra.mxu0 0
    %887 = vmatprep.subr.bf16.mxu0 0
    %888 = vmatpush1.bf16.msra.mxu0 0
    %889 = vmatprep.subr.bf16.mxu0 0
    %890 = vmatpush1.bf16.msra.mxu0 0
    %891 = vmatprep.subr.bf16.mxu0 0
    %892 = vmatpush1.bf16.msra.mxu0 0
    %893 = vmatprep.mubr.bf16.mxu0 0
    %894 = vmatmul.mubr.bf16.gmra.mrb[0].mxu0 %v856
    %v895 = vpop.f32.mrb[0].mxu0
    %v896 = vadd.f32 0.0, %v895
    %v897 = vpop.f32.mrb[0].mxu0
    %v898 = vpop.f32.mrb[0].mxu0
    %v899 = vadd.f32 0.0, %v898
    %v900 = vpop.f32.mrb[0].mxu0
    %901 = vmatprep.mubr.bf16.mxu0 0
    %902 = vmatmul.mubr.bf16.gmra.mrb[0].mxu0 %v859
    %v903 = vpop.f32.mrb[0].mxu0
    %v904 = vadd.f32 0.0, %v903
    %v905 = vpop.f32.mrb[0].mxu0
    %v906 = vpop.f32.mrb[0].mxu0
    %v907 = vadd.f32 0.0, %v906
    %v908 = vpop.f32.mrb[0].mxu0
    %909 = vdwg.mxu0
    %910 = vrot.lane.b32.xlu0 %v377, 104
    %v911 = vpop.permute.xlu0 %910
    %912 = vrot.lane.b32.xlu0 %v378, 104
    %v913 = vpop.permute.xlu0 %912
    %914 = vrot.lane.b32.xlu0 %v379, 72
    %v915 = vpop.permute.xlu0 %914
    %916 = vrot.lane.b32.xlu0 %v380, 72
    %v917 = vpop.permute.xlu0 %916
    %v919 = vsel %vm387, %v911, 0
    %v922 = vsel %vm387, %v913, 0
    %v925 = vsel %vm387, %v915, 0
    %v928 = vsel %vm387, %v917, 0
    %930 = vmatprep.subr.bf16.mxu0 0
    %931 = vmatpush1.bf16.xpose.msra.mxu0 %v925
    %932 = vmatprep.subr.bf16.mxu0 0
    %933 = vmatpush1.bf16.xpose.msra.mxu0 %v928
    %934 = vmatprep.subr.bf16.mxu0 0
    %935 = vmatpush1.bf16.xpose.msra.mxu0 0
    %936 = vmatprep.subr.bf16.mxu0 0
    %937 = vmatpush1.bf16.xpose.msra.mxu0 0
    %938 = vmatprep.subr.bf16.mxu0 0
    %939 = vmatpush1.bf16.xpose.msra.mxu0 0
    %940 = vmatprep.subr.bf16.mxu0 0
    %941 = vmatpush1.bf16.xpose.msra.mxu0 0
    %942 = vmatprep.subr.bf16.mxu0 0
    %943 = vmatpush1.bf16.xpose.msra.mxu0 0
    %944 = vmatprep.subr.bf16.mxu0 0
    %945 = vmatpush1.bf16.xpose.msra.mxu0 0
    %946 = vmatprep.subr.bf16.mxu0 0
    %947 = vmatpush1.bf16.xpose.msra.mxu0 0
    %948 = vmatprep.subr.bf16.mxu0 0
    %949 = vmatpush1.bf16.xpose.msra.mxu0 0
    %950 = vmatprep.subr.bf16.mxu0 0
    %951 = vmatpush1.bf16.xpose.msra.mxu0 0
    %952 = vmatprep.subr.bf16.mxu0 0
    %953 = vmatpush1.bf16.xpose.msra.mxu0 0
    %954 = vmatprep.subr.bf16.mxu0 0
    %955 = vmatpush1.bf16.xpose.msra.mxu0 0
    %956 = vmatprep.subr.bf16.mxu0 0
    %957 = vmatpush1.bf16.xpose.msra.mxu0 0
    %958 = vmatprep.subr.bf16.mxu0 0
    %959 = vmatpush1.bf16.xpose.msra.mxu0 0
    %960 = vmatprep.subr.bf16.mxu0 0
    %961 = vmatpush1.bf16.xpose.msra.mxu0 0
    %962 = vmatprep.mubr.bf16.mxu0 0
    %963 = vmatmul.mubr.bf16.gmra.mrb[0].mxu0 %v919
    %v964 = vpop.f32.mrb[0].mxu0
    %v965 = vadd.f32 %v46, %v964
    %v966 = vpop.f32.mrb[0].mxu0
    %v967 = vpop.f32.mrb[0].mxu0
    %v968 = vadd.f32 %v47, %v967
    %v969 = vpop.f32.mrb[0].mxu0
    %970 = vmatprep.mubr.bf16.mxu0 0
    %971 = vmatmul.mubr.bf16.gmra.mrb[0].mxu0 %v922
    %v972 = vpop.f32.mrb[0].mxu0
    %v973 = vadd.f32 %v48, %v972
    %v974 = vpop.f32.mrb[0].mxu0
    %v975 = vpop.f32.mrb[0].mxu0
    %v976 = vadd.f32 %v49, %v975
    %v977 = vpop.f32.mrb[0].mxu0
    %978 = vdwg.mxu0
    %v979 = vsel %vm226, %v965, -inf
    %980 = vmax.xlane.f32.xlu0 %v979
    %v981 = vpop.xlane.xlu0 %980
    %v982 = vsel %vm226, %v968, -inf
    %983 = vmax.xlane.f32.xlu0 %v982
    %v984 = vpop.xlane.xlu0 %983
    %v985 = vsel %vm226, %v973, -inf
    %986 = vmax.xlane.f32.xlu0 %v985
    %v987 = vpop.xlane.xlu0 %986
    %v988 = vsel %vm226, %v976, -inf
    %989 = vmax.xlane.f32.xlu0 %v988
    %v990 = vpop.xlane.xlu0 %989
    %v991 = vsub.f32 %v965, %v981
    %v992 = vsub.f32 %v968, %v984
    %v993 = vsub.f32 %v973, %v987
    %v994 = vsub.f32 %v976, %v990
    %v995 = vmul.f32 %v991, 1.442695
    %v996 = vpow.pop %v995
    %v997 = vmul.f32 %v992, 1.442695
    %v998 = vpow.pop %v997
    %v999 = vmul.f32 %v993, 1.442695
    %v1000 = vpow.pop %v999
    %v1001 = vmul.f32 %v994, 1.442695
    %v1002 = vpow.pop %v1001
    %v1003 = vsel %vm226, %v996, 0.0
    %1004 = vadd.xlane.f32.xlu0 %v1003
    %v1005 = vpop.xlane.xlu0 %1004
    %v1006 = vsel %vm226, %v998, 0.0
    %1007 = vadd.xlane.f32.xlu0 %v1006
    %v1008 = vpop.xlane.xlu0 %1007
    %v1009 = vsel %vm226, %v1000, 0.0
    %1010 = vadd.xlane.f32.xlu0 %v1009
    %v1011 = vpop.xlane.xlu0 %1010
    %v1012 = vsel %vm226, %v1002, 0.0
    %1013 = vadd.xlane.f32.xlu0 %v1012
    %v1014 = vpop.xlane.xlu0 %1013
    %v1015 = vrcp.pop %v1005
    %v1016 = vrcp.pop %v1008
    %v1017 = vrcp.pop %v1011
    %v1018 = vrcp.pop %v1014
    %v1019 = vmul.f32 %v996, %v1015
    %v1020 = vmul.f32 %v998, %v1016
    %v1021 = vmul.f32 %v1000, %v1017
    %v1022 = vmul.f32 %v1002, %v1018
    %v1023 = vpack.c.bf16 %v1020, %v1019
    %v1024 = vpack.c.bf16 %v1022, %v1021
    %1025 = vrot.lane.b32.xlu0 %v379, 40
    %v1026 = vpop.permute.xlu0 %1025
    %1027 = vrot.lane.b32.xlu0 %v380, 40
    %v1028 = vpop.permute.xlu0 %1027
    %v1032 = vsel %vm226, %v1023, 0
    %v1035 = vsel %vm226, %v1024, 0
    %1037 = vmatprep.subr.bf16.mxu0 0
    %1038 = vmatpush1.bf16.msra.mxu0 %v1026
    %1039 = vmatprep.subr.bf16.mxu0 0
    %1040 = vmatpush1.bf16.msra.mxu0 %v1028
    %1041 = vmatprep.subr.bf16.mxu0 0
    %1042 = vmatpush1.bf16.msra.mxu0 0
    %1043 = vmatprep.subr.bf16.mxu0 0
    %1044 = vmatpush1.bf16.msra.mxu0 0
    %1045 = vmatprep.subr.bf16.mxu0 0
    %1046 = vmatpush1.bf16.msra.mxu0 0
    %1047 = vmatprep.subr.bf16.mxu0 0
    %1048 = vmatpush1.bf16.msra.mxu0 0
    %1049 = vmatprep.subr.bf16.mxu0 0
    %1050 = vmatpush1.bf16.msra.mxu0 0
    %1051 = vmatprep.subr.bf16.mxu0 0
    %1052 = vmatpush1.bf16.msra.mxu0 0
    %1053 = vmatprep.subr.bf16.mxu0 0
    %1054 = vmatpush1.bf16.msra.mxu0 0
    %1055 = vmatprep.subr.bf16.mxu0 0
    %1056 = vmatpush1.bf16.msra.mxu0 0
    %1057 = vmatprep.subr.bf16.mxu0 0
    %1058 = vmatpush1.bf16.msra.mxu0 0
    %1059 = vmatprep.subr.bf16.mxu0 0
    %1060 = vmatpush1.bf16.msra.mxu0 0
    %1061 = vmatprep.subr.bf16.mxu0 0
    %1062 = vmatpush1.bf16.msra.mxu0 0
    %1063 = vmatprep.subr.bf16.mxu0 0
    %1064 = vmatpush1.bf16.msra.mxu0 0
    %1065 = vmatprep.subr.bf16.mxu0 0
    %1066 = vmatpush1.bf16.msra.mxu0 0
    %1067 = vmatprep.subr.bf16.mxu0 0
    %1068 = vmatpush1.bf16.msra.mxu0 0
    %1069 = vmatprep.mubr.bf16.mxu0 0
    %1070 = vmatmul.mubr.bf16.gmra.mrb[0].mxu0 %v1032
    %v1071 = vpop.f32.mrb[0].mxu0
    %v1072 = vadd.f32 0.0, %v1071
    %v1073 = vpop.f32.mrb[0].mxu0
    %v1074 = vpop.f32.mrb[0].mxu0
    %v1075 = vadd.f32 0.0, %v1074
    %v1076 = vpop.f32.mrb[0].mxu0
    %1077 = vmatprep.mubr.bf16.mxu0 0
    %1078 = vmatmul.mubr.bf16.gmra.mrb[0].mxu0 %v1035
    %v1079 = vpop.f32.mrb[0].mxu0
    %v1080 = vadd.f32 0.0, %v1079
    %v1081 = vpop.f32.mrb[0].mxu0
    %v1082 = vpop.f32.mrb[0].mxu0
    %v1083 = vadd.f32 0.0, %v1082
    %v1084 = vpop.f32.mrb[0].mxu0
    %1085 = vdwg.mxu0
    %1090 = vrot.lane.b32.xlu0 %v720, 8
    %v1091 = vpop.permute.xlu0 %1090
    %1092 = vrot.lane.b32.xlu0 %v723, 8
    %v1093 = vpop.permute.xlu0 %1092
    %1094 = vrot.lane.b32.xlu0 %v728, 8
    %v1095 = vpop.permute.xlu0 %1094
    %1096 = vrot.lane.b32.xlu0 %v731, 8
    %v1097 = vpop.permute.xlu0 %1096
    %1106 = vrot.lane.b32.xlu0 %v896, 16
    %v1107 = vpop.permute.xlu0 %1106
    %1108 = vrot.lane.b32.xlu0 %v899, 16
    %v1109 = vpop.permute.xlu0 %1108
    %1110 = vrot.lane.b32.xlu0 %v904, 16
    %v1111 = vpop.permute.xlu0 %1110
    %1112 = vrot.lane.b32.xlu0 %v907, 16
    %v1113 = vpop.permute.xlu0 %1112
    %1122 = vrot.lane.b32.xlu0 %v1072, 24
    %v1123 = vpop.permute.xlu0 %1122
    %1124 = vrot.lane.b32.xlu0 %v1075, 24
    %v1125 = vpop.permute.xlu0 %1124
    %1126 = vrot.lane.b32.xlu0 %v1080, 24
    %v1127 = vpop.permute.xlu0 %1126
    %1128 = vrot.lane.b32.xlu0 %v1083, 24
    %v1129 = vpop.permute.xlu0 %1128
    %v1134 = vsel %vm387, %v542, %v1091
    %v1135 = vsel %vm387, %v545, %v1093
    %v1136 = vsel %vm387, %v550, %v1095
    %v1137 = vsel %vm387, %v553, %v1097
    %vm1138 = vcmask 130048
    %v1139 = vsel %vm1138, %v1134, %v1107
    %v1140 = vsel %vm1138, %v1135, %v1109
    %v1141 = vsel %vm1138, %v1136, %v1111
    %v1142 = vsel %vm1138, %v1137, %v1113
    %vm1143 = vcmask 195584
    %v1144 = vsel %vm1143, %v1139, %v1123
    %v1145 = vsel %vm1143, %v1140, %v1125
    %v1146 = vsel %vm1143, %v1141, %v1127
    %v1147 = vsel %vm1143, %v1142, %v1129
    %v1148 = vld [vmem:[%s5] sm:$0xf]
    %v1149 = vld [vmem:[%s5 + $0x4] sm:$0xf]
    %v1150 = vld [vmem:[%s5 + $0x8] sm:$0xf]
    %v1151 = vld [vmem:[%s5 + $0xc] sm:$0xf]
    %v1152 = vpack.c.bf16 %v1145, %v1144
    %v1153 = vpack.c.bf16 %v1147, %v1146
    %v1158 = vunpack.c.l.b16 %v1148
    %v1159 = vunpack.c.l.b16 %v1149
    %v1160 = vunpack.c.l.b16 %v1150
    %v1161 = vunpack.c.l.b16 %v1151
    %v1162 = vpack.c.b16 %v1159, %v1158
    %v1163 = vpack.c.b16 %v1161, %v1160
    %v1167 = vsel %vm226, %v1152, 0
    %v1170 = vsel %vm226, %v1153, 0
    %1172 = vmatprep.subr.bf16.mxu0 0
    %1173 = vmatpush1.bf16.msra.mxu0 %v1162
    %1174 = vmatprep.subr.bf16.mxu0 0
    %1175 = vmatpush1.bf16.msra.mxu0 %v1163
    %1176 = vmatprep.subr.bf16.mxu0 0
    %1177 = vmatpush1.bf16.msra.mxu0 0
    %1178 = vmatprep.subr.bf16.mxu0 0
    %1179 = vmatpush1.bf16.msra.mxu0 0
    %1180 = vmatprep.subr.bf16.mxu0 0
    %1181 = vmatpush1.bf16.msra.mxu0 0
    %1182 = vmatprep.subr.bf16.mxu0 0
    %1183 = vmatpush1.bf16.msra.mxu0 0
    %1184 = vmatprep.subr.bf16.mxu0 0
    %1185 = vmatpush1.bf16.msra.mxu0 0
    %1186 = vmatprep.subr.bf16.mxu0 0
    %1187 = vmatpush1.bf16.msra.mxu0 0
    %1188 = vmatprep.subr.bf16.mxu0 0
    %1189 = vmatpush1.bf16.msra.mxu0 0
    %1190 = vmatprep.subr.bf16.mxu0 0
    %1191 = vmatpush1.bf16.msra.mxu0 0
    %1192 = vmatprep.subr.bf16.mxu0 0
    %1193 = vmatpush1.bf16.msra.mxu0 0
    %1194 = vmatprep.subr.bf16.mxu0 0
    %1195 = vmatpush1.bf16.msra.mxu0 0
    %1196 = vmatprep.subr.bf16.mxu0 0
    %1197 = vmatpush1.bf16.msra.mxu0 0
    %1198 = vmatprep.subr.bf16.mxu0 0
    %1199 = vmatpush1.bf16.msra.mxu0 0
    %1200 = vmatprep.subr.bf16.mxu0 0
    %1201 = vmatpush1.bf16.msra.mxu0 0
    %1202 = vmatprep.subr.bf16.mxu0 0
    %1203 = vmatpush1.bf16.msra.mxu0 0
    %1204 = vmatprep.mubr.bf16.mxu0 0
    %1205 = vmatmul.mubr.bf16.gmra.mrb[0].mxu0 %v1167
    %v1206 = vpop.f32.mrb[0].mxu0
    %v1207 = vadd.f32 0.0, %v1206
    %v1208 = vpop.f32.mrb[0].mxu0
    %v1209 = vpop.f32.mrb[0].mxu0
    %v1210 = vadd.f32 0.0, %v1209
    %v1211 = vpop.f32.mrb[0].mxu0
    %1212 = vmatprep.mubr.bf16.mxu0 0
    %1213 = vmatmul.mubr.bf16.gmra.mrb[0].mxu0 %v1170
    %v1214 = vpop.f32.mrb[0].mxu0
    %v1215 = vadd.f32 0.0, %v1214
    %v1216 = vpop.f32.mrb[0].mxu0
    %v1217 = vpop.f32.mrb[0].mxu0
    %v1218 = vadd.f32 0.0, %v1217
    %v1219 = vpop.f32.mrb[0].mxu0
    %1220 = vdwg.mxu0
    %v1221 = vadd.f32 %v222, %v1207
    %v1222 = vadd.f32 %v223, %v1210
    %v1223 = vadd.f32 %v224, %v1215
    %v1224 = vadd.f32 %v225, %v1218
    %v1225 = vlaneseq
    %v1226 = vshrl.u32 %v1225, 7
    %v1227 = vsub.s32 3, %v1226
    %v1228 = vrot.slane %v43, %v1227
    %v1229 = vadd.f32 %v1221, %v1228
    %v1230 = vadd.f32 %v1222, %v1228
    %v1231 = vadd.f32 %v1223, %v1228
    %v1232 = vadd.f32 %v1224, %v1228
    %v1233 = vsel %vm226, %v1229, 0.0
    %1234 = vadd.xlane.f32.xlu0 %v1233
    %v1235 = vpop.xlane.xlu0 %1234
    %v1236 = vsel %vm226, %v1230, 0.0
    %1237 = vadd.xlane.f32.xlu0 %v1236
    %v1238 = vpop.xlane.xlu0 %1237
    %v1239 = vsel %vm226, %v1231, 0.0
    %1240 = vadd.xlane.f32.xlu0 %v1239
    %v1241 = vpop.xlane.xlu0 %1240
    %v1242 = vsel %vm226, %v1232, 0.0
    %1243 = vadd.xlane.f32.xlu0 %v1242
    %v1244 = vpop.xlane.xlu0 %1243
    %v1245 = vmul.f32 %v1235, %v239
    %v1246 = vmul.f32 %v1238, %v239
    %v1247 = vmul.f32 %v1241, %v239
    %v1248 = vmul.f32 %v1244, %v239
    %v1249 = vsub.f32 %v1229, %v1245
    %v1250 = vsub.f32 %v1230, %v1246
    %v1251 = vsub.f32 %v1231, %v1247
    %v1252 = vsub.f32 %v1232, %v1248
    %v1253 = vmul.f32 %v1249, %v1249
    %v1254 = vmul.f32 %v1250, %v1250
    %v1255 = vmul.f32 %v1251, %v1251
    %v1256 = vmul.f32 %v1252, %v1252
    %v1257 = vsel %vm226, %v1253, 0.0
    %1258 = vadd.xlane.f32.xlu0 %v1257
    %v1259 = vpop.xlane.xlu0 %1258
    %v1260 = vsel %vm226, %v1254, 0.0
    %1261 = vadd.xlane.f32.xlu0 %v1260
    %v1262 = vpop.xlane.xlu0 %1261
    %v1263 = vsel %vm226, %v1255, 0.0
    %1264 = vadd.xlane.f32.xlu0 %v1263
    %v1265 = vpop.xlane.xlu0 %1264
    %v1266 = vsel %vm226, %v1256, 0.0
    %1267 = vadd.xlane.f32.xlu0 %v1266
    %v1268 = vpop.xlane.xlu0 %1267
    %v1269 = vmul.f32 %v1259, %v239
    %v1270 = vmul.f32 %v1262, %v239
    %v1271 = vmul.f32 %v1265, %v239
    %v1272 = vmul.f32 %v1268, %v239
    %v1273 = vadd.f32 %v1269, 1e-06
    %v1274 = vadd.f32 %v1270, 1e-06
    %v1275 = vadd.f32 %v1271, 1e-06
    %v1276 = vadd.f32 %v1272, 1e-06
    %v1277 = vrsqrt.pop %v1273
    %v1278 = vrsqrt.pop %v1274
    %v1279 = vrsqrt.pop %v1275
    %v1280 = vrsqrt.pop %v1276
    %v1281 = vmul.f32 %v1249, %v1277
    %v1282 = vmul.f32 %v1250, %v1278
    %v1283 = vmul.f32 %v1251, %v1279
    %v1284 = vmul.f32 %v1252, %v1280
    %v1285 = vlaneseq
    %v1286 = vshrl.u32 %v1285, 7
    %v1287 = vsub.s32 4, %v1286
    %v1288 = vrot.slane %v43, %v1287
    %v1289 = vmul.f32 %v1281, %v1288
    %v1290 = vmul.f32 %v1282, %v1288
    %v1291 = vmul.f32 %v1283, %v1288
    %v1292 = vmul.f32 %v1284, %v1288
    %v1293 = vlaneseq
    %v1294 = vshrl.u32 %v1293, 7
    %v1295 = vsub.s32 5, %v1294
    %v1296 = vrot.slane %v43, %v1295
    %v1297 = vadd.f32 %v1289, %v1296
    %v1298 = vadd.f32 %v1290, %v1296
    %v1299 = vadd.f32 %v1291, %v1296
    %v1300 = vadd.f32 %v1292, %v1296
    %v1301 = vld [vmem:[%s6] sm:$0xf]
    %v1302 = vld [vmem:[%s6 + $0x4] sm:$0xf]
    %v1303 = vld [vmem:[%s6 + $0x8] sm:$0xf]
    %v1304 = vld [vmem:[%s6 + $0xc] sm:$0xf]
    %v1305 = vpack.c.bf16 %v1298, %v1297
    %v1306 = vpack.c.bf16 %v1300, %v1299
    %v1307 = vlaneseq
    %v1308 = vshrl.u32 %v1307, 7
    %v1309 = vsub.s32 6, %v1308
    %v1310 = vrot.slane %v43, %v1309
    %v1315 = vunpack.c.l.b16 %v1301
    %v1316 = vunpack.c.l.b16 %v1302
    %v1317 = vunpack.c.l.b16 %v1303
    %v1318 = vunpack.c.l.b16 %v1304
    %v1319 = vpack.c.b16 %v1316, %v1315
    %v1320 = vpack.c.b16 %v1318, %v1317
    %v1324 = vsel %vm226, %v1305, 0
    %v1327 = vsel %vm226, %v1306, 0
    %1329 = vmatprep.subr.bf16.mxu0 0
    %1330 = vmatpush1.bf16.msra.mxu0 %v1319
    %1331 = vmatprep.subr.bf16.mxu0 0
    %1332 = vmatpush1.bf16.msra.mxu0 %v1320
    %1333 = vmatprep.subr.bf16.mxu0 0
    %1334 = vmatpush1.bf16.msra.mxu0 0
    %1335 = vmatprep.subr.bf16.mxu0 0
    %1336 = vmatpush1.bf16.msra.mxu0 0
    %1337 = vmatprep.subr.bf16.mxu0 0
    %1338 = vmatpush1.bf16.msra.mxu0 0
    %1339 = vmatprep.subr.bf16.mxu0 0
    %1340 = vmatpush1.bf16.msra.mxu0 0
    %1341 = vmatprep.subr.bf16.mxu0 0
    %1342 = vmatpush1.bf16.msra.mxu0 0
    %1343 = vmatprep.subr.bf16.mxu0 0
    %1344 = vmatpush1.bf16.msra.mxu0 0
    %1345 = vmatprep.subr.bf16.mxu0 0
    %1346 = vmatpush1.bf16.msra.mxu0 0
    %1347 = vmatprep.subr.bf16.mxu0 0
    %1348 = vmatpush1.bf16.msra.mxu0 0
    %1349 = vmatprep.subr.bf16.mxu0 0
    %1350 = vmatpush1.bf16.msra.mxu0 0
    %1351 = vmatprep.subr.bf16.mxu0 0
    %1352 = vmatpush1.bf16.msra.mxu0 0
    %1353 = vmatprep.subr.bf16.mxu0 0
    %1354 = vmatpush1.bf16.msra.mxu0 0
    %1355 = vmatprep.subr.bf16.mxu0 0
    %1356 = vmatpush1.bf16.msra.mxu0 0
    %1357 = vmatprep.subr.bf16.mxu0 0
    %1358 = vmatpush1.bf16.msra.mxu0 0
    %1359 = vmatprep.subr.bf16.mxu0 0
    %1360 = vmatpush1.bf16.msra.mxu0 0
    %1361 = vmatprep.mubr.bf16.mxu0 0
    %1362 = vmatmul.mubr.bf16.gmra.mrb[0].mxu0 %v1324
    %v1363 = vpop.f32.mrb[0].mxu0
    %v1364 = vadd.f32 %v1310, %v1363
    %v1365 = vpop.f32.mrb[0].mxu0
    %v1366 = vpop.f32.mrb[0].mxu0
    %v1367 = vadd.f32 %v1310, %v1366
    %v1368 = vpop.f32.mrb[0].mxu0
    %1369 = vmatprep.mubr.bf16.mxu0 0
    %1370 = vmatmul.mubr.bf16.gmra.mrb[0].mxu0 %v1327
    %v1371 = vpop.f32.mrb[0].mxu0
    %v1372 = vadd.f32 %v1310, %v1371
    %v1373 = vpop.f32.mrb[0].mxu0
    %v1374 = vpop.f32.mrb[0].mxu0
    %v1375 = vadd.f32 %v1310, %v1374
    %v1376 = vpop.f32.mrb[0].mxu0
    %1377 = vdwg.mxu0
    %v1378 = vmul.f32 %v1364, 0.5
    %v1379 = vmul.f32 %v1367, 0.5
    %v1380 = vmul.f32 %v1372, 0.5
    %v1381 = vmul.f32 %v1375, 0.5
    %v1382 = vmul.f32 %v1364, 0.70710677
    %v1383 = vmul.f32 %v1367, 0.70710677
    %v1384 = vmul.f32 %v1372, 0.70710677
    %v1385 = vmul.f32 %v1375, 0.70710677
    %v1386 = verf.f32.pop %v1382
    %v1387 = verf.f32.pop %v1383
    %v1388 = verf.f32.pop %v1384
    %v1389 = verf.f32.pop %v1385
    %v1390 = vadd.f32 %v1386, 1.0
    %v1391 = vadd.f32 %v1387, 1.0
    %v1392 = vadd.f32 %v1388, 1.0
    %v1393 = vadd.f32 %v1389, 1.0
    %v1394 = vmul.f32 %v1378, %v1390
    %v1395 = vmul.f32 %v1379, %v1391
    %v1396 = vmul.f32 %v1380, %v1392
    %v1397 = vmul.f32 %v1381, %v1393
    %v1398 = vld [vmem:[%s7] sm:$0xf]
    %v1399 = vld [vmem:[%s7 + $0x4] sm:$0xf]
    %v1400 = vld [vmem:[%s7 + $0x8] sm:$0xf]
    %v1401 = vld [vmem:[%s7 + $0xc] sm:$0xf]
    %v1402 = vld [vmem:[%s7 + $0x10] sm:$0xf]
    %v1403 = vld [vmem:[%s7 + $0x14] sm:$0xf]
    %v1404 = vld [vmem:[%s7 + $0x18] sm:$0xf]
    %v1405 = vld [vmem:[%s7 + $0x1c] sm:$0xf]
    %v1406 = vld [vmem:[%s7 + $0x20] sm:$0xf]
    %v1407 = vld [vmem:[%s7 + $0x24] sm:$0xf]
    %v1408 = vld [vmem:[%s7 + $0x28] sm:$0xf]
    %v1409 = vld [vmem:[%s7 + $0x2c] sm:$0xf]
    %v1410 = vld [vmem:[%s7 + $0x30] sm:$0xf]
    %v1411 = vld [vmem:[%s7 + $0x34] sm:$0xf]
    %v1412 = vld [vmem:[%s7 + $0x38] sm:$0xf]
    %v1413 = vld [vmem:[%s7 + $0x3c] sm:$0xf]
    %v1414 = vpack.c.bf16 %v1395, %v1394
    %v1415 = vpack.c.bf16 %v1397, %v1396
    %v1432 = vunpack.c.l.b16 %v1398
    %v1433 = vunpack.c.l.b16 %v1399
    %v1434 = vunpack.c.l.b16 %v1400
    %v1435 = vunpack.c.l.b16 %v1401
    %v1436 = vunpack.c.l.b16 %v1402
    %v1437 = vunpack.c.l.b16 %v1403
    %v1438 = vunpack.c.l.b16 %v1404
    %v1439 = vunpack.c.l.b16 %v1405
    %v1440 = vunpack.c.l.b16 %v1406
    %v1441 = vunpack.c.l.b16 %v1407
    %v1442 = vunpack.c.l.b16 %v1408
    %v1443 = vunpack.c.l.b16 %v1409
    %v1444 = vunpack.c.l.b16 %v1410
    %v1445 = vunpack.c.l.b16 %v1411
    %v1446 = vunpack.c.l.b16 %v1412
    %v1447 = vunpack.c.l.b16 %v1413
    %v1448 = vpack.c.b16 %v1433, %v1432
    %v1449 = vpack.c.b16 %v1435, %v1434
    %v1450 = vpack.c.b16 %v1437, %v1436
    %v1451 = vpack.c.b16 %v1439, %v1438
    %v1452 = vpack.c.b16 %v1441, %v1440
    %v1453 = vpack.c.b16 %v1443, %v1442
    %v1454 = vpack.c.b16 %v1445, %v1444
    %v1455 = vpack.c.b16 %v1447, %v1446
    %1464 = vmatprep.subr.bf16.mxu0 0
    %1465 = vmatpush1.bf16.msra.mxu0 %v1448
    %1466 = vmatprep.subr.bf16.mxu0 0
    %1467 = vmatpush1.bf16.msra.mxu0 %v1449
    %1468 = vmatprep.subr.bf16.mxu0 0
    %1469 = vmatpush1.bf16.msra.mxu0 %v1450
    %1470 = vmatprep.subr.bf16.mxu0 0
    %1471 = vmatpush1.bf16.msra.mxu0 %v1451
    %1472 = vmatprep.subr.bf16.mxu0 0
    %1473 = vmatpush1.bf16.msra.mxu0 %v1452
    %1474 = vmatprep.subr.bf16.mxu0 0
    %1475 = vmatpush1.bf16.msra.mxu0 %v1453
    %1476 = vmatprep.subr.bf16.mxu0 0
    %1477 = vmatpush1.bf16.msra.mxu0 %v1454
    %1478 = vmatprep.subr.bf16.mxu0 0
    %1479 = vmatpush1.bf16.msra.mxu0 %v1455
    %1480 = vmatprep.subr.bf16.mxu0 0
    %1481 = vmatpush1.bf16.msra.mxu0 0
    %1482 = vmatprep.subr.bf16.mxu0 0
    %1483 = vmatpush1.bf16.msra.mxu0 0
    %1484 = vmatprep.subr.bf16.mxu0 0
    %1485 = vmatpush1.bf16.msra.mxu0 0
    %1486 = vmatprep.subr.bf16.mxu0 0
    %1487 = vmatpush1.bf16.msra.mxu0 0
    %1488 = vmatprep.subr.bf16.mxu0 0
    %1489 = vmatpush1.bf16.msra.mxu0 0
    %1490 = vmatprep.subr.bf16.mxu0 0
    %1491 = vmatpush1.bf16.msra.mxu0 0
    %1492 = vmatprep.subr.bf16.mxu0 0
    %1493 = vmatpush1.bf16.msra.mxu0 0
    %1494 = vmatprep.subr.bf16.mxu0 0
    %1495 = vmatpush1.bf16.msra.mxu0 0
    %1496 = vmatprep.mubr.bf16.mxu0 0
    %1497 = vmatmul.mubr.bf16.gmra.mrb[0].mxu0 %v1414
    %v1498 = vpop.f32.mrb[0].mxu0
    %v1499 = vadd.f32 0.0, %v1498
    %v1500 = vpop.f32.mrb[0].mxu0
    %v1501 = vpop.f32.mrb[0].mxu0
    %v1502 = vadd.f32 0.0, %v1501
    %v1503 = vpop.f32.mrb[0].mxu0
    %1504 = vmatprep.mubr.bf16.mxu0 0
    %1505 = vmatmul.mubr.bf16.gmra.mrb[0].mxu0 %v1415
    %v1506 = vpop.f32.mrb[0].mxu0
    %v1507 = vadd.f32 0.0, %v1506
    %v1508 = vpop.f32.mrb[0].mxu0
    %v1509 = vpop.f32.mrb[0].mxu0
    %v1510 = vadd.f32 0.0, %v1509
    %v1511 = vpop.f32.mrb[0].mxu0
    %1512 = vdwg.mxu0
    %v1513 = vadd.f32 %v1229, %v1499
    %v1514 = vadd.f32 %v1230, %v1502
    %v1515 = vadd.f32 %v1231, %v1507
    %v1516 = vadd.f32 %v1232, %v1510
    %v1517 = vlaneseq
    %v1518 = vshrl.u32 %v1517, 7
    %v1519 = vsub.s32 7, %v1518
    %v1520 = vrot.slane %v43, %v1519
    %v1521 = vadd.f32 %v1513, %v1520
    %v1522 = vadd.f32 %v1514, %v1520
    %v1523 = vadd.f32 %v1515, %v1520
    %v1524 = vadd.f32 %v1516, %v1520
    %v1525 = vsel %vm226, %v1521, 0.0
    %1526 = vadd.xlane.f32.xlu0 %v1525
    %v1527 = vpop.xlane.xlu0 %1526
    %v1528 = vsel %vm226, %v1522, 0.0
    %1529 = vadd.xlane.f32.xlu0 %v1528
    %v1530 = vpop.xlane.xlu0 %1529
    %v1531 = vsel %vm226, %v1523, 0.0
    %1532 = vadd.xlane.f32.xlu0 %v1531
    %v1533 = vpop.xlane.xlu0 %1532
    %v1534 = vsel %vm226, %v1524, 0.0
    %1535 = vadd.xlane.f32.xlu0 %v1534
    %v1536 = vpop.xlane.xlu0 %1535
    %v1537 = vmul.f32 %v1527, %v239
    %v1538 = vmul.f32 %v1530, %v239
    %v1539 = vmul.f32 %v1533, %v239
    %v1540 = vmul.f32 %v1536, %v239
    %v1541 = vsub.f32 %v1521, %v1537
    %v1542 = vsub.f32 %v1522, %v1538
    %v1543 = vsub.f32 %v1523, %v1539
    %v1544 = vsub.f32 %v1524, %v1540
    %v1545 = vmul.f32 %v1541, %v1541
    %v1546 = vmul.f32 %v1542, %v1542
    %v1547 = vmul.f32 %v1543, %v1543
    %v1548 = vmul.f32 %v1544, %v1544
    %v1549 = vsel %vm226, %v1545, 0.0
    %1550 = vadd.xlane.f32.xlu0 %v1549
    %v1551 = vpop.xlane.xlu0 %1550
    %v1552 = vsel %vm226, %v1546, 0.0
    %1553 = vadd.xlane.f32.xlu0 %v1552
    %v1554 = vpop.xlane.xlu0 %1553
    %v1555 = vsel %vm226, %v1547, 0.0
    %1556 = vadd.xlane.f32.xlu0 %v1555
    %v1557 = vpop.xlane.xlu0 %1556
    %v1558 = vsel %vm226, %v1548, 0.0
    %1559 = vadd.xlane.f32.xlu0 %v1558
    %v1560 = vpop.xlane.xlu0 %1559
    %v1561 = vmul.f32 %v1551, %v239
    %v1562 = vmul.f32 %v1554, %v239
    %v1563 = vmul.f32 %v1557, %v239
    %v1564 = vmul.f32 %v1560, %v239
    %v1565 = vadd.f32 %v1561, 1e-06
    %v1566 = vadd.f32 %v1562, 1e-06
    %v1567 = vadd.f32 %v1563, 1e-06
    %v1568 = vadd.f32 %v1564, 1e-06
    %v1569 = vrsqrt.pop %v1565
    %v1570 = vrsqrt.pop %v1566
    %v1571 = vrsqrt.pop %v1567
    %v1572 = vrsqrt.pop %v1568
    %v1573 = vmul.f32 %v1541, %v1569
    %v1574 = vmul.f32 %v1542, %v1570
    %v1575 = vmul.f32 %v1543, %v1571
    %v1576 = vmul.f32 %v1544, %v1572
    %v1577 = vlaneseq
    %v1578 = vshrl.u32 %v1577, 7
    %v1579 = vsub.s32 0, %v1578
    %v1580 = vrot.slane %v44, %v1579
    %v1581 = vmul.f32 %v1573, %v1580
    %v1582 = vmul.f32 %v1574, %v1580
    %v1583 = vmul.f32 %v1575, %v1580
    %v1584 = vmul.f32 %v1576, %v1580
    %v1585 = vlaneseq
    %v1586 = vshrl.u32 %v1585, 7
    %v1587 = vsub.s32 1, %v1586
    %v1588 = vrot.slane %v44, %v1587
    %v1589 = vadd.f32 %v1581, %v1588
    %v1590 = vadd.f32 %v1582, %v1588
    %v1591 = vadd.f32 %v1583, %v1588
    %v1592 = vadd.f32 %v1584, %v1588
    %s1593 = scalar_lea.vmem %s4, 16
    %v1594 = vld [vmem:[%s1593] sm:$0xf]
    %v1595 = vld [vmem:[%s1593 + $0x4] sm:$0xf]
    %v1596 = vld [vmem:[%s1593 + $0x8] sm:$0xf]
    %v1597 = vld [vmem:[%s1593 + $0xc] sm:$0xf]
    %v1598 = vpack.c.bf16 %v1590, %v1589
    %v1599 = vpack.c.bf16 %v1592, %v1591
    %v1600 = vlaneseq
    %v1601 = vshrl.u32 %v1600, 7
    %v1602 = vsub.s32 2, %v1601
    %v1603 = vrot.slane %v44, %v1602
    %v1608 = vunpack.c.l.b16 %v1594
    %v1609 = vunpack.c.l.b16 %v1595
    %v1610 = vunpack.c.l.b16 %v1596
    %v1611 = vunpack.c.l.b16 %v1597
    %v1612 = vpack.c.b16 %v1609, %v1608
    %v1613 = vpack.c.b16 %v1611, %v1610
    %v1617 = vsel %vm226, %v1598, 0
    %v1620 = vsel %vm226, %v1599, 0
    %1622 = vmatprep.subr.bf16.mxu0 0
    %1623 = vmatpush1.bf16.msra.mxu0 %v1612
    %1624 = vmatprep.subr.bf16.mxu0 0
    %1625 = vmatpush1.bf16.msra.mxu0 %v1613
    %1626 = vmatprep.subr.bf16.mxu0 0
    %1627 = vmatpush1.bf16.msra.mxu0 0
    %1628 = vmatprep.subr.bf16.mxu0 0
    %1629 = vmatpush1.bf16.msra.mxu0 0
    %1630 = vmatprep.subr.bf16.mxu0 0
    %1631 = vmatpush1.bf16.msra.mxu0 0
    %1632 = vmatprep.subr.bf16.mxu0 0
    %1633 = vmatpush1.bf16.msra.mxu0 0
    %1634 = vmatprep.subr.bf16.mxu0 0
    %1635 = vmatpush1.bf16.msra.mxu0 0
    %1636 = vmatprep.subr.bf16.mxu0 0
    %1637 = vmatpush1.bf16.msra.mxu0 0
    %1638 = vmatprep.subr.bf16.mxu0 0
    %1639 = vmatpush1.bf16.msra.mxu0 0
    %1640 = vmatprep.subr.bf16.mxu0 0
    %1641 = vmatpush1.bf16.msra.mxu0 0
    %1642 = vmatprep.subr.bf16.mxu0 0
    %1643 = vmatpush1.bf16.msra.mxu0 0
    %1644 = vmatprep.subr.bf16.mxu0 0
    %1645 = vmatpush1.bf16.msra.mxu0 0
    %1646 = vmatprep.subr.bf16.mxu0 0
    %1647 = vmatpush1.bf16.msra.mxu0 0
    %1648 = vmatprep.subr.bf16.mxu0 0
    %1649 = vmatpush1.bf16.msra.mxu0 0
    %1650 = vmatprep.subr.bf16.mxu0 0
    %1651 = vmatpush1.bf16.msra.mxu0 0
    %1652 = vmatprep.subr.bf16.mxu0 0
    %1653 = vmatpush1.bf16.msra.mxu0 0
    %1654 = vmatprep.mubr.bf16.mxu0 0
    %1655 = vmatmul.mubr.bf16.gmra.mrb[0].mxu0 %v1617
    %v1656 = vpop.f32.mrb[0].mxu0
    %v1657 = vadd.f32 %v1603, %v1656
    %v1658 = vpop.f32.mrb[0].mxu0
    %v1659 = vpop.f32.mrb[0].mxu0
    %v1660 = vadd.f32 %v1603, %v1659
    %v1661 = vpop.f32.mrb[0].mxu0
    %1662 = vmatprep.mubr.bf16.mxu0 0
    %1663 = vmatmul.mubr.bf16.gmra.mrb[0].mxu0 %v1620
    %v1664 = vpop.f32.mrb[0].mxu0
    %v1665 = vadd.f32 %v1603, %v1664
    %v1666 = vpop.f32.mrb[0].mxu0
    %v1667 = vpop.f32.mrb[0].mxu0
    %v1668 = vadd.f32 %v1603, %v1667
    %v1669 = vpop.f32.mrb[0].mxu0
    %1670 = vdwg.mxu0
    %v1671 = vmul.f32 %v1657, 0.35355338
    %v1672 = vmul.f32 %v1660, 0.35355338
    %v1673 = vmul.f32 %v1665, 0.35355338
    %v1674 = vmul.f32 %v1668, 0.35355338
    %v1675 = vpack.c.bf16 %v1672, %v1671
    %v1676 = vpack.c.bf16 %v1674, %v1673
    %v1677 = vpack.c.bf16 %v1660, %v1657
    %v1678 = vpack.c.bf16 %v1668, %v1665
    %1681 = vrot.lane.b32.xlu0 %v1677, 96
    %v1682 = vpop.permute.xlu0 %1681
    %1683 = vrot.lane.b32.xlu0 %v1678, 96
    %v1684 = vpop.permute.xlu0 %1683
    %v1686 = vsel %vm387, %v1675, 0
    %v1689 = vsel %vm387, %v1676, 0
    %v1692 = vsel %vm387, %v1682, 0
    %v1695 = vsel %vm387, %v1684, 0
    %1697 = vmatprep.subr.bf16.mxu0 0
    %1698 = vmatpush1.bf16.xpose.msra.mxu0 %v1692
    %1699 = vmatprep.subr.bf16.mxu0 0
    %1700 = vmatpush1.bf16.xpose.msra.mxu0 %v1695
    %1701 = vmatprep.subr.bf16.mxu0 0
    %1702 = vmatpush1.bf16.xpose.msra.mxu0 0
    %1703 = vmatprep.subr.bf16.mxu0 0
    %1704 = vmatpush1.bf16.xpose.msra.mxu0 0
    %1705 = vmatprep.subr.bf16.mxu0 0
    %1706 = vmatpush1.bf16.xpose.msra.mxu0 0
    %1707 = vmatprep.subr.bf16.mxu0 0
    %1708 = vmatpush1.bf16.xpose.msra.mxu0 0
    %1709 = vmatprep.subr.bf16.mxu0 0
    %1710 = vmatpush1.bf16.xpose.msra.mxu0 0
    %1711 = vmatprep.subr.bf16.mxu0 0
    %1712 = vmatpush1.bf16.xpose.msra.mxu0 0
    %1713 = vmatprep.subr.bf16.mxu0 0
    %1714 = vmatpush1.bf16.xpose.msra.mxu0 0
    %1715 = vmatprep.subr.bf16.mxu0 0
    %1716 = vmatpush1.bf16.xpose.msra.mxu0 0
    %1717 = vmatprep.subr.bf16.mxu0 0
    %1718 = vmatpush1.bf16.xpose.msra.mxu0 0
    %1719 = vmatprep.subr.bf16.mxu0 0
    %1720 = vmatpush1.bf16.xpose.msra.mxu0 0
    %1721 = vmatprep.subr.bf16.mxu0 0
    %1722 = vmatpush1.bf16.xpose.msra.mxu0 0
    %1723 = vmatprep.subr.bf16.mxu0 0
    %1724 = vmatpush1.bf16.xpose.msra.mxu0 0
    %1725 = vmatprep.subr.bf16.mxu0 0
    %1726 = vmatpush1.bf16.xpose.msra.mxu0 0
    %1727 = vmatprep.subr.bf16.mxu0 0
    %1728 = vmatpush1.bf16.xpose.msra.mxu0 0
    %1729 = vmatprep.mubr.bf16.mxu0 0
    %1730 = vmatmul.mubr.bf16.gmra.mrb[0].mxu0 %v1686
    %v1731 = vpop.f32.mrb[0].mxu0
    %v1732 = vadd.f32 %v46, %v1731
    %v1733 = vpop.f32.mrb[0].mxu0
    %v1734 = vpop.f32.mrb[0].mxu0
    %v1735 = vadd.f32 %v47, %v1734
    %v1736 = vpop.f32.mrb[0].mxu0
    %1737 = vmatprep.mubr.bf16.mxu0 0
    %1738 = vmatmul.mubr.bf16.gmra.mrb[0].mxu0 %v1689
    %v1739 = vpop.f32.mrb[0].mxu0
    %v1740 = vadd.f32 %v48, %v1739
    %v1741 = vpop.f32.mrb[0].mxu0
    %v1742 = vpop.f32.mrb[0].mxu0
    %v1743 = vadd.f32 %v49, %v1742
    %v1744 = vpop.f32.mrb[0].mxu0
    %1745 = vdwg.mxu0
    %v1746 = vsel %vm226, %v1732, -inf
    %1747 = vmax.xlane.f32.xlu0 %v1746
    %v1748 = vpop.xlane.xlu0 %1747
    %v1749 = vsel %vm226, %v1735, -inf
    %1750 = vmax.xlane.f32.xlu0 %v1749
    %v1751 = vpop.xlane.xlu0 %1750
    %v1752 = vsel %vm226, %v1740, -inf
    %1753 = vmax.xlane.f32.xlu0 %v1752
    %v1754 = vpop.xlane.xlu0 %1753
    %v1755 = vsel %vm226, %v1743, -inf
    %1756 = vmax.xlane.f32.xlu0 %v1755
    %v1757 = vpop.xlane.xlu0 %1756
    %v1758 = vsub.f32 %v1732, %v1748
    %v1759 = vsub.f32 %v1735, %v1751
    %v1760 = vsub.f32 %v1740, %v1754
    %v1761 = vsub.f32 %v1743, %v1757
    %v1762 = vmul.f32 %v1758, 1.442695
    %v1763 = vpow.pop %v1762
    %v1764 = vmul.f32 %v1759, 1.442695
    %v1765 = vpow.pop %v1764
    %v1766 = vmul.f32 %v1760, 1.442695
    %v1767 = vpow.pop %v1766
    %v1768 = vmul.f32 %v1761, 1.442695
    %v1769 = vpow.pop %v1768
    %v1770 = vsel %vm226, %v1763, 0.0
    %1771 = vadd.xlane.f32.xlu0 %v1770
    %v1772 = vpop.xlane.xlu0 %1771
    %v1773 = vsel %vm226, %v1765, 0.0
    %1774 = vadd.xlane.f32.xlu0 %v1773
    %v1775 = vpop.xlane.xlu0 %1774
    %v1776 = vsel %vm226, %v1767, 0.0
    %1777 = vadd.xlane.f32.xlu0 %v1776
    %v1778 = vpop.xlane.xlu0 %1777
    %v1779 = vsel %vm226, %v1769, 0.0
    %1780 = vadd.xlane.f32.xlu0 %v1779
    %v1781 = vpop.xlane.xlu0 %1780
    %v1782 = vrcp.pop %v1772
    %v1783 = vrcp.pop %v1775
    %v1784 = vrcp.pop %v1778
    %v1785 = vrcp.pop %v1781
    %v1786 = vmul.f32 %v1763, %v1782
    %v1787 = vmul.f32 %v1765, %v1783
    %v1788 = vmul.f32 %v1767, %v1784
    %v1789 = vmul.f32 %v1769, %v1785
    %v1790 = vpack.c.bf16 %v1787, %v1786
    %v1791 = vpack.c.bf16 %v1789, %v1788
    %1792 = vrot.lane.b32.xlu0 %v1677, 64
    %v1793 = vpop.permute.xlu0 %1792
    %1794 = vrot.lane.b32.xlu0 %v1678, 64
    %v1795 = vpop.permute.xlu0 %1794
    %v1799 = vsel %vm226, %v1790, 0
    %v1802 = vsel %vm226, %v1791, 0
    %1804 = vmatprep.subr.bf16.mxu0 0
    %1805 = vmatpush1.bf16.msra.mxu0 %v1793
    %1806 = vmatprep.subr.bf16.mxu0 0
    %1807 = vmatpush1.bf16.msra.mxu0 %v1795
    %1808 = vmatprep.subr.bf16.mxu0 0
    %1809 = vmatpush1.bf16.msra.mxu0 0
    %1810 = vmatprep.subr.bf16.mxu0 0
    %1811 = vmatpush1.bf16.msra.mxu0 0
    %1812 = vmatprep.subr.bf16.mxu0 0
    %1813 = vmatpush1.bf16.msra.mxu0 0
    %1814 = vmatprep.subr.bf16.mxu0 0
    %1815 = vmatpush1.bf16.msra.mxu0 0
    %1816 = vmatprep.subr.bf16.mxu0 0
    %1817 = vmatpush1.bf16.msra.mxu0 0
    %1818 = vmatprep.subr.bf16.mxu0 0
    %1819 = vmatpush1.bf16.msra.mxu0 0
    %1820 = vmatprep.subr.bf16.mxu0 0
    %1821 = vmatpush1.bf16.msra.mxu0 0
    %1822 = vmatprep.subr.bf16.mxu0 0
    %1823 = vmatpush1.bf16.msra.mxu0 0
    %1824 = vmatprep.subr.bf16.mxu0 0
    %1825 = vmatpush1.bf16.msra.mxu0 0
    %1826 = vmatprep.subr.bf16.mxu0 0
    %1827 = vmatpush1.bf16.msra.mxu0 0
    %1828 = vmatprep.subr.bf16.mxu0 0
    %1829 = vmatpush1.bf16.msra.mxu0 0
    %1830 = vmatprep.subr.bf16.mxu0 0
    %1831 = vmatpush1.bf16.msra.mxu0 0
    %1832 = vmatprep.subr.bf16.mxu0 0
    %1833 = vmatpush1.bf16.msra.mxu0 0
    %1834 = vmatprep.subr.bf16.mxu0 0
    %1835 = vmatpush1.bf16.msra.mxu0 0
    %1836 = vmatprep.mubr.bf16.mxu0 0
    %1837 = vmatmul.mubr.bf16.gmra.mrb[0].mxu0 %v1799
    %v1838 = vpop.f32.mrb[0].mxu0
    %v1839 = vadd.f32 0.0, %v1838
    %v1840 = vpop.f32.mrb[0].mxu0
    %v1841 = vpop.f32.mrb[0].mxu0
    %v1842 = vadd.f32 0.0, %v1841
    %v1843 = vpop.f32.mrb[0].mxu0
    %1844 = vmatprep.mubr.bf16.mxu0 0
    %1845 = vmatmul.mubr.bf16.gmra.mrb[0].mxu0 %v1802
    %v1846 = vpop.f32.mrb[0].mxu0
    %v1847 = vadd.f32 0.0, %v1846
    %v1848 = vpop.f32.mrb[0].mxu0
    %v1849 = vpop.f32.mrb[0].mxu0
    %v1850 = vadd.f32 0.0, %v1849
    %v1851 = vpop.f32.mrb[0].mxu0
    %1852 = vdwg.mxu0
    %1855 = vrot.lane.b32.xlu0 %v1675, 120
    %v1856 = vpop.permute.xlu0 %1855
    %1857 = vrot.lane.b32.xlu0 %v1676, 120
    %v1858 = vpop.permute.xlu0 %1857
    %1859 = vrot.lane.b32.xlu0 %v1677, 88
    %v1860 = vpop.permute.xlu0 %1859
    %1861 = vrot.lane.b32.xlu0 %v1678, 88
    %v1862 = vpop.permute.xlu0 %1861
    %v1864 = vsel %vm387, %v1856, 0
    %v1867 = vsel %vm387, %v1858, 0
    %v1870 = vsel %vm387, %v1860, 0
    %v1873 = vsel %vm387, %v1862, 0
    %1875 = vmatprep.subr.bf16.mxu0 0
    %1876 = vmatpush1.bf16.xpose.msra.mxu0 %v1870
    %1877 = vmatprep.subr.bf16.mxu0 0
    %1878 = vmatpush1.bf16.xpose.msra.mxu0 %v1873
    %1879 = vmatprep.subr.bf16.mxu0 0
    %1880 = vmatpush1.bf16.xpose.msra.mxu0 0
    %1881 = vmatprep.subr.bf16.mxu0 0
    %1882 = vmatpush1.bf16.xpose.msra.mxu0 0
    %1883 = vmatprep.subr.bf16.mxu0 0
    %1884 = vmatpush1.bf16.xpose.msra.mxu0 0
    %1885 = vmatprep.subr.bf16.mxu0 0
    %1886 = vmatpush1.bf16.xpose.msra.mxu0 0
    %1887 = vmatprep.subr.bf16.mxu0 0
    %1888 = vmatpush1.bf16.xpose.msra.mxu0 0
    %1889 = vmatprep.subr.bf16.mxu0 0
    %1890 = vmatpush1.bf16.xpose.msra.mxu0 0
    %1891 = vmatprep.subr.bf16.mxu0 0
    %1892 = vmatpush1.bf16.xpose.msra.mxu0 0
    %1893 = vmatprep.subr.bf16.mxu0 0
    %1894 = vmatpush1.bf16.xpose.msra.mxu0 0
    %1895 = vmatprep.subr.bf16.mxu0 0
    %1896 = vmatpush1.bf16.xpose.msra.mxu0 0
    %1897 = vmatprep.subr.bf16.mxu0 0
    %1898 = vmatpush1.bf16.xpose.msra.mxu0 0
    %1899 = vmatprep.subr.bf16.mxu0 0
    %1900 = vmatpush1.bf16.xpose.msra.mxu0 0
    %1901 = vmatprep.subr.bf16.mxu0 0
    %1902 = vmatpush1.bf16.xpose.msra.mxu0 0
    %1903 = vmatprep.subr.bf16.mxu0 0
    %1904 = vmatpush1.bf16.xpose.msra.mxu0 0
    %1905 = vmatprep.subr.bf16.mxu0 0
    %1906 = vmatpush1.bf16.xpose.msra.mxu0 0
    %1907 = vmatprep.mubr.bf16.mxu0 0
    %1908 = vmatmul.mubr.bf16.gmra.mrb[0].mxu0 %v1864
    %v1909 = vpop.f32.mrb[0].mxu0
    %v1910 = vadd.f32 %v46, %v1909
    %v1911 = vpop.f32.mrb[0].mxu0
    %v1912 = vpop.f32.mrb[0].mxu0
    %v1913 = vadd.f32 %v47, %v1912
    %v1914 = vpop.f32.mrb[0].mxu0
    %1915 = vmatprep.mubr.bf16.mxu0 0
    %1916 = vmatmul.mubr.bf16.gmra.mrb[0].mxu0 %v1867
    %v1917 = vpop.f32.mrb[0].mxu0
    %v1918 = vadd.f32 %v48, %v1917
    %v1919 = vpop.f32.mrb[0].mxu0
    %v1920 = vpop.f32.mrb[0].mxu0
    %v1921 = vadd.f32 %v49, %v1920
    %v1922 = vpop.f32.mrb[0].mxu0
    %1923 = vdwg.mxu0
    %v1924 = vsel %vm226, %v1910, -inf
    %1925 = vmax.xlane.f32.xlu0 %v1924
    %v1926 = vpop.xlane.xlu0 %1925
    %v1927 = vsel %vm226, %v1913, -inf
    %1928 = vmax.xlane.f32.xlu0 %v1927
    %v1929 = vpop.xlane.xlu0 %1928
    %v1930 = vsel %vm226, %v1918, -inf
    %1931 = vmax.xlane.f32.xlu0 %v1930
    %v1932 = vpop.xlane.xlu0 %1931
    %v1933 = vsel %vm226, %v1921, -inf
    %1934 = vmax.xlane.f32.xlu0 %v1933
    %v1935 = vpop.xlane.xlu0 %1934
    %v1936 = vsub.f32 %v1910, %v1926
    %v1937 = vsub.f32 %v1913, %v1929
    %v1938 = vsub.f32 %v1918, %v1932
    %v1939 = vsub.f32 %v1921, %v1935
    %v1940 = vmul.f32 %v1936, 1.442695
    %v1941 = vpow.pop %v1940
    %v1942 = vmul.f32 %v1937, 1.442695
    %v1943 = vpow.pop %v1942
    %v1944 = vmul.f32 %v1938, 1.442695
    %v1945 = vpow.pop %v1944
    %v1946 = vmul.f32 %v1939, 1.442695
    %v1947 = vpow.pop %v1946
    %v1948 = vsel %vm226, %v1941, 0.0
    %1949 = vadd.xlane.f32.xlu0 %v1948
    %v1950 = vpop.xlane.xlu0 %1949
    %v1951 = vsel %vm226, %v1943, 0.0
    %1952 = vadd.xlane.f32.xlu0 %v1951
    %v1953 = vpop.xlane.xlu0 %1952
    %v1954 = vsel %vm226, %v1945, 0.0
    %1955 = vadd.xlane.f32.xlu0 %v1954
    %v1956 = vpop.xlane.xlu0 %1955
    %v1957 = vsel %vm226, %v1947, 0.0
    %1958 = vadd.xlane.f32.xlu0 %v1957
    %v1959 = vpop.xlane.xlu0 %1958
    %v1960 = vrcp.pop %v1950
    %v1961 = vrcp.pop %v1953
    %v1962 = vrcp.pop %v1956
    %v1963 = vrcp.pop %v1959
    %v1964 = vmul.f32 %v1941, %v1960
    %v1965 = vmul.f32 %v1943, %v1961
    %v1966 = vmul.f32 %v1945, %v1962
    %v1967 = vmul.f32 %v1947, %v1963
    %v1968 = vpack.c.bf16 %v1965, %v1964
    %v1969 = vpack.c.bf16 %v1967, %v1966
    %1970 = vrot.lane.b32.xlu0 %v1677, 56
    %v1971 = vpop.permute.xlu0 %1970
    %1972 = vrot.lane.b32.xlu0 %v1678, 56
    %v1973 = vpop.permute.xlu0 %1972
    %v1977 = vsel %vm226, %v1968, 0
    %v1980 = vsel %vm226, %v1969, 0
    %1982 = vmatprep.subr.bf16.mxu0 0
    %1983 = vmatpush1.bf16.msra.mxu0 %v1971
    %1984 = vmatprep.subr.bf16.mxu0 0
    %1985 = vmatpush1.bf16.msra.mxu0 %v1973
    %1986 = vmatprep.subr.bf16.mxu0 0
    %1987 = vmatpush1.bf16.msra.mxu0 0
    %1988 = vmatprep.subr.bf16.mxu0 0
    %1989 = vmatpush1.bf16.msra.mxu0 0
    %1990 = vmatprep.subr.bf16.mxu0 0
    %1991 = vmatpush1.bf16.msra.mxu0 0
    %1992 = vmatprep.subr.bf16.mxu0 0
    %1993 = vmatpush1.bf16.msra.mxu0 0
    %1994 = vmatprep.subr.bf16.mxu0 0
    %1995 = vmatpush1.bf16.msra.mxu0 0
    %1996 = vmatprep.subr.bf16.mxu0 0
    %1997 = vmatpush1.bf16.msra.mxu0 0
    %1998 = vmatprep.subr.bf16.mxu0 0
    %1999 = vmatpush1.bf16.msra.mxu0 0
    %2000 = vmatprep.subr.bf16.mxu0 0
    %2001 = vmatpush1.bf16.msra.mxu0 0
    %2002 = vmatprep.subr.bf16.mxu0 0
    %2003 = vmatpush1.bf16.msra.mxu0 0
    %2004 = vmatprep.subr.bf16.mxu0 0
    %2005 = vmatpush1.bf16.msra.mxu0 0
    %2006 = vmatprep.subr.bf16.mxu0 0
    %2007 = vmatpush1.bf16.msra.mxu0 0
    %2008 = vmatprep.subr.bf16.mxu0 0
    %2009 = vmatpush1.bf16.msra.mxu0 0
    %2010 = vmatprep.subr.bf16.mxu0 0
    %2011 = vmatpush1.bf16.msra.mxu0 0
    %2012 = vmatprep.subr.bf16.mxu0 0
    %2013 = vmatpush1.bf16.msra.mxu0 0
    %2014 = vmatprep.mubr.bf16.mxu0 0
    %2015 = vmatmul.mubr.bf16.gmra.mrb[0].mxu0 %v1977
    %v2016 = vpop.f32.mrb[0].mxu0
    %v2017 = vadd.f32 0.0, %v2016
    %v2018 = vpop.f32.mrb[0].mxu0
    %v2019 = vpop.f32.mrb[0].mxu0
    %v2020 = vadd.f32 0.0, %v2019
    %v2021 = vpop.f32.mrb[0].mxu0
    %2022 = vmatprep.mubr.bf16.mxu0 0
    %2023 = vmatmul.mubr.bf16.gmra.mrb[0].mxu0 %v1980
    %v2024 = vpop.f32.mrb[0].mxu0
    %v2025 = vadd.f32 0.0, %v2024
    %v2026 = vpop.f32.mrb[0].mxu0
    %v2027 = vpop.f32.mrb[0].mxu0
    %v2028 = vadd.f32 0.0, %v2027
    %v2029 = vpop.f32.mrb[0].mxu0
    %2030 = vdwg.mxu0
    %2031 = vrot.lane.b32.xlu0 %v1675, 112
    %v2032 = vpop.permute.xlu0 %2031
    %2033 = vrot.lane.b32.xlu0 %v1676, 112
    %v2034 = vpop.permute.xlu0 %2033
    %2035 = vrot.lane.b32.xlu0 %v1677, 80
    %v2036 = vpop.permute.xlu0 %2035
    %2037 = vrot.lane.b32.xlu0 %v1678, 80
    %v2038 = vpop.permute.xlu0 %2037
    %v2040 = vsel %vm387, %v2032, 0
    %v2043 = vsel %vm387, %v2034, 0
    %v2046 = vsel %vm387, %v2036, 0
    %v2049 = vsel %vm387, %v2038, 0
    %2051 = vmatprep.subr.bf16.mxu0 0
    %2052 = vmatpush1.bf16.xpose.msra.mxu0 %v2046
    %2053 = vmatprep.subr.bf16.mxu0 0
    %2054 = vmatpush1.bf16.xpose.msra.mxu0 %v2049
    %2055 = vmatprep.subr.bf16.mxu0 0
    %2056 = vmatpush1.bf16.xpose.msra.mxu0 0
    %2057 = vmatprep.subr.bf16.mxu0 0
    %2058 = vmatpush1.bf16.xpose.msra.mxu0 0
    %2059 = vmatprep.subr.bf16.mxu0 0
    %2060 = vmatpush1.bf16.xpose.msra.mxu0 0
    %2061 = vmatprep.subr.bf16.mxu0 0
    %2062 = vmatpush1.bf16.xpose.msra.mxu0 0
    %2063 = vmatprep.subr.bf16.mxu0 0
    %2064 = vmatpush1.bf16.xpose.msra.mxu0 0
    %2065 = vmatprep.subr.bf16.mxu0 0
    %2066 = vmatpush1.bf16.xpose.msra.mxu0 0
    %2067 = vmatprep.subr.bf16.mxu0 0
    %2068 = vmatpush1.bf16.xpose.msra.mxu0 0
    %2069 = vmatprep.subr.bf16.mxu0 0
    %2070 = vmatpush1.bf16.xpose.msra.mxu0 0
    %2071 = vmatprep.subr.bf16.mxu0 0
    %2072 = vmatpush1.bf16.xpose.msra.mxu0 0
    %2073 = vmatprep.subr.bf16.mxu0 0
    %2074 = vmatpush1.bf16.xpose.msra.mxu0 0
    %2075 = vmatprep.subr.bf16.mxu0 0
    %2076 = vmatpush1.bf16.xpose.msra.mxu0 0
    %2077 = vmatprep.subr.bf16.mxu0 0
    %2078 = vmatpush1.bf16.xpose.msra.mxu0 0
    %2079 = vmatprep.subr.bf16.mxu0 0
    %2080 = vmatpush1.bf16.xpose.msra.mxu0 0
    %2081 = vmatprep.subr.bf16.mxu0 0
    %2082 = vmatpush1.bf16.xpose.msra.mxu0 0
    %2083 = vmatprep.mubr.bf16.mxu0 0
    %2084 = vmatmul.mubr.bf16.gmra.mrb[0].mxu0 %v2040
    %v2085 = vpop.f32.mrb[0].mxu0
    %v2086 = vadd.f32 %v46, %v2085
    %v2087 = vpop.f32.mrb[0].mxu0
    %v2088 = vpop.f32.mrb[0].mxu0
    %v2089 = vadd.f32 %v47, %v2088
    %v2090 = vpop.f32.mrb[0].mxu0
    %2091 = vmatprep.mubr.bf16.mxu0 0
    %2092 = vmatmul.mubr.bf16.gmra.mrb[0].mxu0 %v2043
    %v2093 = vpop.f32.mrb[0].mxu0
    %v2094 = vadd.f32 %v48, %v2093
    %v2095 = vpop.f32.mrb[0].mxu0
    %v2096 = vpop.f32.mrb[0].mxu0
    %v2097 = vadd.f32 %v49, %v2096
    %v2098 = vpop.f32.mrb[0].mxu0
    %2099 = vdwg.mxu0
    %v2100 = vsel %vm226, %v2086, -inf
    %2101 = vmax.xlane.f32.xlu0 %v2100
    %v2102 = vpop.xlane.xlu0 %2101
    %v2103 = vsel %vm226, %v2089, -inf
    %2104 = vmax.xlane.f32.xlu0 %v2103
    %v2105 = vpop.xlane.xlu0 %2104
    %v2106 = vsel %vm226, %v2094, -inf
    %2107 = vmax.xlane.f32.xlu0 %v2106
    %v2108 = vpop.xlane.xlu0 %2107
    %v2109 = vsel %vm226, %v2097, -inf
    %2110 = vmax.xlane.f32.xlu0 %v2109
    %v2111 = vpop.xlane.xlu0 %2110
    %v2112 = vsub.f32 %v2086, %v2102
    %v2113 = vsub.f32 %v2089, %v2105
    %v2114 = vsub.f32 %v2094, %v2108
    %v2115 = vsub.f32 %v2097, %v2111
    %v2116 = vmul.f32 %v2112, 1.442695
    %v2117 = vpow.pop %v2116
    %v2118 = vmul.f32 %v2113, 1.442695
    %v2119 = vpow.pop %v2118
    %v2120 = vmul.f32 %v2114, 1.442695
    %v2121 = vpow.pop %v2120
    %v2122 = vmul.f32 %v2115, 1.442695
    %v2123 = vpow.pop %v2122
    %v2124 = vsel %vm226, %v2117, 0.0
    %2125 = vadd.xlane.f32.xlu0 %v2124
    %v2126 = vpop.xlane.xlu0 %2125
    %v2127 = vsel %vm226, %v2119, 0.0
    %2128 = vadd.xlane.f32.xlu0 %v2127
    %v2129 = vpop.xlane.xlu0 %2128
    %v2130 = vsel %vm226, %v2121, 0.0
    %2131 = vadd.xlane.f32.xlu0 %v2130
    %v2132 = vpop.xlane.xlu0 %2131
    %v2133 = vsel %vm226, %v2123, 0.0
    %2134 = vadd.xlane.f32.xlu0 %v2133
    %v2135 = vpop.xlane.xlu0 %2134
    %v2136 = vrcp.pop %v2126
    %v2137 = vrcp.pop %v2129
    %v2138 = vrcp.pop %v2132
    %v2139 = vrcp.pop %v2135
    %v2140 = vmul.f32 %v2117, %v2136
    %v2141 = vmul.f32 %v2119, %v2137
    %v2142 = vmul.f32 %v2121, %v2138
    %v2143 = vmul.f32 %v2123, %v2139
    %v2144 = vpack.c.bf16 %v2141, %v2140
    %v2145 = vpack.c.bf16 %v2143, %v2142
    %2146 = vrot.lane.b32.xlu0 %v1677, 48
    %v2147 = vpop.permute.xlu0 %2146
    %2148 = vrot.lane.b32.xlu0 %v1678, 48
    %v2149 = vpop.permute.xlu0 %2148
    %v2153 = vsel %vm226, %v2144, 0
    %v2156 = vsel %vm226, %v2145, 0
    %2158 = vmatprep.subr.bf16.mxu0 0
    %2159 = vmatpush1.bf16.msra.mxu0 %v2147
    %2160 = vmatprep.subr.bf16.mxu0 0
    %2161 = vmatpush1.bf16.msra.mxu0 %v2149
    %2162 = vmatprep.subr.bf16.mxu0 0
    %2163 = vmatpush1.bf16.msra.mxu0 0
    %2164 = vmatprep.subr.bf16.mxu0 0
    %2165 = vmatpush1.bf16.msra.mxu0 0
    %2166 = vmatprep.subr.bf16.mxu0 0
    %2167 = vmatpush1.bf16.msra.mxu0 0
    %2168 = vmatprep.subr.bf16.mxu0 0
    %2169 = vmatpush1.bf16.msra.mxu0 0
    %2170 = vmatprep.subr.bf16.mxu0 0
    %2171 = vmatpush1.bf16.msra.mxu0 0
    %2172 = vmatprep.subr.bf16.mxu0 0
    %2173 = vmatpush1.bf16.msra.mxu0 0
    %2174 = vmatprep.subr.bf16.mxu0 0
    %2175 = vmatpush1.bf16.msra.mxu0 0
    %2176 = vmatprep.subr.bf16.mxu0 0
    %2177 = vmatpush1.bf16.msra.mxu0 0
    %2178 = vmatprep.subr.bf16.mxu0 0
    %2179 = vmatpush1.bf16.msra.mxu0 0
    %2180 = vmatprep.subr.bf16.mxu0 0
    %2181 = vmatpush1.bf16.msra.mxu0 0
    %2182 = vmatprep.subr.bf16.mxu0 0
    %2183 = vmatpush1.bf16.msra.mxu0 0
    %2184 = vmatprep.subr.bf16.mxu0 0
    %2185 = vmatpush1.bf16.msra.mxu0 0
    %2186 = vmatprep.subr.bf16.mxu0 0
    %2187 = vmatpush1.bf16.msra.mxu0 0
    %2188 = vmatprep.subr.bf16.mxu0 0
    %2189 = vmatpush1.bf16.msra.mxu0 0
    %2190 = vmatprep.mubr.bf16.mxu0 0
    %2191 = vmatmul.mubr.bf16.gmra.mrb[0].mxu0 %v2153
    %v2192 = vpop.f32.mrb[0].mxu0
    %v2193 = vadd.f32 0.0, %v2192
    %v2194 = vpop.f32.mrb[0].mxu0
    %v2195 = vpop.f32.mrb[0].mxu0
    %v2196 = vadd.f32 0.0, %v2195
    %v2197 = vpop.f32.mrb[0].mxu0
    %2198 = vmatprep.mubr.bf16.mxu0 0
    %2199 = vmatmul.mubr.bf16.gmra.mrb[0].mxu0 %v2156
    %v2200 = vpop.f32.mrb[0].mxu0
    %v2201 = vadd.f32 0.0, %v2200
    %v2202 = vpop.f32.mrb[0].mxu0
    %v2203 = vpop.f32.mrb[0].mxu0
    %v2204 = vadd.f32 0.0, %v2203
    %v2205 = vpop.f32.mrb[0].mxu0
    %2206 = vdwg.mxu0
    %2207 = vrot.lane.b32.xlu0 %v1675, 104
    %v2208 = vpop.permute.xlu0 %2207
    %2209 = vrot.lane.b32.xlu0 %v1676, 104
    %v2210 = vpop.permute.xlu0 %2209
    %2211 = vrot.lane.b32.xlu0 %v1677, 72
    %v2212 = vpop.permute.xlu0 %2211
    %2213 = vrot.lane.b32.xlu0 %v1678, 72
    %v2214 = vpop.permute.xlu0 %2213
    %v2216 = vsel %vm387, %v2208, 0
    %v2219 = vsel %vm387, %v2210, 0
    %v2222 = vsel %vm387, %v2212, 0
    %v2225 = vsel %vm387, %v2214, 0
    %2227 = vmatprep.subr.bf16.mxu0 0
    %2228 = vmatpush1.bf16.xpose.msra.mxu0 %v2222
    %2229 = vmatprep.subr.bf16.mxu0 0
    %2230 = vmatpush1.bf16.xpose.msra.mxu0 %v2225
    %2231 = vmatprep.subr.bf16.mxu0 0
    %2232 = vmatpush1.bf16.xpose.msra.mxu0 0
    %2233 = vmatprep.subr.bf16.mxu0 0
    %2234 = vmatpush1.bf16.xpose.msra.mxu0 0
    %2235 = vmatprep.subr.bf16.mxu0 0
    %2236 = vmatpush1.bf16.xpose.msra.mxu0 0
    %2237 = vmatprep.subr.bf16.mxu0 0
    %2238 = vmatpush1.bf16.xpose.msra.mxu0 0
    %2239 = vmatprep.subr.bf16.mxu0 0
    %2240 = vmatpush1.bf16.xpose.msra.mxu0 0
    %2241 = vmatprep.subr.bf16.mxu0 0
    %2242 = vmatpush1.bf16.xpose.msra.mxu0 0
    %2243 = vmatprep.subr.bf16.mxu0 0
    %2244 = vmatpush1.bf16.xpose.msra.mxu0 0
    %2245 = vmatprep.subr.bf16.mxu0 0
    %2246 = vmatpush1.bf16.xpose.msra.mxu0 0
    %2247 = vmatprep.subr.bf16.mxu0 0
    %2248 = vmatpush1.bf16.xpose.msra.mxu0 0
    %2249 = vmatprep.subr.bf16.mxu0 0
    %2250 = vmatpush1.bf16.xpose.msra.mxu0 0
    %2251 = vmatprep.subr.bf16.mxu0 0
    %2252 = vmatpush1.bf16.xpose.msra.mxu0 0
    %2253 = vmatprep.subr.bf16.mxu0 0
    %2254 = vmatpush1.bf16.xpose.msra.mxu0 0
    %2255 = vmatprep.subr.bf16.mxu0 0
    %2256 = vmatpush1.bf16.xpose.msra.mxu0 0
    %2257 = vmatprep.subr.bf16.mxu0 0
    %2258 = vmatpush1.bf16.xpose.msra.mxu0 0
    %2259 = vmatprep.mubr.bf16.mxu0 0
    %2260 = vmatmul.mubr.bf16.gmra.mrb[0].mxu0 %v2216
    %v2261 = vpop.f32.mrb[0].mxu0
    %v2262 = vadd.f32 %v46, %v2261
    %v2263 = vpop.f32.mrb[0].mxu0
    %v2264 = vpop.f32.mrb[0].mxu0
    %v2265 = vadd.f32 %v47, %v2264
    %v2266 = vpop.f32.mrb[0].mxu0
    %2267 = vmatprep.mubr.bf16.mxu0 0
    %2268 = vmatmul.mubr.bf16.gmra.mrb[0].mxu0 %v2219
    %v2269 = vpop.f32.mrb[0].mxu0
    %v2270 = vadd.f32 %v48, %v2269
    %v2271 = vpop.f32.mrb[0].mxu0
    %v2272 = vpop.f32.mrb[0].mxu0
    %v2273 = vadd.f32 %v49, %v2272
    %v2274 = vpop.f32.mrb[0].mxu0
    %2275 = vdwg.mxu0
    %v2276 = vsel %vm226, %v2262, -inf
    %2277 = vmax.xlane.f32.xlu0 %v2276
    %v2278 = vpop.xlane.xlu0 %2277
    %v2279 = vsel %vm226, %v2265, -inf
    %2280 = vmax.xlane.f32.xlu0 %v2279
    %v2281 = vpop.xlane.xlu0 %2280
    %v2282 = vsel %vm226, %v2270, -inf
    %2283 = vmax.xlane.f32.xlu0 %v2282
    %v2284 = vpop.xlane.xlu0 %2283
    %v2285 = vsel %vm226, %v2273, -inf
    %2286 = vmax.xlane.f32.xlu0 %v2285
    %v2287 = vpop.xlane.xlu0 %2286
    %v2288 = vsub.f32 %v2262, %v2278
    %v2289 = vsub.f32 %v2265, %v2281
    %v2290 = vsub.f32 %v2270, %v2284
    %v2291 = vsub.f32 %v2273, %v2287
    %v2292 = vmul.f32 %v2288, 1.442695
    %v2293 = vpow.pop %v2292
    %v2294 = vmul.f32 %v2289, 1.442695
    %v2295 = vpow.pop %v2294
    %v2296 = vmul.f32 %v2290, 1.442695
    %v2297 = vpow.pop %v2296
    %v2298 = vmul.f32 %v2291, 1.442695
    %v2299 = vpow.pop %v2298
    %v2300 = vsel %vm226, %v2293, 0.0
    %2301 = vadd.xlane.f32.xlu0 %v2300
    %v2302 = vpop.xlane.xlu0 %2301
    %v2303 = vsel %vm226, %v2295, 0.0
    %2304 = vadd.xlane.f32.xlu0 %v2303
    %v2305 = vpop.xlane.xlu0 %2304
    %v2306 = vsel %vm226, %v2297, 0.0
    %2307 = vadd.xlane.f32.xlu0 %v2306
    %v2308 = vpop.xlane.xlu0 %2307
    %v2309 = vsel %vm226, %v2299, 0.0
    %2310 = vadd.xlane.f32.xlu0 %v2309
    %v2311 = vpop.xlane.xlu0 %2310
    %v2312 = vrcp.pop %v2302
    %v2313 = vrcp.pop %v2305
    %v2314 = vrcp.pop %v2308
    %v2315 = vrcp.pop %v2311
    %v2316 = vmul.f32 %v2293, %v2312
    %v2317 = vmul.f32 %v2295, %v2313
    %v2318 = vmul.f32 %v2297, %v2314
    %v2319 = vmul.f32 %v2299, %v2315
    %v2320 = vpack.c.bf16 %v2317, %v2316
    %v2321 = vpack.c.bf16 %v2319, %v2318
    %2322 = vrot.lane.b32.xlu0 %v1677, 40
    %v2323 = vpop.permute.xlu0 %2322
    %2324 = vrot.lane.b32.xlu0 %v1678, 40
    %v2325 = vpop.permute.xlu0 %2324
    %v2329 = vsel %vm226, %v2320, 0
    %v2332 = vsel %vm226, %v2321, 0
    %2334 = vmatprep.subr.bf16.mxu0 0
    %2335 = vmatpush1.bf16.msra.mxu0 %v2323
    %2336 = vmatprep.subr.bf16.mxu0 0
    %2337 = vmatpush1.bf16.msra.mxu0 %v2325
    %2338 = vmatprep.subr.bf16.mxu0 0
    %2339 = vmatpush1.bf16.msra.mxu0 0
    %2340 = vmatprep.subr.bf16.mxu0 0
    %2341 = vmatpush1.bf16.msra.mxu0 0
    %2342 = vmatprep.subr.bf16.mxu0 0
    %2343 = vmatpush1.bf16.msra.mxu0 0
    %2344 = vmatprep.subr.bf16.mxu0 0
    %2345 = vmatpush1.bf16.msra.mxu0 0
    %2346 = vmatprep.subr.bf16.mxu0 0
    %2347 = vmatpush1.bf16.msra.mxu0 0
    %2348 = vmatprep.subr.bf16.mxu0 0
    %2349 = vmatpush1.bf16.msra.mxu0 0
    %2350 = vmatprep.subr.bf16.mxu0 0
    %2351 = vmatpush1.bf16.msra.mxu0 0
    %2352 = vmatprep.subr.bf16.mxu0 0
    %2353 = vmatpush1.bf16.msra.mxu0 0
    %2354 = vmatprep.subr.bf16.mxu0 0
    %2355 = vmatpush1.bf16.msra.mxu0 0
    %2356 = vmatprep.subr.bf16.mxu0 0
    %2357 = vmatpush1.bf16.msra.mxu0 0
    %2358 = vmatprep.subr.bf16.mxu0 0
    %2359 = vmatpush1.bf16.msra.mxu0 0
    %2360 = vmatprep.subr.bf16.mxu0 0
    %2361 = vmatpush1.bf16.msra.mxu0 0
    %2362 = vmatprep.subr.bf16.mxu0 0
    %2363 = vmatpush1.bf16.msra.mxu0 0
    %2364 = vmatprep.subr.bf16.mxu0 0
    %2365 = vmatpush1.bf16.msra.mxu0 0
    %2366 = vmatprep.mubr.bf16.mxu0 0
    %2367 = vmatmul.mubr.bf16.gmra.mrb[0].mxu0 %v2329
    %v2368 = vpop.f32.mrb[0].mxu0
    %v2369 = vadd.f32 0.0, %v2368
    %v2370 = vpop.f32.mrb[0].mxu0
    %v2371 = vpop.f32.mrb[0].mxu0
    %v2372 = vadd.f32 0.0, %v2371
    %v2373 = vpop.f32.mrb[0].mxu0
    %2374 = vmatprep.mubr.bf16.mxu0 0
    %2375 = vmatmul.mubr.bf16.gmra.mrb[0].mxu0 %v2332
    %v2376 = vpop.f32.mrb[0].mxu0
    %v2377 = vadd.f32 0.0, %v2376
    %v2378 = vpop.f32.mrb[0].mxu0
    %v2379 = vpop.f32.mrb[0].mxu0
    %v2380 = vadd.f32 0.0, %v2379
    %v2381 = vpop.f32.mrb[0].mxu0
    %2382 = vdwg.mxu0
    %2387 = vrot.lane.b32.xlu0 %v2017, 8
    %v2388 = vpop.permute.xlu0 %2387
    %2389 = vrot.lane.b32.xlu0 %v2020, 8
    %v2390 = vpop.permute.xlu0 %2389
    %2391 = vrot.lane.b32.xlu0 %v2025, 8
    %v2392 = vpop.permute.xlu0 %2391
    %2393 = vrot.lane.b32.xlu0 %v2028, 8
    %v2394 = vpop.permute.xlu0 %2393
    %2403 = vrot.lane.b32.xlu0 %v2193, 16
    %v2404 = vpop.permute.xlu0 %2403
    %2405 = vrot.lane.b32.xlu0 %v2196, 16
    %v2406 = vpop.permute.xlu0 %2405
    %2407 = vrot.lane.b32.xlu0 %v2201, 16
    %v2408 = vpop.permute.xlu0 %2407
    %2409 = vrot.lane.b32.xlu0 %v2204, 16
    %v2410 = vpop.permute.xlu0 %2409
    %2419 = vrot.lane.b32.xlu0 %v2369, 24
    %v2420 = vpop.permute.xlu0 %2419
    %2421 = vrot.lane.b32.xlu0 %v2372, 24
    %v2422 = vpop.permute.xlu0 %2421
    %2423 = vrot.lane.b32.xlu0 %v2377, 24
    %v2424 = vpop.permute.xlu0 %2423
    %2425 = vrot.lane.b32.xlu0 %v2380, 24
    %v2426 = vpop.permute.xlu0 %2425
    %v2431 = vsel %vm387, %v1839, %v2388
    %v2432 = vsel %vm387, %v1842, %v2390
    %v2433 = vsel %vm387, %v1847, %v2392
    %v2434 = vsel %vm387, %v1850, %v2394
    %v2435 = vsel %vm1138, %v2431, %v2404
    %v2436 = vsel %vm1138, %v2432, %v2406
    %v2437 = vsel %vm1138, %v2433, %v2408
    %v2438 = vsel %vm1138, %v2434, %v2410
    %v2439 = vsel %vm1143, %v2435, %v2420
    %v2440 = vsel %vm1143, %v2436, %v2422
    %v2441 = vsel %vm1143, %v2437, %v2424
    %v2442 = vsel %vm1143, %v2438, %v2426
    %s2443 = scalar_lea.vmem %s5, 16
    %v2444 = vld [vmem:[%s2443] sm:$0xf]
    %v2445 = vld [vmem:[%s2443 + $0x4] sm:$0xf]
    %v2446 = vld [vmem:[%s2443 + $0x8] sm:$0xf]
    %v2447 = vld [vmem:[%s2443 + $0xc] sm:$0xf]
    %v2448 = vpack.c.bf16 %v2440, %v2439
    %v2449 = vpack.c.bf16 %v2442, %v2441
    %v2454 = vunpack.c.l.b16 %v2444
    %v2455 = vunpack.c.l.b16 %v2445
    %v2456 = vunpack.c.l.b16 %v2446
    %v2457 = vunpack.c.l.b16 %v2447
    %v2458 = vpack.c.b16 %v2455, %v2454
    %v2459 = vpack.c.b16 %v2457, %v2456
    %v2463 = vsel %vm226, %v2448, 0
    %v2466 = vsel %vm226, %v2449, 0
    %2468 = vmatprep.subr.bf16.mxu0 0
    %2469 = vmatpush1.bf16.msra.mxu0 %v2458
    %2470 = vmatprep.subr.bf16.mxu0 0
    %2471 = vmatpush1.bf16.msra.mxu0 %v2459
    %2472 = vmatprep.subr.bf16.mxu0 0
    %2473 = vmatpush1.bf16.msra.mxu0 0
    %2474 = vmatprep.subr.bf16.mxu0 0
    %2475 = vmatpush1.bf16.msra.mxu0 0
    %2476 = vmatprep.subr.bf16.mxu0 0
    %2477 = vmatpush1.bf16.msra.mxu0 0
    %2478 = vmatprep.subr.bf16.mxu0 0
    %2479 = vmatpush1.bf16.msra.mxu0 0
    %2480 = vmatprep.subr.bf16.mxu0 0
    %2481 = vmatpush1.bf16.msra.mxu0 0
    %2482 = vmatprep.subr.bf16.mxu0 0
    %2483 = vmatpush1.bf16.msra.mxu0 0
    %2484 = vmatprep.subr.bf16.mxu0 0
    %2485 = vmatpush1.bf16.msra.mxu0 0
    %2486 = vmatprep.subr.bf16.mxu0 0
    %2487 = vmatpush1.bf16.msra.mxu0 0
    %2488 = vmatprep.subr.bf16.mxu0 0
    %2489 = vmatpush1.bf16.msra.mxu0 0
    %2490 = vmatprep.subr.bf16.mxu0 0
    %2491 = vmatpush1.bf16.msra.mxu0 0
    %2492 = vmatprep.subr.bf16.mxu0 0
    %2493 = vmatpush1.bf16.msra.mxu0 0
    %2494 = vmatprep.subr.bf16.mxu0 0
    %2495 = vmatpush1.bf16.msra.mxu0 0
    %2496 = vmatprep.subr.bf16.mxu0 0
    %2497 = vmatpush1.bf16.msra.mxu0 0
    %2498 = vmatprep.subr.bf16.mxu0 0
    %2499 = vmatpush1.bf16.msra.mxu0 0
    %2500 = vmatprep.mubr.bf16.mxu0 0
    %2501 = vmatmul.mubr.bf16.gmra.mrb[0].mxu0 %v2463
    %v2502 = vpop.f32.mrb[0].mxu0
    %v2503 = vadd.f32 0.0, %v2502
    %v2504 = vpop.f32.mrb[0].mxu0
    %v2505 = vpop.f32.mrb[0].mxu0
    %v2506 = vadd.f32 0.0, %v2505
    %v2507 = vpop.f32.mrb[0].mxu0
    %2508 = vmatprep.mubr.bf16.mxu0 0
    %2509 = vmatmul.mubr.bf16.gmra.mrb[0].mxu0 %v2466
    %v2510 = vpop.f32.mrb[0].mxu0
    %v2511 = vadd.f32 0.0, %v2510
    %v2512 = vpop.f32.mrb[0].mxu0
    %v2513 = vpop.f32.mrb[0].mxu0
    %v2514 = vadd.f32 0.0, %v2513
    %v2515 = vpop.f32.mrb[0].mxu0
    %2516 = vdwg.mxu0
    %v2517 = vadd.f32 %v1521, %v2503
    %v2518 = vadd.f32 %v1522, %v2506
    %v2519 = vadd.f32 %v1523, %v2511
    %v2520 = vadd.f32 %v1524, %v2514
    %v2521 = vlaneseq
    %v2522 = vshrl.u32 %v2521, 7
    %v2523 = vsub.s32 3, %v2522
    %v2524 = vrot.slane %v44, %v2523
    %v2525 = vadd.f32 %v2517, %v2524
    %v2526 = vadd.f32 %v2518, %v2524
    %v2527 = vadd.f32 %v2519, %v2524
    %v2528 = vadd.f32 %v2520, %v2524
    %v2529 = vsel %vm226, %v2525, 0.0
    %2530 = vadd.xlane.f32.xlu0 %v2529
    %v2531 = vpop.xlane.xlu0 %2530
    %v2532 = vsel %vm226, %v2526, 0.0
    %2533 = vadd.xlane.f32.xlu0 %v2532
    %v2534 = vpop.xlane.xlu0 %2533
    %v2535 = vsel %vm226, %v2527, 0.0
    %2536 = vadd.xlane.f32.xlu0 %v2535
    %v2537 = vpop.xlane.xlu0 %2536
    %v2538 = vsel %vm226, %v2528, 0.0
    %2539 = vadd.xlane.f32.xlu0 %v2538
    %v2540 = vpop.xlane.xlu0 %2539
    %v2541 = vmul.f32 %v2531, %v239
    %v2542 = vmul.f32 %v2534, %v239
    %v2543 = vmul.f32 %v2537, %v239
    %v2544 = vmul.f32 %v2540, %v239
    %v2545 = vsub.f32 %v2525, %v2541
    %v2546 = vsub.f32 %v2526, %v2542
    %v2547 = vsub.f32 %v2527, %v2543
    %v2548 = vsub.f32 %v2528, %v2544
    %v2549 = vmul.f32 %v2545, %v2545
    %v2550 = vmul.f32 %v2546, %v2546
    %v2551 = vmul.f32 %v2547, %v2547
    %v2552 = vmul.f32 %v2548, %v2548
    %v2553 = vsel %vm226, %v2549, 0.0
    %2554 = vadd.xlane.f32.xlu0 %v2553
    %v2555 = vpop.xlane.xlu0 %2554
    %v2556 = vsel %vm226, %v2550, 0.0
    %2557 = vadd.xlane.f32.xlu0 %v2556
    %v2558 = vpop.xlane.xlu0 %2557
    %v2559 = vsel %vm226, %v2551, 0.0
    %2560 = vadd.xlane.f32.xlu0 %v2559
    %v2561 = vpop.xlane.xlu0 %2560
    %v2562 = vsel %vm226, %v2552, 0.0
    %2563 = vadd.xlane.f32.xlu0 %v2562
    %v2564 = vpop.xlane.xlu0 %2563
    %v2565 = vmul.f32 %v2555, %v239
    %v2566 = vmul.f32 %v2558, %v239
    %v2567 = vmul.f32 %v2561, %v239
    %v2568 = vmul.f32 %v2564, %v239
    %v2569 = vadd.f32 %v2565, 1e-06
    %v2570 = vadd.f32 %v2566, 1e-06
    %v2571 = vadd.f32 %v2567, 1e-06
    %v2572 = vadd.f32 %v2568, 1e-06
    %v2573 = vrsqrt.pop %v2569
    %v2574 = vrsqrt.pop %v2570
    %v2575 = vrsqrt.pop %v2571
    %v2576 = vrsqrt.pop %v2572
    %v2577 = vmul.f32 %v2545, %v2573
    %v2578 = vmul.f32 %v2546, %v2574
    %v2579 = vmul.f32 %v2547, %v2575
    %v2580 = vmul.f32 %v2548, %v2576
    %v2581 = vlaneseq
    %v2582 = vshrl.u32 %v2581, 7
    %v2583 = vsub.s32 4, %v2582
    %v2584 = vrot.slane %v44, %v2583
    %v2585 = vmul.f32 %v2577, %v2584
    %v2586 = vmul.f32 %v2578, %v2584
    %v2587 = vmul.f32 %v2579, %v2584
    %v2588 = vmul.f32 %v2580, %v2584
    %v2589 = vlaneseq
    %v2590 = vshrl.u32 %v2589, 7
    %v2591 = vsub.s32 5, %v2590
    %v2592 = vrot.slane %v44, %v2591
    %v2593 = vadd.f32 %v2585, %v2592
    %v2594 = vadd.f32 %v2586, %v2592
    %v2595 = vadd.f32 %v2587, %v2592
    %v2596 = vadd.f32 %v2588, %v2592
    %s2597 = scalar_lea.vmem %s6, 16
    %v2598 = vld [vmem:[%s2597] sm:$0xf]
    %v2599 = vld [vmem:[%s2597 + $0x4] sm:$0xf]
    %v2600 = vld [vmem:[%s2597 + $0x8] sm:$0xf]
    %v2601 = vld [vmem:[%s2597 + $0xc] sm:$0xf]
    %v2602 = vpack.c.bf16 %v2594, %v2593
    %v2603 = vpack.c.bf16 %v2596, %v2595
    %v2604 = vlaneseq
    %v2605 = vshrl.u32 %v2604, 7
    %v2606 = vsub.s32 6, %v2605
    %v2607 = vrot.slane %v44, %v2606
    %v2612 = vunpack.c.l.b16 %v2598
    %v2613 = vunpack.c.l.b16 %v2599
    %v2614 = vunpack.c.l.b16 %v2600
    %v2615 = vunpack.c.l.b16 %v2601
    %v2616 = vpack.c.b16 %v2613, %v2612
    %v2617 = vpack.c.b16 %v2615, %v2614
    %v2621 = vsel %vm226, %v2602, 0
    %v2624 = vsel %vm226, %v2603, 0
    %2626 = vmatprep.subr.bf16.mxu0 0
    %2627 = vmatpush1.bf16.msra.mxu0 %v2616
    %2628 = vmatprep.subr.bf16.mxu0 0
    %2629 = vmatpush1.bf16.msra.mxu0 %v2617
    %2630 = vmatprep.subr.bf16.mxu0 0
    %2631 = vmatpush1.bf16.msra.mxu0 0
    %2632 = vmatprep.subr.bf16.mxu0 0
    %2633 = vmatpush1.bf16.msra.mxu0 0
    %2634 = vmatprep.subr.bf16.mxu0 0
    %2635 = vmatpush1.bf16.msra.mxu0 0
    %2636 = vmatprep.subr.bf16.mxu0 0
    %2637 = vmatpush1.bf16.msra.mxu0 0
    %2638 = vmatprep.subr.bf16.mxu0 0
    %2639 = vmatpush1.bf16.msra.mxu0 0
    %2640 = vmatprep.subr.bf16.mxu0 0
    %2641 = vmatpush1.bf16.msra.mxu0 0
    %2642 = vmatprep.subr.bf16.mxu0 0
    %2643 = vmatpush1.bf16.msra.mxu0 0
    %2644 = vmatprep.subr.bf16.mxu0 0
    %2645 = vmatpush1.bf16.msra.mxu0 0
    %2646 = vmatprep.subr.bf16.mxu0 0
    %2647 = vmatpush1.bf16.msra.mxu0 0
    %2648 = vmatprep.subr.bf16.mxu0 0
    %2649 = vmatpush1.bf16.msra.mxu0 0
    %2650 = vmatprep.subr.bf16.mxu0 0
    %2651 = vmatpush1.bf16.msra.mxu0 0
    %2652 = vmatprep.subr.bf16.mxu0 0
    %2653 = vmatpush1.bf16.msra.mxu0 0
    %2654 = vmatprep.subr.bf16.mxu0 0
    %2655 = vmatpush1.bf16.msra.mxu0 0
    %2656 = vmatprep.subr.bf16.mxu0 0
    %2657 = vmatpush1.bf16.msra.mxu0 0
    %2658 = vmatprep.mubr.bf16.mxu0 0
    %2659 = vmatmul.mubr.bf16.gmra.mrb[0].mxu0 %v2621
    %v2660 = vpop.f32.mrb[0].mxu0
    %v2661 = vadd.f32 %v2607, %v2660
    %v2662 = vpop.f32.mrb[0].mxu0
    %v2663 = vpop.f32.mrb[0].mxu0
    %v2664 = vadd.f32 %v2607, %v2663
    %v2665 = vpop.f32.mrb[0].mxu0
    %2666 = vmatprep.mubr.bf16.mxu0 0
    %2667 = vmatmul.mubr.bf16.gmra.mrb[0].mxu0 %v2624
    %v2668 = vpop.f32.mrb[0].mxu0
    %v2669 = vadd.f32 %v2607, %v2668
    %v2670 = vpop.f32.mrb[0].mxu0
    %v2671 = vpop.f32.mrb[0].mxu0
    %v2672 = vadd.f32 %v2607, %v2671
    %v2673 = vpop.f32.mrb[0].mxu0
    %2674 = vdwg.mxu0
    %v2675 = vmul.f32 %v2661, 0.5
    %v2676 = vmul.f32 %v2664, 0.5
    %v2677 = vmul.f32 %v2669, 0.5
    %v2678 = vmul.f32 %v2672, 0.5
    %v2679 = vmul.f32 %v2661, 0.70710677
    %v2680 = vmul.f32 %v2664, 0.70710677
    %v2681 = vmul.f32 %v2669, 0.70710677
    %v2682 = vmul.f32 %v2672, 0.70710677
    %v2683 = verf.f32.pop %v2679
    %v2684 = verf.f32.pop %v2680
    %v2685 = verf.f32.pop %v2681
    %v2686 = verf.f32.pop %v2682
    %v2687 = vadd.f32 %v2683, 1.0
    %v2688 = vadd.f32 %v2684, 1.0
    %v2689 = vadd.f32 %v2685, 1.0
    %v2690 = vadd.f32 %v2686, 1.0
    %v2691 = vmul.f32 %v2675, %v2687
    %v2692 = vmul.f32 %v2676, %v2688
    %v2693 = vmul.f32 %v2677, %v2689
    %v2694 = vmul.f32 %v2678, %v2690
    %s2695 = scalar_lea.vmem %s7, 64
    %v2696 = vld [vmem:[%s2695] sm:$0xf]
    %v2697 = vld [vmem:[%s2695 + $0x4] sm:$0xf]
    %v2698 = vld [vmem:[%s2695 + $0x8] sm:$0xf]
    %v2699 = vld [vmem:[%s2695 + $0xc] sm:$0xf]
    %v2700 = vld [vmem:[%s2695 + $0x10] sm:$0xf]
    %v2701 = vld [vmem:[%s2695 + $0x14] sm:$0xf]
    %v2702 = vld [vmem:[%s2695 + $0x18] sm:$0xf]
    %v2703 = vld [vmem:[%s2695 + $0x1c] sm:$0xf]
    %v2704 = vld [vmem:[%s2695 + $0x20] sm:$0xf]
    %v2705 = vld [vmem:[%s2695 + $0x24] sm:$0xf]
    %v2706 = vld [vmem:[%s2695 + $0x28] sm:$0xf]
    %v2707 = vld [vmem:[%s2695 + $0x2c] sm:$0xf]
    %v2708 = vld [vmem:[%s2695 + $0x30] sm:$0xf]
    %v2709 = vld [vmem:[%s2695 + $0x34] sm:$0xf]
    %v2710 = vld [vmem:[%s2695 + $0x38] sm:$0xf]
    %v2711 = vld [vmem:[%s2695 + $0x3c] sm:$0xf]
    %v2712 = vpack.c.bf16 %v2692, %v2691
    %v2713 = vpack.c.bf16 %v2694, %v2693
    %v2730 = vunpack.c.l.b16 %v2696
    %v2731 = vunpack.c.l.b16 %v2697
    %v2732 = vunpack.c.l.b16 %v2698
    %v2733 = vunpack.c.l.b16 %v2699
    %v2734 = vunpack.c.l.b16 %v2700
    %v2735 = vunpack.c.l.b16 %v2701
    %v2736 = vunpack.c.l.b16 %v2702
    %v2737 = vunpack.c.l.b16 %v2703
    %v2738 = vunpack.c.l.b16 %v2704
    %v2739 = vunpack.c.l.b16 %v2705
    %v2740 = vunpack.c.l.b16 %v2706
    %v2741 = vunpack.c.l.b16 %v2707
    %v2742 = vunpack.c.l.b16 %v2708
    %v2743 = vunpack.c.l.b16 %v2709
    %v2744 = vunpack.c.l.b16 %v2710
    %v2745 = vunpack.c.l.b16 %v2711
    %v2746 = vpack.c.b16 %v2731, %v2730
    %v2747 = vpack.c.b16 %v2733, %v2732
    %v2748 = vpack.c.b16 %v2735, %v2734
    %v2749 = vpack.c.b16 %v2737, %v2736
    %v2750 = vpack.c.b16 %v2739, %v2738
    %v2751 = vpack.c.b16 %v2741, %v2740
    %v2752 = vpack.c.b16 %v2743, %v2742
    %v2753 = vpack.c.b16 %v2745, %v2744
    %2762 = vmatprep.subr.bf16.mxu0 0
    %2763 = vmatpush1.bf16.msra.mxu0 %v2746
    %2764 = vmatprep.subr.bf16.mxu0 0
    %2765 = vmatpush1.bf16.msra.mxu0 %v2747
    %2766 = vmatprep.subr.bf16.mxu0 0
    %2767 = vmatpush1.bf16.msra.mxu0 %v2748
    %2768 = vmatprep.subr.bf16.mxu0 0
    %2769 = vmatpush1.bf16.msra.mxu0 %v2749
    %2770 = vmatprep.subr.bf16.mxu0 0
    %2771 = vmatpush1.bf16.msra.mxu0 %v2750
    %2772 = vmatprep.subr.bf16.mxu0 0
    %2773 = vmatpush1.bf16.msra.mxu0 %v2751
    %2774 = vmatprep.subr.bf16.mxu0 0
    %2775 = vmatpush1.bf16.msra.mxu0 %v2752
    %2776 = vmatprep.subr.bf16.mxu0 0
    %2777 = vmatpush1.bf16.msra.mxu0 %v2753
    %2778 = vmatprep.subr.bf16.mxu0 0
    %2779 = vmatpush1.bf16.msra.mxu0 0
    %2780 = vmatprep.subr.bf16.mxu0 0
    %2781 = vmatpush1.bf16.msra.mxu0 0
    %2782 = vmatprep.subr.bf16.mxu0 0
    %2783 = vmatpush1.bf16.msra.mxu0 0
    %2784 = vmatprep.subr.bf16.mxu0 0
    %2785 = vmatpush1.bf16.msra.mxu0 0
    %2786 = vmatprep.subr.bf16.mxu0 0
    %2787 = vmatpush1.bf16.msra.mxu0 0
    %2788 = vmatprep.subr.bf16.mxu0 0
    %2789 = vmatpush1.bf16.msra.mxu0 0
    %2790 = vmatprep.subr.bf16.mxu0 0
    %2791 = vmatpush1.bf16.msra.mxu0 0
    %2792 = vmatprep.subr.bf16.mxu0 0
    %2793 = vmatpush1.bf16.msra.mxu0 0
    %2794 = vmatprep.mubr.bf16.mxu0 0
    %2795 = vmatmul.mubr.bf16.gmra.mrb[0].mxu0 %v2712
    %v2796 = vpop.f32.mrb[0].mxu0
    %v2797 = vadd.f32 0.0, %v2796
    %v2798 = vpop.f32.mrb[0].mxu0
    %v2799 = vpop.f32.mrb[0].mxu0
    %v2800 = vadd.f32 0.0, %v2799
    %v2801 = vpop.f32.mrb[0].mxu0
    %2802 = vmatprep.mubr.bf16.mxu0 0
    %2803 = vmatmul.mubr.bf16.gmra.mrb[0].mxu0 %v2713
    %v2804 = vpop.f32.mrb[0].mxu0
    %v2805 = vadd.f32 0.0, %v2804
    %v2806 = vpop.f32.mrb[0].mxu0
    %v2807 = vpop.f32.mrb[0].mxu0
    %v2808 = vadd.f32 0.0, %v2807
    %v2809 = vpop.f32.mrb[0].mxu0
    %2810 = vdwg.mxu0
    %v2811 = vadd.f32 %v2525, %v2797
    %v2812 = vadd.f32 %v2526, %v2800
    %v2813 = vadd.f32 %v2527, %v2805
    %v2814 = vadd.f32 %v2528, %v2808
    %v2815 = vlaneseq
    %v2816 = vshrl.u32 %v2815, 7
    %v2817 = vsub.s32 7, %v2816
    %v2818 = vrot.slane %v44, %v2817
    %v2819 = vadd.f32 %v2811, %v2818
    %v2820 = vadd.f32 %v2812, %v2818
    %v2821 = vadd.f32 %v2813, %v2818
    %v2822 = vadd.f32 %v2814, %v2818
    %v2823 = vld [vmem:[%s8] sm:$0xf]
    %v2824 = vld [vmem:[%s8 + $0x4] sm:$0xf]
    %v2825 = vld [vmem:[%s8 + $0x8] sm:$0xf]
    %v2826 = vld [vmem:[%s8 + $0xc] sm:$0xf]
    %v2827 = vpack.c.bf16 %v2820, %v2819
    %v2828 = vpack.c.bf16 %v2822, %v2821
    %v2833 = vunpack.c.l.b16 %v2823
    %v2834 = vunpack.c.l.b16 %v2824
    %v2835 = vunpack.c.l.b16 %v2825
    %v2836 = vunpack.c.l.b16 %v2826
    %v2837 = vpack.c.b16 %v2834, %v2833
    %v2838 = vpack.c.b16 %v2836, %v2835
    %v2842 = vsel %vm226, %v2827, 0
    %v2845 = vsel %vm226, %v2828, 0
    %2847 = vmatprep.subr.bf16.mxu0 0
    %2848 = vmatpush1.bf16.msra.mxu0 %v2837
    %2849 = vmatprep.subr.bf16.mxu0 0
    %2850 = vmatpush1.bf16.msra.mxu0 %v2838
    %2851 = vmatprep.subr.bf16.mxu0 0
    %2852 = vmatpush1.bf16.msra.mxu0 0
    %2853 = vmatprep.subr.bf16.mxu0 0
    %2854 = vmatpush1.bf16.msra.mxu0 0
    %2855 = vmatprep.subr.bf16.mxu0 0
    %2856 = vmatpush1.bf16.msra.mxu0 0
    %2857 = vmatprep.subr.bf16.mxu0 0
    %2858 = vmatpush1.bf16.msra.mxu0 0
    %2859 = vmatprep.subr.bf16.mxu0 0
    %2860 = vmatpush1.bf16.msra.mxu0 0
    %2861 = vmatprep.subr.bf16.mxu0 0
    %2862 = vmatpush1.bf16.msra.mxu0 0
    %2863 = vmatprep.subr.bf16.mxu0 0
    %2864 = vmatpush1.bf16.msra.mxu0 0
    %2865 = vmatprep.subr.bf16.mxu0 0
    %2866 = vmatpush1.bf16.msra.mxu0 0
    %2867 = vmatprep.subr.bf16.mxu0 0
    %2868 = vmatpush1.bf16.msra.mxu0 0
    %2869 = vmatprep.subr.bf16.mxu0 0
    %2870 = vmatpush1.bf16.msra.mxu0 0
    %2871 = vmatprep.subr.bf16.mxu0 0
    %2872 = vmatpush1.bf16.msra.mxu0 0
    %2873 = vmatprep.subr.bf16.mxu0 0
    %2874 = vmatpush1.bf16.msra.mxu0 0
    %2875 = vmatprep.subr.bf16.mxu0 0
    %2876 = vmatpush1.bf16.msra.mxu0 0
    %2877 = vmatprep.subr.bf16.mxu0 0
    %2878 = vmatpush1.bf16.msra.mxu0 0
    %2879 = vmatprep.mubr.bf16.mxu0 0
    %2880 = vmatmul.mubr.bf16.gmra.mrb[0].mxu0 %v2842
    %v2881 = vpop.f32.mrb[0].mxu0
    %v2882 = vadd.f32 0.0, %v2881
    %v2883 = vpop.f32.mrb[0].mxu0
    %v2884 = vpop.f32.mrb[0].mxu0
    %v2885 = vadd.f32 0.0, %v2884
    %v2886 = vpop.f32.mrb[0].mxu0
    %2887 = vmatprep.mubr.bf16.mxu0 0
    %2888 = vmatmul.mubr.bf16.gmra.mrb[0].mxu0 %v2845
    %v2889 = vpop.f32.mrb[0].mxu0
    %v2890 = vadd.f32 0.0, %v2889
    %v2891 = vpop.f32.mrb[0].mxu0
    %v2892 = vpop.f32.mrb[0].mxu0
    %v2893 = vadd.f32 0.0, %v2892
    %v2894 = vpop.f32.mrb[0].mxu0
    %2895 = vdwg.mxu0
    %v2896 = vsel %vm1138, %v2882, 0.0
    %2897 = vadd.xlane.f32.xlu0 %v2896
    %v2898 = vpop.xlane.xlu0 %2897
    %v2899 = vsel %vm1138, %v2885, 0.0
    %2900 = vadd.xlane.f32.xlu0 %v2899
    %v2901 = vpop.xlane.xlu0 %2900
    %v2902 = vsel %vm1138, %v2890, 0.0
    %2903 = vadd.xlane.f32.xlu0 %v2902
    %v2904 = vpop.xlane.xlu0 %2903
    %v2905 = vsel %vm1138, %v2893, 0.0
    %2906 = vadd.xlane.f32.xlu0 %v2905
    %v2907 = vpop.xlane.xlu0 %2906
    %v2908 = vrcp.pop 16.0
    %v2909 = vmul.f32 %v2898, %v2908
    %v2910 = vmul.f32 %v2901, %v2908
    %v2911 = vmul.f32 %v2904, %v2908
    %v2912 = vmul.f32 %v2907, %v2908
    %v2913 = vsub.f32 %v2882, %v2909
    %v2914 = vsub.f32 %v2885, %v2910
    %v2915 = vsub.f32 %v2890, %v2911
    %v2916 = vsub.f32 %v2893, %v2912
    %v2917 = vmul.f32 %v2913, %v2913
    %v2918 = vmul.f32 %v2914, %v2914
    %v2919 = vmul.f32 %v2915, %v2915
    %v2920 = vmul.f32 %v2916, %v2916
    %v2921 = vsel %vm1138, %v2917, 0.0
    %2922 = vadd.xlane.f32.xlu0 %v2921
    %v2923 = vpop.xlane.xlu0 %2922
    %v2924 = vsel %vm1138, %v2918, 0.0
    %2925 = vadd.xlane.f32.xlu0 %v2924
    %v2926 = vpop.xlane.xlu0 %2925
    %v2927 = vsel %vm1138, %v2919, 0.0
    %2928 = vadd.xlane.f32.xlu0 %v2927
    %v2929 = vpop.xlane.xlu0 %2928
    %v2930 = vsel %vm1138, %v2920, 0.0
    %2931 = vadd.xlane.f32.xlu0 %v2930
    %v2932 = vpop.xlane.xlu0 %2931
    %v2933 = vmul.f32 %v2923, %v2908
    %v2934 = vmul.f32 %v2926, %v2908
    %v2935 = vmul.f32 %v2929, %v2908
    %v2936 = vmul.f32 %v2932, %v2908
    %v2937 = vadd.f32 %v2933, 1e-06
    %v2938 = vadd.f32 %v2934, 1e-06
    %v2939 = vadd.f32 %v2935, 1e-06
    %v2940 = vadd.f32 %v2936, 1e-06
    %v2941 = vrsqrt.pop %v2937
    %v2942 = vrsqrt.pop %v2938
    %v2943 = vrsqrt.pop %v2939
    %v2944 = vrsqrt.pop %v2940
    %v2945 = vmul.f32 %v2913, %v2941
    %v2946 = vmul.f32 %v2914, %v2942
    %v2947 = vmul.f32 %v2915, %v2943
    %v2948 = vmul.f32 %v2916, %v2944
    %v2949 = vlaneseq
    %v2950 = vshrl.u32 %v2949, 7
    %v2951 = vsub.s32 1, %v2950
    %v2952 = vrot.slane %v45, %v2951
    %v2953 = vmul.f32 %v2945, %v2952
    %v2954 = vmul.f32 %v2946, %v2952
    %v2955 = vmul.f32 %v2947, %v2952
    %v2956 = vmul.f32 %v2948, %v2952
    %v2957 = vlaneseq
    %v2958 = vshrl.u32 %v2957, 7
    %v2959 = vsub.s32 2, %v2958
    %v2960 = vrot.slane %v45, %v2959
    %v2961 = vadd.f32 %v2953, %v2960
    %v2962 = vadd.f32 %v2954, %v2960
    %v2963 = vadd.f32 %v2955, %v2960
    %v2964 = vadd.f32 %v2956, %v2960
    %v2965 = vld [vmem:[%s9] sm:$0xf]
    %v2966 = vld [vmem:[%s9 + $0x4] sm:$0xf]
    %v2967 = vld [vmem:[%s9 + $0x8] sm:$0xf]
    %v2968 = vld [vmem:[%s9 + $0xc] sm:$0xf]
    %v2969 = vld [vmem:[%s9 + $0x10] sm:$0xf]
    %v2970 = vld [vmem:[%s9 + $0x14] sm:$0xf]
    %v2971 = vld [vmem:[%s9 + $0x18] sm:$0xf]
    %v2972 = vld [vmem:[%s9 + $0x1c] sm:$0xf]
    %v2973 = vld [vmem:[%s9 + $0x20] sm:$0xf]
    %v2974 = vld [vmem:[%s9 + $0x24] sm:$0xf]
    %v2975 = vld [vmem:[%s9 + $0x28] sm:$0xf]
    %v2976 = vld [vmem:[%s9 + $0x2c] sm:$0xf]
    %v2977 = vld [vmem:[%s9 + $0x30] sm:$0xf]
    %v2978 = vld [vmem:[%s9 + $0x34] sm:$0xf]
    %v2979 = vld [vmem:[%s9 + $0x38] sm:$0xf]
    %v2980 = vld [vmem:[%s9 + $0x3c] sm:$0xf]
    %v2981 = vld [vmem:[%s9 + $0x40] sm:$0xf]
    %v2982 = vld [vmem:[%s9 + $0x44] sm:$0xf]
    %v2983 = vld [vmem:[%s9 + $0x48] sm:$0xf]
    %v2984 = vld [vmem:[%s9 + $0x4c] sm:$0xf]
    %v2985 = vld [vmem:[%s9 + $0x50] sm:$0xf]
    %v2986 = vld [vmem:[%s9 + $0x54] sm:$0xf]
    %v2987 = vld [vmem:[%s9 + $0x58] sm:$0xf]
    %v2988 = vld [vmem:[%s9 + $0x5c] sm:$0xf]
    %v2989 = vld [vmem:[%s9 + $0x60] sm:$0xf]
    %v2990 = vld [vmem:[%s9 + $0x64] sm:$0xf]
    %v2991 = vld [vmem:[%s9 + $0x68] sm:$0xf]
    %v2992 = vld [vmem:[%s9 + $0x6c] sm:$0xf]
    %v2993 = vld [vmem:[%s9 + $0x70] sm:$0xf]
    %v2994 = vld [vmem:[%s9 + $0x74] sm:$0xf]
    %v2995 = vld [vmem:[%s9 + $0x78] sm:$0xf]
    %v2996 = vld [vmem:[%s9 + $0x7c] sm:$0xf]
    %v2997 = vld [vmem:[%s9 + $0x80] sm:$0xf]
    %v2998 = vld [vmem:[%s9 + $0x84] sm:$0xf]
    %v2999 = vld [vmem:[%s9 + $0x88] sm:$0xf]
    %v3000 = vld [vmem:[%s9 + $0x8c] sm:$0xf]
    %v3001 = vpack.c.bf16 %v2962, %v2961
    %v3002 = vpack.c.bf16 %v2964, %v2963
    %v3039 = vunpack.c.l.b16 %v2965
    %v3040 = vunpack.c.l.b16 %v2966
    %v3041 = vunpack.c.l.b16 %v2967
    %v3042 = vunpack.c.l.b16 %v2968
    %v3043 = vunpack.c.l.b16 %v2969
    %v3044 = vunpack.c.l.b16 %v2970
    %v3045 = vunpack.c.l.b16 %v2971
    %v3046 = vunpack.c.l.b16 %v2972
    %v3047 = vunpack.c.l.b16 %v2973
    %v3048 = vunpack.c.l.b16 %v2974
    %v3049 = vunpack.c.l.b16 %v2975
    %v3050 = vunpack.c.l.b16 %v2976
    %v3051 = vunpack.c.l.b16 %v2977
    %v3052 = vunpack.c.l.b16 %v2978
    %v3053 = vunpack.c.l.b16 %v2979
    %v3054 = vunpack.c.l.b16 %v2980
    %v3055 = vunpack.c.l.b16 %v2981
    %v3056 = vunpack.c.l.b16 %v2982
    %v3057 = vunpack.c.l.b16 %v2983
    %v3058 = vunpack.c.l.b16 %v2984
    %v3059 = vunpack.c.l.b16 %v2985
    %v3060 = vunpack.c.l.b16 %v2986
    %v3061 = vunpack.c.l.b16 %v2987
    %v3062 = vunpack.c.l.b16 %v2988
    %v3063 = vunpack.c.l.b16 %v2989
    %v3064 = vunpack.c.l.b16 %v2990
    %v3065 = vunpack.c.l.b16 %v2991
    %v3066 = vunpack.c.l.b16 %v2992
    %v3067 = vunpack.c.l.b16 %v2993
    %v3068 = vunpack.c.l.b16 %v2994
    %v3069 = vunpack.c.l.b16 %v2995
    %v3070 = vunpack.c.l.b16 %v2996
    %v3071 = vunpack.c.l.b16 %v2997
    %v3072 = vunpack.c.l.b16 %v2998
    %v3073 = vunpack.c.l.b16 %v2999
    %v3074 = vunpack.c.l.b16 %v3000
    %v3075 = vpack.c.b16 %v3040, %v3039
    %v3076 = vpack.c.b16 %v3042, %v3041
    %v3077 = vpack.c.b16 %v3044, %v3043
    %v3078 = vpack.c.b16 %v3046, %v3045
    %v3079 = vpack.c.b16 %v3048, %v3047
    %v3080 = vpack.c.b16 %v3050, %v3049
    %v3081 = vpack.c.b16 %v3052, %v3051
    %v3082 = vpack.c.b16 %v3054, %v3053
    %v3083 = vpack.c.b16 %v3056, %v3055
    %v3084 = vpack.c.b16 %v3058, %v3057
    %v3085 = vpack.c.b16 %v3060, %v3059
    %v3086 = vpack.c.b16 %v3062, %v3061
    %v3087 = vpack.c.b16 %v3064, %v3063
    %v3088 = vpack.c.b16 %v3066, %v3065
    %v3089 = vpack.c.b16 %v3068, %v3067
    %v3090 = vpack.c.b16 %v3070, %v3069
    %v3091 = vpack.c.b16 %v3072, %v3071
    %v3092 = vpack.c.b16 %v3074, %v3073
    %v3094 = vsel %vm226, %v3075, 0
    %v3097 = vsel %vm226, %v3076, 0
    %v3100 = vsel %vm226, %v3077, 0
    %v3103 = vsel %vm226, %v3078, 0
    %v3106 = vsel %vm226, %v3079, 0
    %v3109 = vsel %vm226, %v3080, 0
    %v3112 = vsel %vm226, %v3081, 0
    %v3115 = vsel %vm226, %v3082, 0
    %v3118 = vsel %vm226, %v3083, 0
    %v3121 = vsel %vm226, %v3084, 0
    %v3124 = vsel %vm226, %v3085, 0
    %v3127 = vsel %vm226, %v3086, 0
    %v3130 = vsel %vm226, %v3087, 0
    %v3133 = vsel %vm226, %v3088, 0
    %v3136 = vsel %vm226, %v3089, 0
    %v3139 = vsel %vm226, %v3090, 0
    %v3142 = vsel %vm226, %v3091, 0
    %v3145 = vsel %vm226, %v3092, 0
    %3147 = vmatprep.subr.bf16.mxu0 0
    %3148 = vmatpush1.bf16.msra.mxu0 %v3001
    %3149 = vmatprep.subr.bf16.mxu0 0
    %3150 = vmatpush1.bf16.msra.mxu0 %v3002
    %3151 = vmatprep.subr.bf16.mxu0 0
    %3152 = vmatpush1.bf16.msra.mxu0 0
    %3153 = vmatprep.subr.bf16.mxu0 0
    %3154 = vmatpush1.bf16.msra.mxu0 0
    %3155 = vmatprep.subr.bf16.mxu0 0
    %3156 = vmatpush1.bf16.msra.mxu0 0
    %3157 = vmatprep.subr.bf16.mxu0 0
    %3158 = vmatpush1.bf16.msra.mxu0 0
    %3159 = vmatprep.subr.bf16.mxu0 0
    %3160 = vmatpush1.bf16.msra.mxu0 0
    %3161 = vmatprep.subr.bf16.mxu0 0
    %3162 = vmatpush1.bf16.msra.mxu0 0
    %3163 = vmatprep.subr.bf16.mxu0 0
    %3164 = vmatpush1.bf16.msra.mxu0 0
    %3165 = vmatprep.subr.bf16.mxu0 0
    %3166 = vmatpush1.bf16.msra.mxu0 0
    %3167 = vmatprep.subr.bf16.mxu0 0
    %3168 = vmatpush1.bf16.msra.mxu0 0
    %3169 = vmatprep.subr.bf16.mxu0 0
    %3170 = vmatpush1.bf16.msra.mxu0 0
    %3171 = vmatprep.subr.bf16.mxu0 0
    %3172 = vmatpush1.bf16.msra.mxu0 0
    %3173 = vmatprep.subr.bf16.mxu0 0
    %3174 = vmatpush1.bf16.msra.mxu0 0
    %3175 = vmatprep.subr.bf16.mxu0 0
    %3176 = vmatpush1.bf16.msra.mxu0 0
    %3177 = vmatprep.subr.bf16.mxu0 0
    %3178 = vmatpush1.bf16.msra.mxu0 0
    %3179 = vmatprep.mubr.bf16.mxu0 0
    %3180 = vmatmul.mubr.bf16.gmra.mrb[0].mxu0 %v3094
    %v3181 = vpop.f32.mrb[0].mxu0
    %v3182 = vadd.f32 0.0, %v3181
    %v3183 = vpop.f32.mrb[0].mxu0
    %v3184 = vpop.f32.mrb[0].mxu0
    %v3185 = vadd.f32 0.0, %v3184
    %v3186 = vpop.f32.mrb[0].mxu0
    %3187 = vmatprep.mubr.bf16.mxu0 0
    %3188 = vmatmul.mubr.bf16.gmra.mrb[0].mxu0 %v3097
    %v3189 = vpop.f32.mrb[0].mxu0
    %v3190 = vadd.f32 0.0, %v3189
    %v3191 = vpop.f32.mrb[0].mxu0
    %v3192 = vpop.f32.mrb[0].mxu0
    %v3193 = vadd.f32 0.0, %v3192
    %v3194 = vpop.f32.mrb[0].mxu0
    %3195 = vmatprep.mubr.bf16.mxu0 0
    %3196 = vmatmul.mubr.bf16.gmra.mrb[0].mxu0 %v3100
    %v3197 = vpop.f32.mrb[0].mxu0
    %v3198 = vadd.f32 0.0, %v3197
    %v3199 = vpop.f32.mrb[0].mxu0
    %v3200 = vpop.f32.mrb[0].mxu0
    %v3201 = vadd.f32 0.0, %v3200
    %v3202 = vpop.f32.mrb[0].mxu0
    %3203 = vmatprep.mubr.bf16.mxu0 0
    %3204 = vmatmul.mubr.bf16.gmra.mrb[0].mxu0 %v3103
    %v3205 = vpop.f32.mrb[0].mxu0
    %v3206 = vadd.f32 0.0, %v3205
    %v3207 = vpop.f32.mrb[0].mxu0
    %v3208 = vpop.f32.mrb[0].mxu0
    %v3209 = vadd.f32 0.0, %v3208
    %v3210 = vpop.f32.mrb[0].mxu0
    %3211 = vmatprep.mubr.bf16.mxu0 0
    %3212 = vmatmul.mubr.bf16.gmra.mrb[0].mxu0 %v3106
    %v3213 = vpop.f32.mrb[0].mxu0
    %v3214 = vadd.f32 0.0, %v3213
    %v3215 = vpop.f32.mrb[0].mxu0
    %v3216 = vpop.f32.mrb[0].mxu0
    %v3217 = vadd.f32 0.0, %v3216
    %v3218 = vpop.f32.mrb[0].mxu0
    %3219 = vmatprep.mubr.bf16.mxu0 0
    %3220 = vmatmul.mubr.bf16.gmra.mrb[0].mxu0 %v3109
    %v3221 = vpop.f32.mrb[0].mxu0
    %v3222 = vadd.f32 0.0, %v3221
    %v3223 = vpop.f32.mrb[0].mxu0
    %v3224 = vpop.f32.mrb[0].mxu0
    %v3225 = vadd.f32 0.0, %v3224
    %v3226 = vpop.f32.mrb[0].mxu0
    %3227 = vmatprep.mubr.bf16.mxu0 0
    %3228 = vmatmul.mubr.bf16.gmra.mrb[0].mxu0 %v3112
    %v3229 = vpop.f32.mrb[0].mxu0
    %v3230 = vadd.f32 0.0, %v3229
    %v3231 = vpop.f32.mrb[0].mxu0
    %v3232 = vpop.f32.mrb[0].mxu0
    %v3233 = vadd.f32 0.0, %v3232
    %v3234 = vpop.f32.mrb[0].mxu0
    %3235 = vmatprep.mubr.bf16.mxu0 0
    %3236 = vmatmul.mubr.bf16.gmra.mrb[0].mxu0 %v3115
    %v3237 = vpop.f32.mrb[0].mxu0
    %v3238 = vadd.f32 0.0, %v3237
    %v3239 = vpop.f32.mrb[0].mxu0
    %v3240 = vpop.f32.mrb[0].mxu0
    %v3241 = vadd.f32 0.0, %v3240
    %v3242 = vpop.f32.mrb[0].mxu0
    %3243 = vmatprep.mubr.bf16.mxu0 0
    %3244 = vmatmul.mubr.bf16.gmra.mrb[0].mxu0 %v3118
    %v3245 = vpop.f32.mrb[0].mxu0
    %v3246 = vadd.f32 0.0, %v3245
    %v3247 = vpop.f32.mrb[0].mxu0
    %v3248 = vpop.f32.mrb[0].mxu0
    %v3249 = vadd.f32 0.0, %v3248
    %v3250 = vpop.f32.mrb[0].mxu0
    %3251 = vmatprep.mubr.bf16.mxu0 0
    %3252 = vmatmul.mubr.bf16.gmra.mrb[0].mxu0 %v3121
    %v3253 = vpop.f32.mrb[0].mxu0
    %v3254 = vadd.f32 0.0, %v3253
    %v3255 = vpop.f32.mrb[0].mxu0
    %v3256 = vpop.f32.mrb[0].mxu0
    %v3257 = vadd.f32 0.0, %v3256
    %v3258 = vpop.f32.mrb[0].mxu0
    %3259 = vmatprep.mubr.bf16.mxu0 0
    %3260 = vmatmul.mubr.bf16.gmra.mrb[0].mxu0 %v3124
    %v3261 = vpop.f32.mrb[0].mxu0
    %v3262 = vadd.f32 0.0, %v3261
    %v3263 = vpop.f32.mrb[0].mxu0
    %v3264 = vpop.f32.mrb[0].mxu0
    %v3265 = vadd.f32 0.0, %v3264
    %v3266 = vpop.f32.mrb[0].mxu0
    %3267 = vmatprep.mubr.bf16.mxu0 0
    %3268 = vmatmul.mubr.bf16.gmra.mrb[0].mxu0 %v3127
    %v3269 = vpop.f32.mrb[0].mxu0
    %v3270 = vadd.f32 0.0, %v3269
    %v3271 = vpop.f32.mrb[0].mxu0
    %v3272 = vpop.f32.mrb[0].mxu0
    %v3273 = vadd.f32 0.0, %v3272
    %v3274 = vpop.f32.mrb[0].mxu0
    %3275 = vmatprep.mubr.bf16.mxu0 0
    %3276 = vmatmul.mubr.bf16.gmra.mrb[0].mxu0 %v3130
    %v3277 = vpop.f32.mrb[0].mxu0
    %v3278 = vadd.f32 0.0, %v3277
    %v3279 = vpop.f32.mrb[0].mxu0
    %v3280 = vpop.f32.mrb[0].mxu0
    %v3281 = vadd.f32 0.0, %v3280
    %v3282 = vpop.f32.mrb[0].mxu0
    %3283 = vmatprep.mubr.bf16.mxu0 0
    %3284 = vmatmul.mubr.bf16.gmra.mrb[0].mxu0 %v3133
    %v3285 = vpop.f32.mrb[0].mxu0
    %v3286 = vadd.f32 0.0, %v3285
    %v3287 = vpop.f32.mrb[0].mxu0
    %v3288 = vpop.f32.mrb[0].mxu0
    %v3289 = vadd.f32 0.0, %v3288
    %v3290 = vpop.f32.mrb[0].mxu0
    %3291 = vmatprep.mubr.bf16.mxu0 0
    %3292 = vmatmul.mubr.bf16.gmra.mrb[0].mxu0 %v3136
    %v3293 = vpop.f32.mrb[0].mxu0
    %v3294 = vadd.f32 0.0, %v3293
    %v3295 = vpop.f32.mrb[0].mxu0
    %v3296 = vpop.f32.mrb[0].mxu0
    %v3297 = vadd.f32 0.0, %v3296
    %v3298 = vpop.f32.mrb[0].mxu0
    %3299 = vmatprep.mubr.bf16.mxu0 0
    %3300 = vmatmul.mubr.bf16.gmra.mrb[0].mxu0 %v3139
    %v3301 = vpop.f32.mrb[0].mxu0
    %v3302 = vadd.f32 0.0, %v3301
    %v3303 = vpop.f32.mrb[0].mxu0
    %v3304 = vpop.f32.mrb[0].mxu0
    %v3305 = vadd.f32 0.0, %v3304
    %v3306 = vpop.f32.mrb[0].mxu0
    %3307 = vmatprep.mubr.bf16.mxu0 0
    %3308 = vmatmul.mubr.bf16.gmra.mrb[0].mxu0 %v3142
    %v3309 = vpop.f32.mrb[0].mxu0
    %v3310 = vadd.f32 0.0, %v3309
    %v3311 = vpop.f32.mrb[0].mxu0
    %v3312 = vpop.f32.mrb[0].mxu0
    %v3313 = vadd.f32 0.0, %v3312
    %v3314 = vpop.f32.mrb[0].mxu0
    %3315 = vmatprep.mubr.bf16.mxu0 0
    %3316 = vmatmul.mubr.bf16.gmra.mrb[0].mxu0 %v3145
    %v3317 = vpop.f32.mrb[0].mxu0
    %v3318 = vadd.f32 0.0, %v3317
    %v3319 = vpop.f32.mrb[0].mxu0
    %v3320 = vpop.f32.mrb[0].mxu0
    %v3321 = vadd.f32 0.0, %v3320
    %v3322 = vpop.f32.mrb[0].mxu0
    %3323 = vdwg.mxu0
    %3328 = vrot.lane.b32.xlu0 %v3198, 16
    %v3329 = vpop.permute.xlu0 %3328
    %3330 = vrot.lane.b32.xlu0 %v3201, 16
    %v3331 = vpop.permute.xlu0 %3330
    %3332 = vrot.lane.b32.xlu0 %v3206, 16
    %v3333 = vpop.permute.xlu0 %3332
    %3334 = vrot.lane.b32.xlu0 %v3209, 16
    %v3335 = vpop.permute.xlu0 %3334
    %3344 = vrot.lane.b32.xlu0 %v3214, 32
    %v3345 = vpop.permute.xlu0 %3344
    %3346 = vrot.lane.b32.xlu0 %v3217, 32
    %v3347 = vpop.permute.xlu0 %3346
    %3348 = vrot.lane.b32.xlu0 %v3222, 32
    %v3349 = vpop.permute.xlu0 %3348
    %3350 = vrot.lane.b32.xlu0 %v3225, 32
    %v3351 = vpop.permute.xlu0 %3350
    %3360 = vrot.lane.b32.xlu0 %v3230, 48
    %v3361 = vpop.permute.xlu0 %3360
    %3362 = vrot.lane.b32.xlu0 %v3233, 48
    %v3363 = vpop.permute.xlu0 %3362
    %3364 = vrot.lane.b32.xlu0 %v3238, 48
    %v3365 = vpop.permute.xlu0 %3364
    %3366 = vrot.lane.b32.xlu0 %v3241, 48
    %v3367 = vpop.permute.xlu0 %3366
    %3376 = vrot.lane.b32.xlu0 %v3246, 64
    %v3377 = vpop.permute.xlu0 %3376
    %3378 = vrot.lane.b32.xlu0 %v3249, 64
    %v3379 = vpop.permute.xlu0 %3378
    %3380 = vrot.lane.b32.xlu0 %v3254, 64
    %v3381 = vpop.permute.xlu0 %3380
    %3382 = vrot.lane.b32.xlu0 %v3257, 64
    %v3383 = vpop.permute.xlu0 %3382
    %3392 = vrot.lane.b32.xlu0 %v3262, 80
    %v3393 = vpop.permute.xlu0 %3392
    %3394 = vrot.lane.b32.xlu0 %v3265, 80
    %v3395 = vpop.permute.xlu0 %3394
    %3396 = vrot.lane.b32.xlu0 %v3270, 80
    %v3397 = vpop.permute.xlu0 %3396
    %3398 = vrot.lane.b32.xlu0 %v3273, 80
    %v3399 = vpop.permute.xlu0 %3398
    %3408 = vrot.lane.b32.xlu0 %v3278, 96
    %v3409 = vpop.permute.xlu0 %3408
    %3410 = vrot.lane.b32.xlu0 %v3281, 96
    %v3411 = vpop.permute.xlu0 %3410
    %3412 = vrot.lane.b32.xlu0 %v3286, 96
    %v3413 = vpop.permute.xlu0 %3412
    %3414 = vrot.lane.b32.xlu0 %v3289, 96
    %v3415 = vpop.permute.xlu0 %3414
    %3424 = vrot.lane.b32.xlu0 %v3294, 112
    %v3425 = vpop.permute.xlu0 %3424
    %3426 = vrot.lane.b32.xlu0 %v3297, 112
    %v3427 = vpop.permute.xlu0 %3426
    %3428 = vrot.lane.b32.xlu0 %v3302, 112
    %v3429 = vpop.permute.xlu0 %3428
    %3430 = vrot.lane.b32.xlu0 %v3305, 112
    %v3431 = vpop.permute.xlu0 %3430
    %v3436 = vsel %vm1138, %v3182, %v3329
    %v3437 = vsel %vm1138, %v3185, %v3331
    %v3438 = vsel %vm1138, %v3190, %v3333
    %v3439 = vsel %vm1138, %v3193, %v3335
    %v3440 = vsel %vm226, %v3436, %v3345
    %v3441 = vsel %vm226, %v3437, %v3347
    %v3442 = vsel %vm226, %v3438, %v3349
    %v3443 = vsel %vm226, %v3439, %v3351
    %vm3444 = vcmask 392192
    %v3445 = vsel %vm3444, %v3440, %v3361
    %v3446 = vsel %vm3444, %v3441, %v3363
    %v3447 = vsel %vm3444, %v3442, %v3365
    %v3448 = vsel %vm3444, %v3443, %v3367
    %v3449 = vsel %vm162, %v3445, %v3377
    %v3450 = vsel %vm162, %v3446, %v3379
    %v3451 = vsel %vm162, %v3447, %v3381
    %v3452 = vsel %vm162, %v3448, %v3383
    %vm3453 = vcmask 654336
    %v3454 = vsel %vm3453, %v3449, %v3393
    %v3455 = vsel %vm3453, %v3450, %v3395
    %v3456 = vsel %vm3453, %v3451, %v3397
    %v3457 = vsel %vm3453, %v3452, %v3399
    %vm3458 = vcmask 785408
    %v3459 = vsel %vm3458, %v3454, %v3409
    %v3460 = vsel %vm3458, %v3455, %v3411
    %v3461 = vsel %vm3458, %v3456, %v3413
    %v3462 = vsel %vm3458, %v3457, %v3415
    %vm3463 = vcmask 916480
    %v3464 = vsel %vm3463, %v3459, %v3425
    %v3465 = vsel %vm3463, %v3460, %v3427
    %v3466 = vsel %vm3463, %v3461, %v3429
    %v3467 = vsel %vm3463, %v3462, %v3431
    %v3468 = vld [vmem:[%s10] sm:$0xf]
    %v3469 = vld [vmem:[%s10 + $0x4] sm:$0xf]
    %v3470 = vld [vmem:[%s10 + $0x8] sm:$0xf]
    %v3471 = vld [vmem:[%s10 + $0xc] sm:$0xf]
    %v3472 = vld [vmem:[%s10 + $0x10] sm:$0xf]
    %v3473 = vld [vmem:[%s10 + $0x14] sm:$0xf]
    %v3474 = vld [vmem:[%s10 + $0x18] sm:$0xf]
    %v3475 = vld [vmem:[%s10 + $0x1c] sm:$0xf]
    %v3476 = vld [vmem:[%s10 + $0x20] sm:$0xf]
    %v3477 = vld [vmem:[%s10 + $0x24] sm:$0xf]
    %v3478 = vld [vmem:[%s10 + $0x28] sm:$0xf]
    %v3479 = vld [vmem:[%s10 + $0x2c] sm:$0xf]
    %v3480 = vld [vmem:[%s10 + $0x30] sm:$0xf]
    %v3481 = vld [vmem:[%s10 + $0x34] sm:$0xf]
    %v3482 = vld [vmem:[%s10 + $0x38] sm:$0xf]
    %v3483 = vld [vmem:[%s10 + $0x3c] sm:$0xf]
    %v3484 = vld [vmem:[%s10 + $0x40] sm:$0xf]
    %v3485 = vld [vmem:[%s10 + $0x44] sm:$0xf]
    %v3486 = vpack.c.bf16 %v3465, %v3464
    %v3487 = vpack.c.bf16 %v3313, %v3310
    %v3488 = vpack.c.bf16 %v3467, %v3466
    %v3489 = vpack.c.bf16 %v3321, %v3318
    %v3508 = vunpack.c.l.b16 %v3468
    %v3509 = vunpack.c.l.b16 %v3469
    %v3510 = vunpack.c.l.b16 %v3470
    %v3511 = vunpack.c.l.b16 %v3471
    %v3512 = vunpack.c.l.b16 %v3472
    %v3513 = vunpack.c.l.b16 %v3473
    %v3514 = vunpack.c.l.b16 %v3474
    %v3515 = vunpack.c.l.b16 %v3475
    %v3516 = vunpack.c.l.b16 %v3476
    %v3517 = vunpack.c.l.b16 %v3477
    %v3518 = vunpack.c.l.b16 %v3478
    %v3519 = vunpack.c.l.b16 %v3479
    %v3520 = vunpack.c.l.b16 %v3480
    %v3521 = vunpack.c.l.b16 %v3481
    %v3522 = vunpack.c.l.b16 %v3482
    %v3523 = vunpack.c.l.b16 %v3483
    %v3524 = vunpack.c.l.b16 %v3484
    %v3525 = vunpack.c.l.b16 %v3485
    %v3526 = vpack.c.b16 %v3509, %v3508
    %v3527 = vpack.c.b16 %v3511, %v3510
    %v3528 = vpack.c.b16 %v3513, %v3512
    %v3529 = vpack.c.b16 %v3515, %v3514
    %v3530 = vpack.c.b16 %v3517, %v3516
    %v3531 = vpack.c.b16 %v3519, %v3518
    %v3532 = vpack.c.b16 %v3521, %v3520
    %v3533 = vpack.c.b16 %v3523, %v3522
    %v3534 = vpack.c.b16 %v3525, %v3524
    %v3545 = vsel %vm1138, %v3487, 0
    %v3548 = vsel %vm1138, %v3489, 0
    %3550 = vmatprep.subr.bf16.mxu0 0
    %3551 = vmatpush1.bf16.msra.mxu0 %v3526
    %3552 = vmatprep.subr.bf16.mxu0 0
    %3553 = vmatpush1.bf16.msra.mxu0 %v3527
    %3554 = vmatprep.subr.bf16.mxu0 0
    %3555 = vmatpush1.bf16.msra.mxu0 %v3528
    %3556 = vmatprep.subr.bf16.mxu0 0
    %3557 = vmatpush1.bf16.msra.mxu0 %v3529
    %3558 = vmatprep.subr.bf16.mxu0 0
    %3559 = vmatpush1.bf16.msra.mxu0 %v3530
    %3560 = vmatprep.subr.bf16.mxu0 0
    %3561 = vmatpush1.bf16.msra.mxu0 %v3531
    %3562 = vmatprep.subr.bf16.mxu0 0
    %3563 = vmatpush1.bf16.msra.mxu0 %v3532
    %3564 = vmatprep.subr.bf16.mxu0 0
    %3565 = vmatpush1.bf16.msra.mxu0 %v3533
    %3566 = vmatprep.subr.bf16.mxu0 0
    %3567 = vmatpush1.bf16.msra.mxu0 %v3534
    %3568 = vmatprep.subr.bf16.mxu0 0
    %3569 = vmatpush1.bf16.msra.mxu0 0
    %3570 = vmatprep.subr.bf16.mxu0 0
    %3571 = vmatpush1.bf16.msra.mxu0 0
    %3572 = vmatprep.subr.bf16.mxu0 0
    %3573 = vmatpush1.bf16.msra.mxu0 0
    %3574 = vmatprep.subr.bf16.mxu0 0
    %3575 = vmatpush1.bf16.msra.mxu0 0
    %3576 = vmatprep.subr.bf16.mxu0 0
    %3577 = vmatpush1.bf16.msra.mxu0 0
    %3578 = vmatprep.subr.bf16.mxu0 0
    %3579 = vmatpush1.bf16.msra.mxu0 0
    %3580 = vmatprep.subr.bf16.mxu0 0
    %3581 = vmatpush1.bf16.msra.mxu0 0
    %3582 = vmatprep.mubr.bf16.mxu0 %v3545
    %3583 = vmatmul.mubr.bf16.gmra.mrb[0].mxu0 %v3486
    %v3584 = vpop.f32.mrb[0].mxu0
    %v3585 = vadd.f32 0.0, %v3584
    %v3586 = vpop.f32.mrb[0].mxu0
    %v3587 = vpop.f32.mrb[0].mxu0
    %v3588 = vadd.f32 0.0, %v3587
    %v3589 = vpop.f32.mrb[0].mxu0
    %3590 = vmatprep.mubr.bf16.mxu0 %v3548
    %3591 = vmatmul.mubr.bf16.gmra.mrb[0].mxu0 %v3488
    %v3592 = vpop.f32.mrb[0].mxu0
    %v3593 = vadd.f32 0.0, %v3592
    %v3594 = vpop.f32.mrb[0].mxu0
    %v3595 = vpop.f32.mrb[0].mxu0
    %v3596 = vadd.f32 0.0, %v3595
    %v3597 = vpop.f32.mrb[0].mxu0
    %3598 = vdwg.mxu0
    %v3599 = vsel %vm1138, %v3585, 0.0
    %3600 = vadd.xlane.f32.xlu0 %v3599
    %v3601 = vpop.xlane.xlu0 %3600
    %v3602 = vsel %vm1138, %v3588, 0.0
    %3603 = vadd.xlane.f32.xlu0 %v3602
    %v3604 = vpop.xlane.xlu0 %3603
    %v3605 = vsel %vm1138, %v3593, 0.0
    %3606 = vadd.xlane.f32.xlu0 %v3605
    %v3607 = vpop.xlane.xlu0 %3606
    %v3608 = vsel %vm1138, %v3596, 0.0
    %3609 = vadd.xlane.f32.xlu0 %v3608
    %v3610 = vpop.xlane.xlu0 %3609
    %v3611 = vmul.f32 %v3601, %v2908
    %v3612 = vmul.f32 %v3604, %v2908
    %v3613 = vmul.f32 %v3607, %v2908
    %v3614 = vmul.f32 %v3610, %v2908
    %v3615 = vsub.f32 %v3585, %v3611
    %v3616 = vsub.f32 %v3588, %v3612
    %v3617 = vsub.f32 %v3593, %v3613
    %v3618 = vsub.f32 %v3596, %v3614
    %v3619 = vmul.f32 %v3615, %v3615
    %v3620 = vmul.f32 %v3616, %v3616
    %v3621 = vmul.f32 %v3617, %v3617
    %v3622 = vmul.f32 %v3618, %v3618
    %v3623 = vsel %vm1138, %v3619, 0.0
    %3624 = vadd.xlane.f32.xlu0 %v3623
    %v3625 = vpop.xlane.xlu0 %3624
    %v3626 = vsel %vm1138, %v3620, 0.0
    %3627 = vadd.xlane.f32.xlu0 %v3626
    %v3628 = vpop.xlane.xlu0 %3627
    %v3629 = vsel %vm1138, %v3621, 0.0
    %3630 = vadd.xlane.f32.xlu0 %v3629
    %v3631 = vpop.xlane.xlu0 %3630
    %v3632 = vsel %vm1138, %v3622, 0.0
    %3633 = vadd.xlane.f32.xlu0 %v3632
    %v3634 = vpop.xlane.xlu0 %3633
    %v3635 = vmul.f32 %v3625, %v2908
    %v3636 = vmul.f32 %v3628, %v2908
    %v3637 = vmul.f32 %v3631, %v2908
    %v3638 = vmul.f32 %v3634, %v2908
    %v3639 = vadd.f32 %v3635, 1e-06
    %v3640 = vadd.f32 %v3636, 1e-06
    %v3641 = vadd.f32 %v3637, 1e-06
    %v3642 = vadd.f32 %v3638, 1e-06
    %v3643 = vrsqrt.pop %v3639
    %v3644 = vrsqrt.pop %v3640
    %v3645 = vrsqrt.pop %v3641
    %v3646 = vrsqrt.pop %v3642
    %v3647 = vmul.f32 %v3615, %v3643
    %v3648 = vmul.f32 %v3616, %v3644
    %v3649 = vmul.f32 %v3617, %v3645
    %v3650 = vmul.f32 %v3618, %v3646
    %v3651 = vlaneseq
    %v3652 = vshrl.u32 %v3651, 7
    %v3653 = vsub.s32 3, %v3652
    %v3654 = vrot.slane %v45, %v3653
    %v3655 = vmul.f32 %v3647, %v3654
    %v3656 = vmul.f32 %v3648, %v3654
    %v3657 = vmul.f32 %v3649, %v3654
    %v3658 = vmul.f32 %v3650, %v3654
    %v3659 = vlaneseq
    %v3660 = vshrl.u32 %v3659, 7
    %v3661 = vsub.s32 4, %v3660
    %v3662 = vrot.slane %v45, %v3661
    %v3663 = vadd.f32 %v3655, %v3662
    %v3664 = vadd.f32 %v3656, %v3662
    %v3665 = vadd.f32 %v3657, %v3662
    %v3666 = vadd.f32 %v3658, %v3662
    %3667 = vst.msk [vmem:[#allocation2] sm:$0xff] %vm1138, %v3663
    %3668 = vst.msk [vmem:[#allocation2 + $0x8] sm:$0xff] %vm1138, %v3664
    %3669 = vst.msk [vmem:[#allocation2 + $0x10] sm:$0xff] %vm1138, %v3665
    %3670 = vst.msk [vmem:[#allocation2 + $0x18] sm:$0xff] %vm1138, %v3666
    // Predicated region
    $region50: #{sam_image_encoder_forward.1} parent=1 // pred_check
      _
    $region51: #{sam_image_encoder_forward.1} parent=1 // pred_check_branch
      %3672 = sbr.rel (0) target = $region53
    $region52: #{sam_image_encoder_forward.1} parent=1 // pred_region
      %s3674 = ssub.s32 512, 512
      %3675 = vsyncadd [#allocation3], %s3674
      %s3676 = sshll.u32 [#allocation2], 4
      %s3677 = int_to_ptr.vmem [resolvable:$true] %s3676
      %3682 = dma.vmem_to_hbm [thread:$0]  %s3677, 512, %s12, [#allocation3], 128, 128, 8
    $region53: #{sam_image_encoder_forward.1} parent=1 // pred_fallthru
      _
    // Predicated region
    $region54: #{sam_image_encoder_forward.1} parent=1 // pred_check
      _
    $region55: #{sam_image_encoder_forward.1} parent=1 // pred_check_branch
      %3684 = sbr.rel (0) target = $region57
    $region56: #{sam_image_encoder_forward.1} parent=1 // pred_region
      %3685 = dma.done [#allocation3], 512
    $region57: #{sam_image_encoder_forward.1} parent=1 // pred_fallthru
      _
    %3686 = vsyncpa [#allocation3], 1

</llo_original>
